<compile_context>
chip_gen: v7x
topology: tpu7x:2x2x1
jax: 0.10.0
libtpu: 0.0.40
codegen_flags: <defaults>
</compile_context>

<pallas_src>
import math

import jax
import jax.numpy as jnp
from jax import lax
from jax.experimental import pallas as pl
from jax.experimental.pallas import tpu as pltpu

_BN_EPS = 1e-5


def _pick_tile_rows(H, W, Cin, Cmid, Cout, max_bytes=4 << 20):
    """Row-tile height: largest even divisor of H whose per-step working set
    stays under `max_bytes` (keeps v7x's 64 MiB VMEM happy), preferring >= 2
    tiles per image so the grid has enough steps to pipeline / megacore-shard.
    On v5e/v6e a larger `max_bytes` (bigger tiles) amortizes per-step overhead."""
    per_row = (W + 2) * (2 * Cin + 4 * Cout + 6 * Cmid) + W * (18 * Cmid + 8 * Cout)
    cap = max(2, int(max_bytes // max(per_row, 1)))
    cands = [t for t in range(2, H + 1, 2) if H % t == 0 and t <= cap]
    if not cands:
        return H
    multi = [t for t in cands if H // t >= 2]
    return max(multi) if multi else max(cands)


def _build_kernel(th, H, W, Cin, Cmid, Cout, cdt):
    """One grid step = one (image, row-tile); everything below stays in VMEM."""
    Wp = W + 2

    def kernel(xm_ref, xh_ref, wsc_ref, bsc_ref, w1_ref, b1_ref,
               w2_ref, b2_ref, w3_ref, b3_ref, o_ref, s_scr, r1_scr):
        h = pl.program_id(1)

        # ---- stage 1: shortcut 1x1 (+BN+ReLU) and residual 1x1 (+BN+ReLU) ----
        # Runs on the th-row main slab and on the 2-row bottom halo.
        def stage1(x3, row0, nrows, base):
            x2 = x3.reshape(nrows * Wp, Cin)                        # merge dims
            s = jnp.dot(x2, wsc_ref[...], preferred_element_type=jnp.float32)
            s = jnp.maximum(s + bsc_ref[...], 0.0)                  # (rows, Cout)
            r1 = jnp.dot(s.astype(cdt), w1_ref[...],
                         preferred_element_type=jnp.float32)
            r1 = jnp.maximum(r1 + b1_ref[...], 0.0)                 # (rows, Cmid)
            # Conv2 (3x3, padding=1) zero-pads r1, NOT x: zero every slab
            # position that falls in the 1-pixel ring around the image.
            row = lax.broadcasted_iota(jnp.int32, (nrows, Wp, Cmid), 0) + row0
            col = lax.broadcasted_iota(jnp.int32, (nrows, Wp, Cmid), 1)
            inside = (row >= 1) & (row <= H) & (col >= 1) & (col <= W)
            mask = inside.astype(jnp.float32).reshape(nrows * Wp, Cmid)
            r1 = (r1 * mask).astype(cdt)
            # Park both in padded (rows, cols, chan) scratch for 2-D slicing.
            for i in range(nrows):                                  # static unroll
                s_scr[base + i] = s[i * Wp:(i + 1) * Wp, :]
                r1_scr[base + i] = r1[i * Wp:(i + 1) * Wp, :]

        stage1(xm_ref[0], h * th, th, 0)          # padded rows [h*th, h*th+th)
        stage1(xh_ref[0], (h + 1) * th, 2, th)    # padded rows [+th, +th+2)

        # ---- stage 2: 3x3 conv (+BN+ReLU) as ONE matmul with K = 9*Cmid ----
        # Patch feature order (kh, kw, cin) matches the fold-time w2 layout.
        slab = r1_scr[...]                                          # (th+2, Wp, Cmid)
        wide = jnp.concatenate(
            [slab[:, 0:W, :], slab[:, 1:W + 1, :], slab[:, 2:W + 2, :]], axis=-1)
        patches = jnp.concatenate(
            [wide[0:th], wide[1:th + 1], wide[2:th + 2]], axis=-1)  # (th, W, 9*Cmid)
        r2 = jnp.dot(patches.reshape(th * W, 9 * Cmid), w2_ref[...],
                     preferred_element_type=jnp.float32)
        r2 = jnp.maximum(r2 + b2_ref[...], 0.0)

        # ---- stage 3: final 1x1 projection + BN + shortcut add + ReLU ----
        y = jnp.dot(r2.astype(cdt), w3_ref[...],
                    preferred_element_type=jnp.float32)
        s_out = s_scr[1:th + 1, 1:W + 1, :].reshape(th * W, Cout)   # interior rows
        y = y + b3_ref[...] + s_out
        o_ref[0] = jnp.maximum(y, 0.0).astype(o_ref.dtype)

    return kernel


def res_skip_block_forward(x_nchw, fp, *, tile_rows=None, out_dtype=jnp.float32):
    """ResSkipBlock_one.forward (stride=1, eval-mode BN) as ONE fused Pallas call."""
    N, Cin, H, W = x_nchw.shape
    Cout = fp['wsc'].shape[1]
    Cmid = fp['w1'].shape[1]
    cdt = fp['wsc'].dtype
    Wp = W + 2

    if H % 2 != 0:
        raise NotImplementedError("odd H")  # TODO(synk): odd-H halo split

    th = tile_rows if tile_rows is not None else _pick_tile_rows(H, W, Cin, Cmid, Cout)
    assert th % 2 == 0 and H % th == 0, (th, H)
    if (th * W) % 8 != 0:
        th = H                      # full-extent output block is always legal
    nh = H // th

    # NCHW -> NHWC, bf16 cast and 1-pixel zero pad of H/W in one host pass.
    x = jnp.transpose(x_nchw, (0, 2, 3, 1)).astype(cdt)
    xp = jnp.pad(x, ((0, 0), (1, 1), (1, 1), (0, 0)))

    kernel = _build_kernel(th, H, W, Cin, Cmid, Cout, cdt)

    out = pl.pallas_call(
        kernel,
        out_shape=jax.ShapeDtypeStruct((N, H * W, Cout), out_dtype),
        grid_spec=pltpu.PrefetchScalarGridSpec(
            num_scalar_prefetch=0,
            grid=(N, nh),
            in_specs=[
                # x row-slab and its 2-row bottom halo (same array, two windows)
                pl.BlockSpec((1, th, Wp, Cin), lambda n, h: (n, h, 0, 0)),
                pl.BlockSpec((1, 2, Wp, Cin),
                             lambda n, h: (n, (h + 1) * (th // 2), 0, 0)),
                # folded weights / biases: constant index maps -> VMEM resident
                pl.BlockSpec((Cin, Cout), lambda n, h: (0, 0)),
                pl.BlockSpec((1, Cout), lambda n, h: (0, 0)),
                pl.BlockSpec((Cout, Cmid), lambda n, h: (0, 0)),
                pl.BlockSpec((1, Cmid), lambda n, h: (0, 0)),
                pl.BlockSpec((9 * Cmid, Cmid), lambda n, h: (0, 0)),
                pl.BlockSpec((1, Cmid), lambda n, h: (0, 0)),
                pl.BlockSpec((Cmid, Cout), lambda n, h: (0, 0)),
                pl.BlockSpec((1, Cout), lambda n, h: (0, 0)),
            ],
            out_specs=pl.BlockSpec((1, th * W, Cout), lambda n, h: (n, h, 0)),
            scratch_shapes=[
                pltpu.VMEM((th + 2, Wp, Cout), jnp.float32),   # shortcut slab
                pltpu.VMEM((th + 2, Wp, Cmid), cdt),           # bottleneck slab
            ]),
        compiler_params=pltpu.CompilerParams(
            dimension_semantics=("parallel", "parallel")),
    )(xp, xp, fp['wsc'], fp['bsc'], fp['w1'], fp['b1'],
      fp['w2'], fp['b2'], fp['w3'], fp['b3'])

    y = out.reshape(N, H, W, Cout)
    return jnp.transpose(y, (0, 3, 1, 2))                      # NHWC -> NCHW


# ---------------------------------------------------------------------------
# Parameters (torch-style shapes), BN folding.
# ---------------------------------------------------------------------------
def init_torch_params(key, in_ch, out_ch):
    mid = out_ch // 4
    ks = jax.random.split(key, 20)

    def conv_w(k, shape):
        fan_in = shape[1] * shape[2] * shape[3]
        b = 1.0 / math.sqrt(fan_in)
        return jax.random.uniform(k, shape, jnp.float32, -b, b)

    def bn(k0, k1, k2, k3, c):
        return (1.0 + 0.1 * jax.random.normal(k0, (c,), jnp.float32),
                0.1 * jax.random.normal(k1, (c,), jnp.float32),
                0.1 * jax.random.normal(k2, (c,), jnp.float32),
                1.0 + 0.1 * jax.random.uniform(k3, (c,), jnp.float32))

    p = {}
    p['w_sc'] = conv_w(ks[0], (out_ch, in_ch, 1, 1))
    p['g_sc'], p['be_sc'], p['m_sc'], p['v_sc'] = bn(*ks[1:5], out_ch)
    p['w_r1'] = conv_w(ks[5], (mid, out_ch, 1, 1))
    p['g_r1'], p['be_r1'], p['m_r1'], p['v_r1'] = bn(*ks[6:10], mid)
    p['w_r2'] = conv_w(ks[10], (mid, mid, 3, 3))
    p['g_r2'], p['be_r2'], p['m_r2'], p['v_r2'] = bn(*ks[11:15], mid)
    p['w_r3'] = conv_w(ks[15], (out_ch, mid, 1, 1))
    p['g_r3'], p['be_r3'], p['m_r3'], p['v_r3'] = bn(*ks[16:20], out_ch)
    return p


def fold_params(p, compute_dtype=jnp.bfloat16):
    """Fold eval-mode BatchNorm into the (bias-free) conv weights.  Weights go
    to matmul layout in the MXU compute dtype; biases stay f32 (f32 epilogue).
    On v7x, compute_dtype could be an fp8 type for large-channel variants."""
    def sb(g, be, m, v):
        scale = g / jnp.sqrt(v + _BN_EPS)
        return scale, be - m * scale

    def fold_1x1(w_oihw, g, be, m, v):
        scale, bias = sb(g, be, m, v)
        w2d = (w_oihw[:, :, 0, 0] * scale[:, None]).T              # (Cin, Cout)
        return w2d.astype(compute_dtype), bias[None, :].astype(jnp.float32)

    def fold_3x3(w_oihw, g, be, m, v):
        scale, bias = sb(g, be, m, v)
        w = w_oihw * scale[:, None, None, None]                    # (O, I, 3, 3)
        # matmul layout with rows ordered (kh, kw, cin): (9*I, O)
        w_mat = jnp.transpose(w, (2, 3, 1, 0)).reshape(9 * w.shape[1], w.shape[0])
        return w_mat.astype(compute_dtype), bias[None, :].astype(jnp.float32)

    fp = {}
    fp['wsc'], fp['bsc'] = fold_1x1(p['w_sc'], p['g_sc'], p['be_sc'], p['m_sc'], p['v_sc'])
    fp['w1'], fp['b1'] = fold_1x1(p['w_r1'], p['g_r1'], p['be_r1'], p['m_r1'], p['v_r1'])
    fp['w2'], fp['b2'] = fold_3x3(p['w_r2'], p['g_r2'], p['be_r2'], p['m_r2'], p['v_r2'])
    fp['w3'], fp['b3'] = fold_1x1(p['w_r3'], p['g_r3'], p['be_r3'], p['m_r3'], p['v_r3'])
    return fp


# ---------------------------------------------------------------------------
# Pure-JAX f32 reference mirroring the PyTorch (eval-mode) semantics.
# ---------------------------------------------------------------------------
def reference_forward(x, p):
    dn = ('NCHW', 'OIHW', 'NCHW')

    def bn(t, g, be, m, v):
        inv = g / jnp.sqrt(v + _BN_EPS)
        return (t - m[None, :, None, None]) * inv[None, :, None, None] \
            + be[None, :, None, None]

    s = lax.conv_general_dilated(x, p['w_sc'], (1, 1), [(0, 0), (0, 0)],
                                 dimension_numbers=dn)
    s = jax.nn.relu(bn(s, p['g_sc'], p['be_sc'], p['m_sc'], p['v_sc']))

    r = lax.conv_general_dilated(s, p['w_r1'], (1, 1), [(0, 0), (0, 0)],
                                 dimension_numbers=dn)
    r = jax.nn.relu(bn(r, p['g_r1'], p['be_r1'], p['m_r1'], p['v_r1']))
    r = lax.conv_general_dilated(r, p['w_r2'], (1, 1), [(1, 1), (1, 1)],
                                 dimension_numbers=dn)
    r = jax.nn.relu(bn(r, p['g_r2'], p['be_r2'], p['m_r2'], p['v_r2']))
    r = lax.conv_general_dilated(r, p['w_r3'], (1, 1), [(0, 0), (0, 0)],
                                 dimension_numbers=dn)
    r = bn(r, p['g_r3'], p['be_r3'], p['m_r3'], p['v_r3'])

    return jax.nn.relu(s + r)


if __name__ == "__main__":
    key = jax.random.PRNGKey(0)
    kx, kp = jax.random.split(key)

    N, in_ch, out_ch, H, W = 2, 8, 16, 16, 16
    x = jax.random.normal(kx, (N, in_ch, H, W), jnp.float32)

    p = init_torch_params(kp, in_ch, out_ch)
    fp = fold_params(p)

    fwd = jax.jit(res_skip_block_forward)
    y = jax.block_until_ready(fwd(x, fp))
    y_ref = jax.block_until_ready(reference_forward(x, p))

    assert y.shape == (N, out_ch, H, W), y.shape
    max_err = float(jnp.max(jnp.abs(y - y_ref)))
    # bf16 MXU operands (f32 accumulation) -> relaxed tolerance vs f32 reference.
    assert jnp.allclose(y, y_ref, atol=5e-2, rtol=5e-2), max_err
    print("KERNEL_OK")
</pallas_src>

<mosaic_0001>
module attributes {stable_mosaic.version = 11 : i64} {
  func.func @kernel(%arg0: i32, %arg1: i32, %arg2: memref<1x8x18x8xbf16, #tpu.memory_space<vmem>>, %arg3: memref<1x2x18x8xbf16, #tpu.memory_space<vmem>>, %arg4: memref<8x16xbf16, #tpu.memory_space<vmem>>, %arg5: memref<1x16xf32, #tpu.memory_space<vmem>>, %arg6: memref<16x4xbf16, #tpu.memory_space<vmem>>, %arg7: memref<1x4xf32, #tpu.memory_space<vmem>>, %arg8: memref<36x4xbf16, #tpu.memory_space<vmem>>, %arg9: memref<1x4xf32, #tpu.memory_space<vmem>>, %arg10: memref<4x16xbf16, #tpu.memory_space<vmem>>, %arg11: memref<1x16xf32, #tpu.memory_space<vmem>>, %arg12: memref<1x128x16xf32, #tpu.memory_space<vmem>>, %arg13: memref<10x18x16xf32, #tpu.memory_space<vmem>>, %arg14: memref<10x18x4xbf16, #tpu.memory_space<vmem>>) attributes {dimension_semantics = [#tpu.dimension_semantics<parallel>, #tpu.dimension_semantics<parallel>], iteration_bounds = array<i64: 2, 2>, scalar_prefetch = 0 : i64, scratch_operands = 2 : i64, tpu.core_type = #tpu.core_type<tc>, window_params = [{transform_indices = @transform_0, window_bounds = array<i64: 1, 8, 18, 8>}, {transform_indices = @transform_1, window_bounds = array<i64: 1, 2, 18, 8>}, {pipeline_mode = #tpu.pipeline_mode<synchronous>, transform_indices = @transform_2, window_bounds = array<i64: 8, 16>}, {pipeline_mode = #tpu.pipeline_mode<synchronous>, transform_indices = @transform_3, window_bounds = array<i64: 1, 16>}, {pipeline_mode = #tpu.pipeline_mode<synchronous>, transform_indices = @transform_4, window_bounds = array<i64: 16, 4>}, {pipeline_mode = #tpu.pipeline_mode<synchronous>, transform_indices = @transform_5, window_bounds = array<i64: 1, 4>}, {pipeline_mode = #tpu.pipeline_mode<synchronous>, transform_indices = @transform_6, window_bounds = array<i64: 36, 4>}, {pipeline_mode = #tpu.pipeline_mode<synchronous>, transform_indices = @transform_7, window_bounds = array<i64: 1, 4>}, {pipeline_mode = #tpu.pipeline_mode<synchronous>, transform_indices = @transform_8, window_bounds = array<i64: 4, 16>}, {pipeline_mode = #tpu.pipeline_mode<synchronous>, transform_indices = @transform_9, window_bounds = array<i64: 1, 16>}, {transform_indices = @transform_10, window_bounds = array<i64: 1, 128, 16>}]} {
    %c0 = arith.constant 0 : index
    %c0_0 = arith.constant 0 : index
    %c0_1 = arith.constant 0 : index
    %c0_2 = arith.constant 0 : index
    %0 = vector.load %arg2[%c0, %c0_0, %c0_1, %c0_2] : memref<1x8x18x8xbf16, #tpu.memory_space<vmem>>, vector<1x8x18x8xbf16>
    %1 = vector.shape_cast %0 : vector<1x8x18x8xbf16> to vector<8x18x8xbf16>
    %c8_i32 = arith.constant 8 : i32
    %2 = arith.muli %arg1, %c8_i32 : i32
    %3 = vector.shape_cast %1 : vector<8x18x8xbf16> to vector<144x8xbf16>
    %c0_3 = arith.constant 0 : index
    %c0_4 = arith.constant 0 : index
    %4 = vector.load %arg4[%c0_3, %c0_4] : memref<8x16xbf16, #tpu.memory_space<vmem>>, vector<8x16xbf16>
    %cst = arith.constant dense<0.000000e+00> : vector<144x16xf32>
    %5 = tpu.matmul %3, %4, %cst {dimension_numbers = #tpu.dot_dimension_numbers<[1], [0], [0], [1], [0, 0, 1, 1], [], []>} : vector<144x8xbf16>, vector<8x16xbf16>, vector<144x16xf32> -> vector<144x16xf32>
    %c0_5 = arith.constant 0 : index
    %c0_6 = arith.constant 0 : index
    %6 = vector.load %arg5[%c0_5, %c0_6] : memref<1x16xf32, #tpu.memory_space<vmem>>, vector<1x16xf32>
    %7 = vector.broadcast %6 : vector<1x16xf32> to vector<144x16xf32>
    %8 = arith.addf %5, %7 : vector<144x16xf32>
    %cst_7 = arith.constant 0.000000e+00 : f32
    %9 = vector.broadcast %cst_7 : f32 to vector<144x16xf32>
    %10 = arith.maximumf %8, %9 : vector<144x16xf32>
    %11 = arith.truncf %10 : vector<144x16xf32> to vector<144x16xbf16>
    %c0_8 = arith.constant 0 : index
    %c0_9 = arith.constant 0 : index
    %12 = vector.load %arg6[%c0_8, %c0_9] : memref<16x4xbf16, #tpu.memory_space<vmem>>, vector<16x4xbf16>
    %cst_10 = arith.constant dense<0.000000e+00> : vector<144x4xf32>
    %13 = tpu.matmul %11, %12, %cst_10 {dimension_numbers = #tpu.dot_dimension_numbers<[1], [0], [0], [1], [0, 0, 1, 1], [], []>} : vector<144x16xbf16>, vector<16x4xbf16>, vector<144x4xf32> -> vector<144x4xf32>
    %c0_11 = arith.constant 0 : index
    %c0_12 = arith.constant 0 : index
    %14 = vector.load %arg7[%c0_11, %c0_12] : memref<1x4xf32, #tpu.memory_space<vmem>>, vector<1x4xf32>
    %15 = vector.broadcast %14 : vector<1x4xf32> to vector<144x4xf32>
    %16 = arith.addf %13, %15 : vector<144x4xf32>
    %cst_13 = arith.constant 0.000000e+00 : f32
    %17 = vector.broadcast %cst_13 : f32 to vector<144x4xf32>
    %18 = arith.maximumf %16, %17 : vector<144x4xf32>
    %19 = tpu.iota {dimensions = array<i32: 0>} : vector<8x18x4xi32>
    %20 = vector.broadcast %2 : i32 to vector<8x18x4xi32>
    %21 = arith.addi %19, %20 : vector<8x18x4xi32>
    %22 = tpu.iota {dimensions = array<i32: 1>} : vector<8x18x4xi32>
    %c1_i32 = arith.constant 1 : i32
    %23 = vector.broadcast %c1_i32 : i32 to vector<8x18x4xi32>
    %24 = arith.cmpi sge, %21, %23 : vector<8x18x4xi32>
    %c16_i32 = arith.constant 16 : i32
    %25 = vector.broadcast %c16_i32 : i32 to vector<8x18x4xi32>
    %26 = arith.cmpi sle, %21, %25 : vector<8x18x4xi32>
    %27 = arith.andi %24, %26 : vector<8x18x4xi1>
    %c1_i32_14 = arith.constant 1 : i32
    %28 = vector.broadcast %c1_i32_14 : i32 to vector<8x18x4xi32>
    %29 = arith.cmpi sge, %22, %28 : vector<8x18x4xi32>
    %30 = arith.andi %27, %29 : vector<8x18x4xi1>
    %c16_i32_15 = arith.constant 16 : i32
    %31 = vector.broadcast %c16_i32_15 : i32 to vector<8x18x4xi32>
    %32 = arith.cmpi sle, %22, %31 : vector<8x18x4xi32>
    %33 = arith.andi %30, %32 : vector<8x18x4xi1>
    %34 = arith.extui %33 : vector<8x18x4xi1> to vector<8x18x4xi32>
    %35 = arith.sitofp %34 : vector<8x18x4xi32> to vector<8x18x4xf32>
    %36 = vector.shape_cast %35 : vector<8x18x4xf32> to vector<144x4xf32>
    %37 = arith.mulf %18, %36 : vector<144x4xf32>
    %38 = arith.truncf %37 : vector<144x4xf32> to vector<144x4xbf16>
    %39 = vector.extract_strided_slice %10 {offsets = [0, 0], sizes = [18, 16], strides = [1, 1]} : vector<144x16xf32> to vector<18x16xf32>
    %c0_16 = arith.constant 0 : index
    %c0_17 = arith.constant 0 : index
    %c0_18 = arith.constant 0 : index
    %40 = vector.load %arg13[%c0_16, %c0_17, %c0_18] : memref<10x18x16xf32, #tpu.memory_space<vmem>>, vector<1x18x16xf32>
    %41 = vector.shape_cast %40 : vector<1x18x16xf32> to vector<18x16xf32>
    %42 = vector.shape_cast %39 : vector<18x16xf32> to vector<1x18x16xf32>
    tpu.vector_store %arg13[%c0_16, %c0_17, %c0_18], %42 {strides = array<i32>} : memref<10x18x16xf32, #tpu.memory_space<vmem>>, vector<1x18x16xf32>,
    %43 = vector.extract_strided_slice %38 {offsets = [0, 0], sizes = [18, 4], strides = [1, 1]} : vector<144x4xbf16> to vector<18x4xbf16>
    %c0_19 = arith.constant 0 : index
    %c0_20 = arith.constant 0 : index
    %c0_21 = arith.constant 0 : index
    %44 = vector.load %arg14[%c0_19, %c0_20, %c0_21] : memref<10x18x4xbf16, #tpu.memory_space<vmem>>, vector<1x18x4xbf16>
    %45 = vector.shape_cast %44 : vector<1x18x4xbf16> to vector<18x4xbf16>
    %46 = vector.shape_cast %43 : vector<18x4xbf16> to vector<1x18x4xbf16>
    tpu.vector_store %arg14[%c0_19, %c0_20, %c0_21], %46 {strides = array<i32>} : memref<10x18x4xbf16, #tpu.memory_space<vmem>>, vector<1x18x4xbf16>,
    %47 = vector.extract_strided_slice %10 {offsets = [18, 0], sizes = [18, 16], strides = [1, 1]} : vector<144x16xf32> to vector<18x16xf32>
    %c1 = arith.constant 1 : index
    %c0_22 = arith.constant 0 : index
    %c0_23 = arith.constant 0 : index
    %48 = vector.load %arg13[%c1, %c0_22, %c0_23] : memref<10x18x16xf32, #tpu.memory_space<vmem>>, vector<1x18x16xf32>
    %49 = vector.shape_cast %48 : vector<1x18x16xf32> to vector<18x16xf32>
    %50 = vector.shape_cast %47 : vector<18x16xf32> to vector<1x18x16xf32>
    tpu.vector_store %arg13[%c1, %c0_22, %c0_23], %50 {strides = array<i32>} : memref<10x18x16xf32, #tpu.memory_space<vmem>>, vector<1x18x16xf32>,
    %51 = vector.extract_strided_slice %38 {offsets = [18, 0], sizes = [18, 4], strides = [1, 1]} : vector<144x4xbf16> to vector<18x4xbf16>
    %c1_24 = arith.constant 1 : index
    %c0_25 = arith.constant 0 : index
    %c0_26 = arith.constant 0 : index
    %52 = vector.load %arg14[%c1_24, %c0_25, %c0_26] : memref<10x18x4xbf16, #tpu.memory_space<vmem>>, vector<1x18x4xbf16>
    %53 = vector.shape_cast %52 : vector<1x18x4xbf16> to vector<18x4xbf16>
    %54 = vector.shape_cast %51 : vector<18x4xbf16> to vector<1x18x4xbf16>
    tpu.vector_store %arg14[%c1_24, %c0_25, %c0_26], %54 {strides = array<i32>} : memref<10x18x4xbf16, #tpu.memory_space<vmem>>, vector<1x18x4xbf16>,
    %55 = vector.extract_strided_slice %10 {offsets = [36, 0], sizes = [18, 16], strides = [1, 1]} : vector<144x16xf32> to vector<18x16xf32>
    %c2 = arith.constant 2 : index
    %c0_27 = arith.constant 0 : index
    %c0_28 = arith.constant 0 : index
    %56 = vector.load %arg13[%c2, %c0_27, %c0_28] : memref<10x18x16xf32, #tpu.memory_space<vmem>>, vector<1x18x16xf32>
    %57 = vector.shape_cast %56 : vector<1x18x16xf32> to vector<18x16xf32>
    %58 = vector.shape_cast %55 : vector<18x16xf32> to vector<1x18x16xf32>
    tpu.vector_store %arg13[%c2, %c0_27, %c0_28], %58 {strides = array<i32>} : memref<10x18x16xf32, #tpu.memory_space<vmem>>, vector<1x18x16xf32>,
    %59 = vector.extract_strided_slice %38 {offsets = [36, 0], sizes = [18, 4], strides = [1, 1]} : vector<144x4xbf16> to vector<18x4xbf16>
    %c2_29 = arith.constant 2 : index
    %c0_30 = arith.constant 0 : index
    %c0_31 = arith.constant 0 : index
    %60 = vector.load %arg14[%c2_29, %c0_30, %c0_31] : memref<10x18x4xbf16, #tpu.memory_space<vmem>>, vector<1x18x4xbf16>
    %61 = vector.shape_cast %60 : vector<1x18x4xbf16> to vector<18x4xbf16>
    %62 = vector.shape_cast %59 : vector<18x4xbf16> to vector<1x18x4xbf16>
    tpu.vector_store %arg14[%c2_29, %c0_30, %c0_31], %62 {strides = array<i32>} : memref<10x18x4xbf16, #tpu.memory_space<vmem>>, vector<1x18x4xbf16>,
    %63 = vector.extract_strided_slice %10 {offsets = [54, 0], sizes = [18, 16], strides = [1, 1]} : vector<144x16xf32> to vector<18x16xf32>
    %c3 = arith.constant 3 : index
    %c0_32 = arith.constant 0 : index
    %c0_33 = arith.constant 0 : index
    %64 = vector.load %arg13[%c3, %c0_32, %c0_33] : memref<10x18x16xf32, #tpu.memory_space<vmem>>, vector<1x18x16xf32>
    %65 = vector.shape_cast %64 : vector<1x18x16xf32> to vector<18x16xf32>
    %66 = vector.shape_cast %63 : vector<18x16xf32> to vector<1x18x16xf32>
    tpu.vector_store %arg13[%c3, %c0_32, %c0_33], %66 {strides = array<i32>} : memref<10x18x16xf32, #tpu.memory_space<vmem>>, vector<1x18x16xf32>,
    %67 = vector.extract_strided_slice %38 {offsets = [54, 0], sizes = [18, 4], strides = [1, 1]} : vector<144x4xbf16> to vector<18x4xbf16>
    %c3_34 = arith.constant 3 : index
    %c0_35 = arith.constant 0 : index
    %c0_36 = arith.constant 0 : index
    %68 = vector.load %arg14[%c3_34, %c0_35, %c0_36] : memref<10x18x4xbf16, #tpu.memory_space<vmem>>, vector<1x18x4xbf16>
    %69 = vector.shape_cast %68 : vector<1x18x4xbf16> to vector<18x4xbf16>
    %70 = vector.shape_cast %67 : vector<18x4xbf16> to vector<1x18x4xbf16>
    tpu.vector_store %arg14[%c3_34, %c0_35, %c0_36], %70 {strides = array<i32>} : memref<10x18x4xbf16, #tpu.memory_space<vmem>>, vector<1x18x4xbf16>,
    %71 = vector.extract_strided_slice %10 {offsets = [72, 0], sizes = [18, 16], strides = [1, 1]} : vector<144x16xf32> to vector<18x16xf32>
    %c4 = arith.constant 4 : index
    %c0_37 = arith.constant 0 : index
    %c0_38 = arith.constant 0 : index
    %72 = vector.load %arg13[%c4, %c0_37, %c0_38] : memref<10x18x16xf32, #tpu.memory_space<vmem>>, vector<1x18x16xf32>
    %73 = vector.shape_cast %72 : vector<1x18x16xf32> to vector<18x16xf32>
    %74 = vector.shape_cast %71 : vector<18x16xf32> to vector<1x18x16xf32>
    tpu.vector_store %arg13[%c4, %c0_37, %c0_38], %74 {strides = array<i32>} : memref<10x18x16xf32, #tpu.memory_space<vmem>>, vector<1x18x16xf32>,
    %75 = vector.extract_strided_slice %38 {offsets = [72, 0], sizes = [18, 4], strides = [1, 1]} : vector<144x4xbf16> to vector<18x4xbf16>
    %c4_39 = arith.constant 4 : index
    %c0_40 = arith.constant 0 : index
    %c0_41 = arith.constant 0 : index
    %76 = vector.load %arg14[%c4_39, %c0_40, %c0_41] : memref<10x18x4xbf16, #tpu.memory_space<vmem>>, vector<1x18x4xbf16>
    %77 = vector.shape_cast %76 : vector<1x18x4xbf16> to vector<18x4xbf16>
    %78 = vector.shape_cast %75 : vector<18x4xbf16> to vector<1x18x4xbf16>
    tpu.vector_store %arg14[%c4_39, %c0_40, %c0_41], %78 {strides = array<i32>} : memref<10x18x4xbf16, #tpu.memory_space<vmem>>, vector<1x18x4xbf16>,
    %79 = vector.extract_strided_slice %10 {offsets = [90, 0], sizes = [18, 16], strides = [1, 1]} : vector<144x16xf32> to vector<18x16xf32>
    %c5 = arith.constant 5 : index
    %c0_42 = arith.constant 0 : index
    %c0_43 = arith.constant 0 : index
    %80 = vector.load %arg13[%c5, %c0_42, %c0_43] : memref<10x18x16xf32, #tpu.memory_space<vmem>>, vector<1x18x16xf32>
    %81 = vector.shape_cast %80 : vector<1x18x16xf32> to vector<18x16xf32>
    %82 = vector.shape_cast %79 : vector<18x16xf32> to vector<1x18x16xf32>
    tpu.vector_store %arg13[%c5, %c0_42, %c0_43], %82 {strides = array<i32>} : memref<10x18x16xf32, #tpu.memory_space<vmem>>, vector<1x18x16xf32>,
    %83 = vector.extract_strided_slice %38 {offsets = [90, 0], sizes = [18, 4], strides = [1, 1]} : vector<144x4xbf16> to vector<18x4xbf16>
    %c5_44 = arith.constant 5 : index
    %c0_45 = arith.constant 0 : index
    %c0_46 = arith.constant 0 : index
    %84 = vector.load %arg14[%c5_44, %c0_45, %c0_46] : memref<10x18x4xbf16, #tpu.memory_space<vmem>>, vector<1x18x4xbf16>
    %85 = vector.shape_cast %84 : vector<1x18x4xbf16> to vector<18x4xbf16>
    %86 = vector.shape_cast %83 : vector<18x4xbf16> to vector<1x18x4xbf16>
    tpu.vector_store %arg14[%c5_44, %c0_45, %c0_46], %86 {strides = array<i32>} : memref<10x18x4xbf16, #tpu.memory_space<vmem>>, vector<1x18x4xbf16>,
    %87 = vector.extract_strided_slice %10 {offsets = [108, 0], sizes = [18, 16], strides = [1, 1]} : vector<144x16xf32> to vector<18x16xf32>
    %c6 = arith.constant 6 : index
    %c0_47 = arith.constant 0 : index
    %c0_48 = arith.constant 0 : index
    %88 = vector.load %arg13[%c6, %c0_47, %c0_48] : memref<10x18x16xf32, #tpu.memory_space<vmem>>, vector<1x18x16xf32>
    %89 = vector.shape_cast %88 : vector<1x18x16xf32> to vector<18x16xf32>
    %90 = vector.shape_cast %87 : vector<18x16xf32> to vector<1x18x16xf32>
    tpu.vector_store %arg13[%c6, %c0_47, %c0_48], %90 {strides = array<i32>} : memref<10x18x16xf32, #tpu.memory_space<vmem>>, vector<1x18x16xf32>,
    %91 = vector.extract_strided_slice %38 {offsets = [108, 0], sizes = [18, 4], strides = [1, 1]} : vector<144x4xbf16> to vector<18x4xbf16>
    %c6_49 = arith.constant 6 : index
    %c0_50 = arith.constant 0 : index
    %c0_51 = arith.constant 0 : index
    %92 = vector.load %arg14[%c6_49, %c0_50, %c0_51] : memref<10x18x4xbf16, #tpu.memory_space<vmem>>, vector<1x18x4xbf16>
    %93 = vector.shape_cast %92 : vector<1x18x4xbf16> to vector<18x4xbf16>
    %94 = vector.shape_cast %91 : vector<18x4xbf16> to vector<1x18x4xbf16>
    tpu.vector_store %arg14[%c6_49, %c0_50, %c0_51], %94 {strides = array<i32>} : memref<10x18x4xbf16, #tpu.memory_space<vmem>>, vector<1x18x4xbf16>,
    %95 = vector.extract_strided_slice %10 {offsets = [126, 0], sizes = [18, 16], strides = [1, 1]} : vector<144x16xf32> to vector<18x16xf32>
    %c7 = arith.constant 7 : index
    %c0_52 = arith.constant 0 : index
    %c0_53 = arith.constant 0 : index
    %96 = vector.load %arg13[%c7, %c0_52, %c0_53] : memref<10x18x16xf32, #tpu.memory_space<vmem>>, vector<1x18x16xf32>
    %97 = vector.shape_cast %96 : vector<1x18x16xf32> to vector<18x16xf32>
    %98 = vector.shape_cast %95 : vector<18x16xf32> to vector<1x18x16xf32>
    tpu.vector_store %arg13[%c7, %c0_52, %c0_53], %98 {strides = array<i32>} : memref<10x18x16xf32, #tpu.memory_space<vmem>>, vector<1x18x16xf32>,
    %99 = vector.extract_strided_slice %38 {offsets = [126, 0], sizes = [18, 4], strides = [1, 1]} : vector<144x4xbf16> to vector<18x4xbf16>
    %c7_54 = arith.constant 7 : index
    %c0_55 = arith.constant 0 : index
    %c0_56 = arith.constant 0 : index
    %100 = vector.load %arg14[%c7_54, %c0_55, %c0_56] : memref<10x18x4xbf16, #tpu.memory_space<vmem>>, vector<1x18x4xbf16>
    %101 = vector.shape_cast %100 : vector<1x18x4xbf16> to vector<18x4xbf16>
    %102 = vector.shape_cast %99 : vector<18x4xbf16> to vector<1x18x4xbf16>
    tpu.vector_store %arg14[%c7_54, %c0_55, %c0_56], %102 {strides = array<i32>} : memref<10x18x4xbf16, #tpu.memory_space<vmem>>, vector<1x18x4xbf16>,
    %c0_57 = arith.constant 0 : index
    %c0_58 = arith.constant 0 : index
    %c0_59 = arith.constant 0 : index
    %c0_60 = arith.constant 0 : index
    %103 = vector.load %arg3[%c0_57, %c0_58, %c0_59, %c0_60] : memref<1x2x18x8xbf16, #tpu.memory_space<vmem>>, vector<1x2x18x8xbf16>
    %104 = vector.shape_cast %103 : vector<1x2x18x8xbf16> to vector<2x18x8xbf16>
    %c1_i32_61 = arith.constant 1 : i32
    %105 = arith.addi %arg1, %c1_i32_61 : i32
    %c8_i32_62 = arith.constant 8 : i32
    %106 = arith.muli %105, %c8_i32_62 : i32
    %107 = vector.shape_cast %104 : vector<2x18x8xbf16> to vector<36x8xbf16>
    %c0_63 = arith.constant 0 : index
    %c0_64 = arith.constant 0 : index
    %108 = vector.load %arg4[%c0_63, %c0_64] : memref<8x16xbf16, #tpu.memory_space<vmem>>, vector<8x16xbf16>
    %cst_65 = arith.constant dense<0.000000e+00> : vector<36x16xf32>
    %109 = tpu.matmul %107, %108, %cst_65 {dimension_numbers = #tpu.dot_dimension_numbers<[1], [0], [0], [1], [0, 0, 1, 1], [], []>} : vector<36x8xbf16>, vector<8x16xbf16>, vector<36x16xf32> -> vector<36x16xf32>
    %c0_66 = arith.constant 0 : index
    %c0_67 = arith.constant 0 : index
    %110 = vector.load %arg5[%c0_66, %c0_67] : memref<1x16xf32, #tpu.memory_space<vmem>>, vector<1x16xf32>
    %111 = vector.broadcast %110 : vector<1x16xf32> to vector<36x16xf32>
    %112 = arith.addf %109, %111 : vector<36x16xf32>
    %cst_68 = arith.constant 0.000000e+00 : f32
    %113 = vector.broadcast %cst_68 : f32 to vector<36x16xf32>
    %114 = arith.maximumf %112, %113 : vector<36x16xf32>
    %115 = arith.truncf %114 : vector<36x16xf32> to vector<36x16xbf16>
    %c0_69 = arith.constant 0 : index
    %c0_70 = arith.constant 0 : index
    %116 = vector.load %arg6[%c0_69, %c0_70] : memref<16x4xbf16, #tpu.memory_space<vmem>>, vector<16x4xbf16>
    %cst_71 = arith.constant dense<0.000000e+00> : vector<36x4xf32>
    %117 = tpu.matmul %115, %116, %cst_71 {dimension_numbers = #tpu.dot_dimension_numbers<[1], [0], [0], [1], [0, 0, 1, 1], [], []>} : vector<36x16xbf16>, vector<16x4xbf16>, vector<36x4xf32> -> vector<36x4xf32>
    %c0_72 = arith.constant 0 : index
    %c0_73 = arith.constant 0 : index
    %118 = vector.load %arg7[%c0_72, %c0_73] : memref<1x4xf32, #tpu.memory_space<vmem>>, vector<1x4xf32>
    %119 = vector.broadcast %118 : vector<1x4xf32> to vector<36x4xf32>
    %120 = arith.addf %117, %119 : vector<36x4xf32>
    %cst_74 = arith.constant 0.000000e+00 : f32
    %121 = vector.broadcast %cst_74 : f32 to vector<36x4xf32>
    %122 = arith.maximumf %120, %121 : vector<36x4xf32>
    %123 = tpu.iota {dimensions = array<i32: 0>} : vector<2x18x4xi32>
    %124 = vector.broadcast %106 : i32 to vector<2x18x4xi32>
    %125 = arith.addi %123, %124 : vector<2x18x4xi32>
    %126 = tpu.iota {dimensions = array<i32: 1>} : vector<2x18x4xi32>
    %c1_i32_75 = arith.constant 1 : i32
    %127 = vector.broadcast %c1_i32_75 : i32 to vector<2x18x4xi32>
    %128 = arith.cmpi sge, %125, %127 : vector<2x18x4xi32>
    %c16_i32_76 = arith.constant 16 : i32
    %129 = vector.broadcast %c16_i32_76 : i32 to vector<2x18x4xi32>
    %130 = arith.cmpi sle, %125, %129 : vector<2x18x4xi32>
    %131 = arith.andi %128, %130 : vector<2x18x4xi1>
    %c1_i32_77 = arith.constant 1 : i32
    %132 = vector.broadcast %c1_i32_77 : i32 to vector<2x18x4xi32>
    %133 = arith.cmpi sge, %126, %132 : vector<2x18x4xi32>
    %134 = arith.andi %131, %133 : vector<2x18x4xi1>
    %c16_i32_78 = arith.constant 16 : i32
    %135 = vector.broadcast %c16_i32_78 : i32 to vector<2x18x4xi32>
    %136 = arith.cmpi sle, %126, %135 : vector<2x18x4xi32>
    %137 = arith.andi %134, %136 : vector<2x18x4xi1>
    %138 = arith.extui %137 : vector<2x18x4xi1> to vector<2x18x4xi32>
    %139 = arith.sitofp %138 : vector<2x18x4xi32> to vector<2x18x4xf32>
    %140 = vector.shape_cast %139 : vector<2x18x4xf32> to vector<36x4xf32>
    %141 = arith.mulf %122, %140 : vector<36x4xf32>
    %142 = arith.truncf %141 : vector<36x4xf32> to vector<36x4xbf16>
    %143 = vector.extract_strided_slice %114 {offsets = [0, 0], sizes = [18, 16], strides = [1, 1]} : vector<36x16xf32> to vector<18x16xf32>
    %c8 = arith.constant 8 : index
    %c0_79 = arith.constant 0 : index
    %c0_80 = arith.constant 0 : index
    %144 = vector.load %arg13[%c8, %c0_79, %c0_80] : memref<10x18x16xf32, #tpu.memory_space<vmem>>, vector<1x18x16xf32>
    %145 = vector.shape_cast %144 : vector<1x18x16xf32> to vector<18x16xf32>
    %146 = vector.shape_cast %143 : vector<18x16xf32> to vector<1x18x16xf32>
    tpu.vector_store %arg13[%c8, %c0_79, %c0_80], %146 {strides = array<i32>} : memref<10x18x16xf32, #tpu.memory_space<vmem>>, vector<1x18x16xf32>,
    %147 = vector.extract_strided_slice %142 {offsets = [0, 0], sizes = [18, 4], strides = [1, 1]} : vector<36x4xbf16> to vector<18x4xbf16>
    %c8_81 = arith.constant 8 : index
    %c0_82 = arith.constant 0 : index
    %c0_83 = arith.constant 0 : index
    %148 = vector.load %arg14[%c8_81, %c0_82, %c0_83] : memref<10x18x4xbf16, #tpu.memory_space<vmem>>, vector<1x18x4xbf16>
    %149 = vector.shape_cast %148 : vector<1x18x4xbf16> to vector<18x4xbf16>
    %150 = vector.shape_cast %147 : vector<18x4xbf16> to vector<1x18x4xbf16>
    tpu.vector_store %arg14[%c8_81, %c0_82, %c0_83], %150 {strides = array<i32>} : memref<10x18x4xbf16, #tpu.memory_space<vmem>>, vector<1x18x4xbf16>,
    %151 = vector.extract_strided_slice %114 {offsets = [18, 0], sizes = [18, 16], strides = [1, 1]} : vector<36x16xf32> to vector<18x16xf32>
    %c9 = arith.constant 9 : index
    %c0_84 = arith.constant 0 : index
    %c0_85 = arith.constant 0 : index
    %152 = vector.load %arg13[%c9, %c0_84, %c0_85] : memref<10x18x16xf32, #tpu.memory_space<vmem>>, vector<1x18x16xf32>
    %153 = vector.shape_cast %152 : vector<1x18x16xf32> to vector<18x16xf32>
    %154 = vector.shape_cast %151 : vector<18x16xf32> to vector<1x18x16xf32>
    tpu.vector_store %arg13[%c9, %c0_84, %c0_85], %154 {strides = array<i32>} : memref<10x18x16xf32, #tpu.memory_space<vmem>>, vector<1x18x16xf32>,
    %155 = vector.extract_strided_slice %142 {offsets = [18, 0], sizes = [18, 4], strides = [1, 1]} : vector<36x4xbf16> to vector<18x4xbf16>
    %c9_86 = arith.constant 9 : index
    %c0_87 = arith.constant 0 : index
    %c0_88 = arith.constant 0 : index
    %156 = vector.load %arg14[%c9_86, %c0_87, %c0_88] : memref<10x18x4xbf16, #tpu.memory_space<vmem>>, vector<1x18x4xbf16>
    %157 = vector.shape_cast %156 : vector<1x18x4xbf16> to vector<18x4xbf16>
    %158 = vector.shape_cast %155 : vector<18x4xbf16> to vector<1x18x4xbf16>
    tpu.vector_store %arg14[%c9_86, %c0_87, %c0_88], %158 {strides = array<i32>} : memref<10x18x4xbf16, #tpu.memory_space<vmem>>, vector<1x18x4xbf16>,
    %c0_89 = arith.constant 0 : index
    %c0_90 = arith.constant 0 : index
    %c0_91 = arith.constant 0 : index
    %159 = vector.load %arg14[%c0_89, %c0_90, %c0_91] : memref<10x18x4xbf16, #tpu.memory_space<vmem>>, vector<10x18x4xbf16>
    %160 = vector.extract_strided_slice %159 {offsets = [0, 0, 0], sizes = [10, 16, 4], strides = [1, 1, 1]} : vector<10x18x4xbf16> to vector<10x16x4xbf16>
    %161 = vector.extract_strided_slice %159 {offsets = [0, 1, 0], sizes = [10, 16, 4], strides = [1, 1, 1]} : vector<10x18x4xbf16> to vector<10x16x4xbf16>
    %162 = vector.extract_strided_slice %159 {offsets = [0, 2, 0], sizes = [10, 16, 4], strides = [1, 1, 1]} : vector<10x18x4xbf16> to vector<10x16x4xbf16>
    %163 = tpu.concatenate %160, %161, %162 in 2 : vector<10x16x4xbf16>, vector<10x16x4xbf16>, vector<10x16x4xbf16> -> vector<10x16x12xbf16>
    %164 = vector.extract_strided_slice %163 {offsets = [0, 0, 0], sizes = [8, 16, 12], strides = [1, 1, 1]} : vector<10x16x12xbf16> to vector<8x16x12xbf16>
    %165 = vector.extract_strided_slice %163 {offsets = [1, 0, 0], sizes = [8, 16, 12], strides = [1, 1, 1]} : vector<10x16x12xbf16> to vector<8x16x12xbf16>
    %166 = vector.extract_strided_slice %163 {offsets = [2, 0, 0], sizes = [8, 16, 12], strides = [1, 1, 1]} : vector<10x16x12xbf16> to vector<8x16x12xbf16>
    %167 = tpu.concatenate %164, %165, %166 in 2 : vector<8x16x12xbf16>, vector<8x16x12xbf16>, vector<8x16x12xbf16> -> vector<8x16x36xbf16>
    %168 = vector.shape_cast %167 : vector<8x16x36xbf16> to vector<128x36xbf16>
    %c0_92 = arith.constant 0 : index
    %c0_93 = arith.constant 0 : index
    %169 = vector.load %arg8[%c0_92, %c0_93] : memref<36x4xbf16, #tpu.memory_space<vmem>>, vector<36x4xbf16>
    %cst_94 = arith.constant dense<0.000000e+00> : vector<128x4xf32>
    %170 = tpu.matmul %168, %169, %cst_94 {dimension_numbers = #tpu.dot_dimension_numbers<[1], [0], [0], [1], [0, 0, 1, 1], [], []>} : vector<128x36xbf16>, vector<36x4xbf16>, vector<128x4xf32> -> vector<128x4xf32>
    %c0_95 = arith.constant 0 : index
    %c0_96 = arith.constant 0 : index
    %171 = vector.load %arg9[%c0_95, %c0_96] : memref<1x4xf32, #tpu.memory_space<vmem>>, vector<1x4xf32>
    %172 = vector.broadcast %171 : vector<1x4xf32> to vector<128x4xf32>
    %173 = arith.addf %170, %172 : vector<128x4xf32>
    %cst_97 = arith.constant 0.000000e+00 : f32
    %174 = vector.broadcast %cst_97 : f32 to vector<128x4xf32>
    %175 = arith.maximumf %173, %174 : vector<128x4xf32>
    %176 = arith.truncf %175 : vector<128x4xf32> to vector<128x4xbf16>
    %c0_98 = arith.constant 0 : index
    %c0_99 = arith.constant 0 : index
    %177 = vector.load %arg10[%c0_98, %c0_99] : memref<4x16xbf16, #tpu.memory_space<vmem>>, vector<4x16xbf16>
    %cst_100 = arith.constant dense<0.000000e+00> : vector<128x16xf32>
    %178 = tpu.matmul %176, %177, %cst_100 {dimension_numbers = #tpu.dot_dimension_numbers<[1], [0], [0], [1], [0, 0, 1, 1], [], []>} : vector<128x4xbf16>, vector<4x16xbf16>, vector<128x16xf32> -> vector<128x16xf32>
    %c1_101 = arith.constant 1 : index
    %c1_102 = arith.constant 1 : index
    %c0_103 = arith.constant 0 : index
    %179 = vector.load %arg13[%c1_101, %c1_102, %c0_103] : memref<10x18x16xf32, #tpu.memory_space<vmem>>, vector<8x16x16xf32>
    %180 = vector.shape_cast %179 : vector<8x16x16xf32> to vector<128x16xf32>
    %c0_104 = arith.constant 0 : index
    %c0_105 = arith.constant 0 : index
    %181 = vector.load %arg11[%c0_104, %c0_105] : memref<1x16xf32, #tpu.memory_space<vmem>>, vector<1x16xf32>
    %182 = vector.broadcast %181 : vector<1x16xf32> to vector<128x16xf32>
    %183 = arith.addf %178, %182 : vector<128x16xf32>
    %184 = arith.addf %183, %180 : vector<128x16xf32>
    %cst_106 = arith.constant 0.000000e+00 : f32
    %185 = vector.broadcast %cst_106 : f32 to vector<128x16xf32>
    %186 = arith.maximumf %184, %185 : vector<128x16xf32>
    %c0_107 = arith.constant 0 : index
    %c0_108 = arith.constant 0 : index
    %c0_109 = arith.constant 0 : index
    %187 = vector.load %arg12[%c0_107, %c0_108, %c0_109] : memref<1x128x16xf32, #tpu.memory_space<vmem>>, vector<1x128x16xf32>
    %188 = vector.shape_cast %187 : vector<1x128x16xf32> to vector<128x16xf32>
    %189 = vector.shape_cast %186 : vector<128x16xf32> to vector<1x128x16xf32>
    tpu.vector_store %arg12[%c0_107, %c0_108, %c0_109], %189 {strides = array<i32>} : memref<1x128x16xf32, #tpu.memory_space<vmem>>, vector<1x128x16xf32>,
    return
  }
  func.func @transform_0(%arg0: i32, %arg1: i32) -> (i32, i32, i32, i32) {
    %c0_i32 = arith.constant 0 : i32
    %c0_i32_0 = arith.constant 0 : i32
    %c0_i32_1 = arith.constant 0 : i32
    return %arg0, %arg1, %c0_i32, %c0_i32_0 : i32, i32, i32, i32
  }
  func.func @transform_1(%arg0: i32, %arg1: i32) -> (i32, i32, i32, i32) {
    %c1_i32 = arith.constant 1 : i32
    %0 = arith.addi %arg1, %c1_i32 : i32
    %c4_i32 = arith.constant 4 : i32
    %1 = arith.muli %0, %c4_i32 : i32
    %c0_i32 = arith.constant 0 : i32
    %c0_i32_0 = arith.constant 0 : i32
    %c0_i32_1 = arith.constant 0 : i32
    return %arg0, %1, %c0_i32, %c0_i32_0 : i32, i32, i32, i32
  }
  func.func @transform_2(%arg0: i32, %arg1: i32) -> (i32, i32) {
    %c0_i32 = arith.constant 0 : i32
    %c0_i32_0 = arith.constant 0 : i32
    %c0_i32_1 = arith.constant 0 : i32
    return %c0_i32, %c0_i32_0 : i32, i32
  }
  func.func @transform_3(%arg0: i32, %arg1: i32) -> (i32, i32) {
    %c0_i32 = arith.constant 0 : i32
    %c0_i32_0 = arith.constant 0 : i32
    %c0_i32_1 = arith.constant 0 : i32
    return %c0_i32, %c0_i32_0 : i32, i32
  }
  func.func @transform_4(%arg0: i32, %arg1: i32) -> (i32, i32) {
    %c0_i32 = arith.constant 0 : i32
    %c0_i32_0 = arith.constant 0 : i32
    %c0_i32_1 = arith.constant 0 : i32
    return %c0_i32, %c0_i32_0 : i32, i32
  }
  func.func @transform_5(%arg0: i32, %arg1: i32) -> (i32, i32) {
    %c0_i32 = arith.constant 0 : i32
    %c0_i32_0 = arith.constant 0 : i32
    %c0_i32_1 = arith.constant 0 : i32
    return %c0_i32, %c0_i32_0 : i32, i32
  }
  func.func @transform_6(%arg0: i32, %arg1: i32) -> (i32, i32) {
    %c0_i32 = arith.constant 0 : i32
    %c0_i32_0 = arith.constant 0 : i32
    %c0_i32_1 = arith.constant 0 : i32
    return %c0_i32, %c0_i32_0 : i32, i32
  }
  func.func @transform_7(%arg0: i32, %arg1: i32) -> (i32, i32) {
    %c0_i32 = arith.constant 0 : i32
    %c0_i32_0 = arith.constant 0 : i32
    %c0_i32_1 = arith.constant 0 : i32
    return %c0_i32, %c0_i32_0 : i32, i32
  }
  func.func @transform_8(%arg0: i32, %arg1: i32) -> (i32, i32) {
    %c0_i32 = arith.constant 0 : i32
    %c0_i32_0 = arith.constant 0 : i32
    %c0_i32_1 = arith.constant 0 : i32
    return %c0_i32, %c0_i32_0 : i32, i32
  }
  func.func @transform_9(%arg0: i32, %arg1: i32) -> (i32, i32) {
    %c0_i32 = arith.constant 0 : i32
    %c0_i32_0 = arith.constant 0 : i32
    %c0_i32_1 = arith.constant 0 : i32
    return %c0_i32, %c0_i32_0 : i32, i32
  }
  func.func @transform_10(%arg0: i32, %arg1: i32) -> (i32, i32, i32) {
    %c0_i32 = arith.constant 0 : i32
    %c0_i32_0 = arith.constant 0 : i32
    return %arg0, %arg1, %c0_i32 : i32, i32, i32
  }
}

</mosaic_0001>

<llo_original>
// kernel: res_skip_block_forward.1
$region0: #{res_skip_block_forward.1}
  #allocation0 [shape = 'u32[]', space=smem, size = 0x4, offset = 0x4, fixed_abs, tag = 'smem constant byte address 0x4 - core index']
  #allocation1 [shape = 'u32[144,128]{1,0:T(1,128)}', space=vmem, size = 0x12000, scoped, tag = 'internal scratch']
  #allocation2 [shape = 'f32[10,18,16]{2,1,0:T(8,128)}', space=vmem, size = 0x1e000, scoped, tag = 'scratch operand']
  #allocation3 [shape = 'bf16[10,18,4]{2,1,0:T(8,128)(2,1)}', space=vmem, size = 0xf000, scoped, tag = 'scratch operand']
  %s0 = inlined_call_operand.vmem [shape: bf16[2,18,18,8], index: 0, kind: input, shape index: {}, may-alias: {0,1}]
  %s1 = inlined_call_operand.vmem [shape: bf16[2,18,18,8], index: 1, kind: input, shape index: {}, may-alias: {0,1}]
  %s2 = inlined_call_operand.vmem [shape: bf16[8,16], index: 2, kind: input, shape index: {}]
  %s3 = inlined_call_operand.vmem [shape: f32[1,16], index: 3, kind: input, shape index: {}]
  %s4 = inlined_call_operand.vmem [shape: bf16[16,4], index: 4, kind: input, shape index: {}]
  %s5 = inlined_call_operand.vmem [shape: f32[1,4], index: 5, kind: input, shape index: {}]
  %s6 = inlined_call_operand.vmem [shape: bf16[36,4], index: 6, kind: input, shape index: {}]
  %s7 = inlined_call_operand.vmem [shape: f32[1,4], index: 7, kind: input, shape index: {}]
  %s8 = inlined_call_operand.vmem [shape: bf16[4,16], index: 8, kind: input, shape index: {}]
  %s9 = inlined_call_operand.vmem [shape: f32[1,16], index: 9, kind: input, shape index: {}]
  %s10 = inlined_call_operand.vmem [shape: f32[2,256,16], index: 10, kind: output, shape index: {}]
  %s11 = sld [smem:[#allocation0]]
  $region73: #{res_skip_block_forward.1} parent=0
    _
  %s13 = ssub.s32 1, %s11
  %s14 = scalar_select 0, %s13, %s11
  loop: start=0, step=1, limit=6
  $region2: #{res_skip_block_forward.1} parent=0 // loop_pre_header
    _
  $region3: #{res_skip_block_forward.1} parent=0 // loop_header
    %s16 = sphi 0, %s20
    %p17 = scmp.ge.s32.totalorder %s16, 6
    %s23 = sphi 0, %s35
    %s24 = sphi 0, %s31
    %s25 = sphi 0, %s23
    %s26 = sphi 0, %s24
    %s27 = sphi 0, %s25
    %s28 = sphi 0, %s26
    %s40 = sphi 0, %s42
    %s43 = sphi 0, %s40
    %s44 = sphi 0, %s43
    %s60 = sphi 0, %s44
    %s72 = sphi 0, %s74
    %s75 = sphi 0, %s72
    %s76 = sphi 0, %s75
    %s92 = sphi 0, %s76
    %s96 = sphi 0, %s96
    %s98 = sphi 0, %s96
    %s99 = sphi 0, %s98
    %s113 = sphi 0, %s99
    %s117 = sphi 0, %s117
    %s119 = sphi 0, %s117
    %s120 = sphi 0, %s119
    %s134 = sphi 0, %s120
    %s138 = sphi 0, %s138
    %s140 = sphi 0, %s138
    %s141 = sphi 0, %s140
    %s155 = sphi 0, %s141
    %s159 = sphi 0, %s159
    %s161 = sphi 0, %s159
    %s162 = sphi 0, %s161
    %s176 = sphi 0, %s162
    %s180 = sphi 0, %s180
    %s182 = sphi 0, %s180
    %s183 = sphi 0, %s182
    %s197 = sphi 0, %s183
    %s201 = sphi 0, %s201
    %s203 = sphi 0, %s201
    %s204 = sphi 0, %s203
    %s218 = sphi 0, %s204
    %s222 = sphi 0, %s222
    %s224 = sphi 0, %s222
    %s225 = sphi 0, %s224
    %s239 = sphi 0, %s225
    %s243 = sphi 0, %s243
    %s245 = sphi 0, %s243
    %s246 = sphi 0, %s245
    %s260 = sphi 0, %s246
    %s268 = sphi 0, %s270
    %s271 = sphi 0, %s268
    %s272 = sphi 0, %s271
    %s288 = sphi 0, %s272
  $region4: #{res_skip_block_forward.1} parent=0 // loop_header_branch
    %19 = sbr.rel (%p17) target = $region8
  $region5: #{res_skip_block_forward.1} parent=0 // loop_body
    %s21 = ssub.s32 %s16, 1
    %s22 = ssub.s32 %s16, 2
    %s29 = sadd.s32 1, %s24
    %p30 = scmp.ge.s32.totalorder %s29, 2
    %s31 = scalar_select %p30, 0, %s29
    %s32 = sadd.s32 1, %s23
    %s33 = scalar_select %p30, %s32, %s23
    %p34 = scmp.ge.s32.totalorder %s33, 2
    %s35 = scalar_select %p34, 0, %s33
    %s36 = ssub.s32 %s23, %s35
    %s37 = ssub.s32 %s24, %s31
    %s38 = sor.u32 %s36, %s37
    %p39 = scmp.eq.s32.totalorder %s38, 0
    %s41 = sadd.s32 %s40, 1
    %s42 = scalar_select %p39, %s40, %s41
    %p45 = pneg %p39
    %p46 = scmp.eq.s32.totalorder %s16, 3
    %p47 = por %p45, %p46
    %p48 = scmp.ne.s32.totalorder %s40, %s43
    %p49 = scmp.eq.s32.totalorder %s16, 0
    %p50 = por %p48, %p49
    %p51 = scmp.ne.s32.totalorder %s40, %s43
    %p52 = scmp.eq.s32.totalorder %s21, 3
    %p53 = por %p51, %p52
    %p54 = scmp.ne.s32.totalorder %s43, %s44
    %p55 = scmp.eq.s32.totalorder %s21, 0
    %p56 = por %p54, %p55
    %p57 = scmp.ne.s32.totalorder %s43, %s44
    %p58 = scmp.eq.s32.totalorder %s22, 3
    %p59 = por %p57, %p58
    %p61 = scmp.ne.s32.totalorder %s44, %s60
    %p62 = scmp.eq.s32.totalorder %s22, 0
    %p63 = por %p61, %p62
    %s64 = sadd.s32 %s24, 1
    %s65 = smul.u32 %s64, 4
    %s66 = sadd.s32 %s31, 1
    %s67 = smul.u32 %s66, 4
    %s68 = ssub.s32 %s23, %s35
    %s69 = ssub.s32 %s65, %s67
    %s70 = sor.u32 %s68, %s69
    %p71 = scmp.eq.s32.totalorder %s70, 0
    %s73 = sadd.s32 %s72, 1
    %s74 = scalar_select %p71, %s72, %s73
    %p77 = pneg %p71
    %p78 = scmp.eq.s32.totalorder %s16, 3
    %p79 = por %p77, %p78
    %p80 = scmp.ne.s32.totalorder %s72, %s75
    %p81 = scmp.eq.s32.totalorder %s16, 0
    %p82 = por %p80, %p81
    %p83 = scmp.ne.s32.totalorder %s72, %s75
    %p84 = scmp.eq.s32.totalorder %s21, 3
    %p85 = por %p83, %p84
    %p86 = scmp.ne.s32.totalorder %s75, %s76
    %p87 = scmp.eq.s32.totalorder %s21, 0
    %p88 = por %p86, %p87
    %p89 = scmp.ne.s32.totalorder %s75, %s76
    %p90 = scmp.eq.s32.totalorder %s22, 3
    %p91 = por %p89, %p90
    %p93 = scmp.ne.s32.totalorder %s76, %s92
    %p94 = scmp.eq.s32.totalorder %s22, 0
    %p95 = por %p93, %p94
    %s97 = sadd.s32 %s96, 1
    %p100 = scmp.eq.s32.totalorder %s16, 3
    %p101 = scmp.ne.s32.totalorder %s96, %s98
    %p102 = scmp.eq.s32.totalorder %s16, 0
    %p103 = por %p101, %p102
    %p104 = scmp.ne.s32.totalorder %s96, %s98
    %p105 = scmp.eq.s32.totalorder %s21, 3
    %p106 = por %p104, %p105
    %p107 = scmp.ne.s32.totalorder %s98, %s99
    %p108 = scmp.eq.s32.totalorder %s21, 0
    %p109 = por %p107, %p108
    %p110 = scmp.ne.s32.totalorder %s98, %s99
    %p111 = scmp.eq.s32.totalorder %s22, 3
    %p112 = por %p110, %p111
    %p114 = scmp.ne.s32.totalorder %s99, %s113
    %p115 = scmp.eq.s32.totalorder %s22, 0
    %p116 = por %p114, %p115
    %s118 = sadd.s32 %s117, 1
    %p121 = scmp.eq.s32.totalorder %s16, 3
    %p122 = scmp.ne.s32.totalorder %s117, %s119
    %p123 = scmp.eq.s32.totalorder %s16, 0
    %p124 = por %p122, %p123
    %p125 = scmp.ne.s32.totalorder %s117, %s119
    %p126 = scmp.eq.s32.totalorder %s21, 3
    %p127 = por %p125, %p126
    %p128 = scmp.ne.s32.totalorder %s119, %s120
    %p129 = scmp.eq.s32.totalorder %s21, 0
    %p130 = por %p128, %p129
    %p131 = scmp.ne.s32.totalorder %s119, %s120
    %p132 = scmp.eq.s32.totalorder %s22, 3
    %p133 = por %p131, %p132
    %p135 = scmp.ne.s32.totalorder %s120, %s134
    %p136 = scmp.eq.s32.totalorder %s22, 0
    %p137 = por %p135, %p136
    %s139 = sadd.s32 %s138, 1
    %p142 = scmp.eq.s32.totalorder %s16, 3
    %p143 = scmp.ne.s32.totalorder %s138, %s140
    %p144 = scmp.eq.s32.totalorder %s16, 0
    %p145 = por %p143, %p144
    %p146 = scmp.ne.s32.totalorder %s138, %s140
    %p147 = scmp.eq.s32.totalorder %s21, 3
    %p148 = por %p146, %p147
    %p149 = scmp.ne.s32.totalorder %s140, %s141
    %p150 = scmp.eq.s32.totalorder %s21, 0
    %p151 = por %p149, %p150
    %p152 = scmp.ne.s32.totalorder %s140, %s141
    %p153 = scmp.eq.s32.totalorder %s22, 3
    %p154 = por %p152, %p153
    %p156 = scmp.ne.s32.totalorder %s141, %s155
    %p157 = scmp.eq.s32.totalorder %s22, 0
    %p158 = por %p156, %p157
    %s160 = sadd.s32 %s159, 1
    %p163 = scmp.eq.s32.totalorder %s16, 3
    %p164 = scmp.ne.s32.totalorder %s159, %s161
    %p165 = scmp.eq.s32.totalorder %s16, 0
    %p166 = por %p164, %p165
    %p167 = scmp.ne.s32.totalorder %s159, %s161
    %p168 = scmp.eq.s32.totalorder %s21, 3
    %p169 = por %p167, %p168
    %p170 = scmp.ne.s32.totalorder %s161, %s162
    %p171 = scmp.eq.s32.totalorder %s21, 0
    %p172 = por %p170, %p171
    %p173 = scmp.ne.s32.totalorder %s161, %s162
    %p174 = scmp.eq.s32.totalorder %s22, 3
    %p175 = por %p173, %p174
    %p177 = scmp.ne.s32.totalorder %s162, %s176
    %p178 = scmp.eq.s32.totalorder %s22, 0
    %p179 = por %p177, %p178
    %s181 = sadd.s32 %s180, 1
    %p184 = scmp.eq.s32.totalorder %s16, 3
    %p185 = scmp.ne.s32.totalorder %s180, %s182
    %p186 = scmp.eq.s32.totalorder %s16, 0
    %p187 = por %p185, %p186
    %p188 = scmp.ne.s32.totalorder %s180, %s182
    %p189 = scmp.eq.s32.totalorder %s21, 3
    %p190 = por %p188, %p189
    %p191 = scmp.ne.s32.totalorder %s182, %s183
    %p192 = scmp.eq.s32.totalorder %s21, 0
    %p193 = por %p191, %p192
    %p194 = scmp.ne.s32.totalorder %s182, %s183
    %p195 = scmp.eq.s32.totalorder %s22, 3
    %p196 = por %p194, %p195
    %p198 = scmp.ne.s32.totalorder %s183, %s197
    %p199 = scmp.eq.s32.totalorder %s22, 0
    %p200 = por %p198, %p199
    %s202 = sadd.s32 %s201, 1
    %p205 = scmp.eq.s32.totalorder %s16, 3
    %p206 = scmp.ne.s32.totalorder %s201, %s203
    %p207 = scmp.eq.s32.totalorder %s16, 0
    %p208 = por %p206, %p207
    %p209 = scmp.ne.s32.totalorder %s201, %s203
    %p210 = scmp.eq.s32.totalorder %s21, 3
    %p211 = por %p209, %p210
    %p212 = scmp.ne.s32.totalorder %s203, %s204
    %p213 = scmp.eq.s32.totalorder %s21, 0
    %p214 = por %p212, %p213
    %p215 = scmp.ne.s32.totalorder %s203, %s204
    %p216 = scmp.eq.s32.totalorder %s22, 3
    %p217 = por %p215, %p216
    %p219 = scmp.ne.s32.totalorder %s204, %s218
    %p220 = scmp.eq.s32.totalorder %s22, 0
    %p221 = por %p219, %p220
    %s223 = sadd.s32 %s222, 1
    %p226 = scmp.eq.s32.totalorder %s16, 3
    %p227 = scmp.ne.s32.totalorder %s222, %s224
    %p228 = scmp.eq.s32.totalorder %s16, 0
    %p229 = por %p227, %p228
    %p230 = scmp.ne.s32.totalorder %s222, %s224
    %p231 = scmp.eq.s32.totalorder %s21, 3
    %p232 = por %p230, %p231
    %p233 = scmp.ne.s32.totalorder %s224, %s225
    %p234 = scmp.eq.s32.totalorder %s21, 0
    %p235 = por %p233, %p234
    %p236 = scmp.ne.s32.totalorder %s224, %s225
    %p237 = scmp.eq.s32.totalorder %s22, 3
    %p238 = por %p236, %p237
    %p240 = scmp.ne.s32.totalorder %s225, %s239
    %p241 = scmp.eq.s32.totalorder %s22, 0
    %p242 = por %p240, %p241
    %s244 = sadd.s32 %s243, 1
    %p247 = scmp.eq.s32.totalorder %s16, 3
    %p248 = scmp.ne.s32.totalorder %s243, %s245
    %p249 = scmp.eq.s32.totalorder %s16, 0
    %p250 = por %p248, %p249
    %p251 = scmp.ne.s32.totalorder %s243, %s245
    %p252 = scmp.eq.s32.totalorder %s21, 3
    %p253 = por %p251, %p252
    %p254 = scmp.ne.s32.totalorder %s245, %s246
    %p255 = scmp.eq.s32.totalorder %s21, 0
    %p256 = por %p254, %p255
    %p257 = scmp.ne.s32.totalorder %s245, %s246
    %p258 = scmp.eq.s32.totalorder %s22, 3
    %p259 = por %p257, %p258
    %p261 = scmp.ne.s32.totalorder %s246, %s260
    %p262 = scmp.eq.s32.totalorder %s22, 0
    %p263 = por %p261, %p262
    %s264 = ssub.s32 %s23, %s35
    %s265 = ssub.s32 %s24, %s31
    %s266 = sor.u32 %s264, %s265
    %p267 = scmp.eq.s32.totalorder %s266, 0
    %s269 = sadd.s32 %s268, 1
    %s270 = scalar_select %p267, %s268, %s269
    %p273 = pneg %p267
    %p274 = scmp.eq.s32.totalorder %s16, 3
    %p275 = por %p273, %p274
    %p276 = scmp.ne.s32.totalorder %s268, %s271
    %p277 = scmp.eq.s32.totalorder %s16, 0
    %p278 = por %p276, %p277
    %p279 = scmp.ne.s32.totalorder %s268, %s271
    %p280 = scmp.eq.s32.totalorder %s21, 3
    %p281 = por %p279, %p280
    %p282 = scmp.ne.s32.totalorder %s271, %s272
    %p283 = scmp.eq.s32.totalorder %s21, 0
    %p284 = por %p282, %p283
    %p285 = scmp.ne.s32.totalorder %s271, %s272
    %p286 = scmp.eq.s32.totalorder %s22, 3
    %p287 = por %p285, %p286
    %p289 = scmp.ne.s32.totalorder %s272, %s288
    %p290 = scmp.eq.s32.totalorder %s22, 0
    %p291 = por %p289, %p290
    %p292 = scmp.le.s32.totalorder 1, %s16
    %p293 = scmp.lt.s32.totalorder %s16, 5
    %p294 = pnand %p292, %p293
    %p295 = pneg %p294
    // Predicated region
    $region9: #{res_skip_block_forward.1} parent=5 // pred_check
      _
    $region10: #{res_skip_block_forward.1} parent=5 // pred_check_branch
      %297 = sbr.rel (%p294) target = $region12
    $region11: #{res_skip_block_forward.1} parent=5 // pred_region
      %s298 = ssub.s32 %s16, 1
      // Predicated region
      $region13: #{res_skip_block_forward.1} parent=11 // pred_check
        %p299 = pneg %p109
      $region14: #{res_skip_block_forward.1} parent=11 // pred_check_branch
        %301 = sbr.rel (%p299) target = $region16
      $region15: #{res_skip_block_forward.1} parent=11 // pred_region
        _
      $region16: #{res_skip_block_forward.1} parent=11 // pred_fallthru
        _
      // Predicated region
      $region17: #{res_skip_block_forward.1} parent=11 // pred_check
        %p302 = pneg %p130
      $region18: #{res_skip_block_forward.1} parent=11 // pred_check_branch
        %304 = sbr.rel (%p302) target = $region20
      $region19: #{res_skip_block_forward.1} parent=11 // pred_region
        _
      $region20: #{res_skip_block_forward.1} parent=11 // pred_fallthru
        _
      // Predicated region
      $region21: #{res_skip_block_forward.1} parent=11 // pred_check
        %p305 = pneg %p151
      $region22: #{res_skip_block_forward.1} parent=11 // pred_check_branch
        %307 = sbr.rel (%p305) target = $region24
      $region23: #{res_skip_block_forward.1} parent=11 // pred_region
        _
      $region24: #{res_skip_block_forward.1} parent=11 // pred_fallthru
        _
      // Predicated region
      $region25: #{res_skip_block_forward.1} parent=11 // pred_check
        %p308 = pneg %p172
      $region26: #{res_skip_block_forward.1} parent=11 // pred_check_branch
        %310 = sbr.rel (%p308) target = $region28
      $region27: #{res_skip_block_forward.1} parent=11 // pred_region
        _
      $region28: #{res_skip_block_forward.1} parent=11 // pred_fallthru
        _
      // Predicated region
      $region29: #{res_skip_block_forward.1} parent=11 // pred_check
        %p311 = pneg %p193
      $region30: #{res_skip_block_forward.1} parent=11 // pred_check_branch
        %313 = sbr.rel (%p311) target = $region32
      $region31: #{res_skip_block_forward.1} parent=11 // pred_region
        _
      $region32: #{res_skip_block_forward.1} parent=11 // pred_fallthru
        _
      // Predicated region
      $region33: #{res_skip_block_forward.1} parent=11 // pred_check
        %p314 = pneg %p214
      $region34: #{res_skip_block_forward.1} parent=11 // pred_check_branch
        %316 = sbr.rel (%p314) target = $region36
      $region35: #{res_skip_block_forward.1} parent=11 // pred_region
        _
      $region36: #{res_skip_block_forward.1} parent=11 // pred_fallthru
        _
      // Predicated region
      $region37: #{res_skip_block_forward.1} parent=11 // pred_check
        %p317 = pneg %p235
      $region38: #{res_skip_block_forward.1} parent=11 // pred_check_branch
        %319 = sbr.rel (%p317) target = $region40
      $region39: #{res_skip_block_forward.1} parent=11 // pred_region
        _
      $region40: #{res_skip_block_forward.1} parent=11 // pred_fallthru
        _
      // Predicated region
      $region41: #{res_skip_block_forward.1} parent=11 // pred_check
        %p320 = pneg %p256
      $region42: #{res_skip_block_forward.1} parent=11 // pred_check_branch
        %322 = sbr.rel (%p320) target = $region44
      $region43: #{res_skip_block_forward.1} parent=11 // pred_region
        _
      $region44: #{res_skip_block_forward.1} parent=11 // pred_fallthru
        _
    $region12: #{res_skip_block_forward.1} parent=5 // pred_fallthru
      _
    %p323 = scmp.lt.s32.totalorder %s16, 4
    // Predicated region
    $region45: #{res_skip_block_forward.1} parent=5 // pred_check
      %p324 = pneg %p323
    $region46: #{res_skip_block_forward.1} parent=5 // pred_check_branch
      %326 = sbr.rel (%p324) target = $region48
    $region47: #{res_skip_block_forward.1} parent=5 // pred_region
      // Predicated region
      $region49: #{res_skip_block_forward.1} parent=47 // pred_check
        %p327 = pneg %p50
      $region50: #{res_skip_block_forward.1} parent=47 // pred_check_branch
        %329 = sbr.rel (%p327) target = $region52
      $region51: #{res_skip_block_forward.1} parent=47 // pred_region
        %s330 = smul.u32 8, %s24
        %s331 = ssub.s32 18, %s330
        %p332 = scmp.lt.s32.totalorder %s331, 8
        %s333 = scalar_select %p332, %s331, 8
        %s334 = smul.u32 64, %s333
        %s335 = smul.u32 %s334, 3
        %p336 = scmp.lt.s32.totalorder %s23, 1
        %s337 = scalar_select %p336, %s23, 1
        %p338 = scmp.lt.s32.totalorder %s330, 17
        %s339 = scalar_select %p338, %s330, 17
        %s340 = smul.addr %s339, 3
        %s341 = smul.addr %s337, 54
        %s342 = sadd.s32 %s340, %s341
        %s343 = smul.addr %s342, 4
        %s344 = scalar_lea.vmem %s0, %s343
        %s345 = smul.u32 8, %s24
        %s346 = ssub.s32 18, %s345
        %p347 = scmp.lt.s32.totalorder %s346, 8
        %s348 = scalar_select %p347, %s346, 8
        %s349 = smul.u32 64, %s348
        %s350 = smul.u32 %s349, 3
      $region52: #{res_skip_block_forward.1} parent=47 // pred_fallthru
        _
      // Predicated region
      $region53: #{res_skip_block_forward.1} parent=47 // pred_check
        %p351 = pneg %p82
      $region54: #{res_skip_block_forward.1} parent=47 // pred_check_branch
        %353 = sbr.rel (%p351) target = $region56
      $region55: #{res_skip_block_forward.1} parent=47 // pred_region
        %s354 = sadd.s32 %s24, 1
        %s355 = smul.u32 %s354, 4
        %s356 = smul.u32 2, %s355
        %p357 = scmp.lt.s32.totalorder %s23, 1
        %s358 = scalar_select %p357, %s23, 1
        %p359 = scmp.lt.s32.totalorder %s356, 17
        %s360 = scalar_select %p359, %s356, 17
        %s361 = smul.addr %s360, 3
        %s362 = smul.addr %s358, 54
        %s363 = sadd.s32 %s361, %s362
        %s364 = smul.addr %s363, 4
        %s365 = scalar_lea.vmem %s1, %s364
        %s366 = sadd.s32 %s24, 1
        %s367 = smul.u32 %s366, 4
        %s368 = smul.u32 2, %s367
      $region56: #{res_skip_block_forward.1} parent=47 // pred_fallthru
        _
    $region48: #{res_skip_block_forward.1} parent=5 // pred_fallthru
      _
    %p369 = scmp.le.s32.totalorder 1, %s16
    %p370 = scmp.lt.s32.totalorder %s16, 5
    %p371 = pnand %p369, %p370
    %p372 = pneg %p371
    // Predicated region
    $region57: #{res_skip_block_forward.1} parent=5 // pred_check
      _
    $region58: #{res_skip_block_forward.1} parent=5 // pred_check_branch
      %374 = sbr.rel (%p371) target = $region60
    $region59: #{res_skip_block_forward.1} parent=5 // pred_region
      %s375 = ssub.s32 %s16, 1
      %s376 = smul.u32 8, %s26
      %s377 = ssub.s32 18, %s376
      %p378 = scmp.lt.s32.totalorder %s377, 8
      %s379 = scalar_select %p378, %s377, 8
      %s380 = smul.u32 64, %s379
      %s381 = smul.u32 %s380, 3
      %p382 = scmp.lt.s32.totalorder %s25, 1
      %s383 = scalar_select %p382, %s25, 1
      %p384 = scmp.lt.s32.totalorder %s376, 17
      %s385 = scalar_select %p384, %s376, 17
      %s386 = smul.addr %s385, 3
      %s387 = smul.addr %s383, 54
      %s388 = sadd.s32 %s386, %s387
      %s389 = smul.addr %s388, 4
      %s390 = scalar_lea.vmem %s0, %s389
      %p391 = pneg %p56
      %p392 = pneg %p53
      %s393 = sadd.s32 %s26, 1
      %s394 = smul.u32 %s393, 4
      %s395 = smul.u32 2, %s394
      %p396 = scmp.lt.s32.totalorder %s25, 1
      %s397 = scalar_select %p396, %s25, 1
      %p398 = scmp.lt.s32.totalorder %s395, 17
      %s399 = scalar_select %p398, %s395, 17
      %s400 = smul.addr %s399, 3
      %s401 = smul.addr %s397, 54
      %s402 = sadd.s32 %s400, %s401
      %s403 = smul.addr %s402, 4
      %s404 = scalar_lea.vmem %s1, %s403
      %p405 = pneg %p88
      %p406 = pneg %p85
      %p407 = pneg %p109
      %p408 = pneg %p106
      %p409 = pneg %p130
      %p410 = pneg %p127
      %p411 = pneg %p151
      %p412 = pneg %p148
      %p413 = pneg %p172
      %p414 = pneg %p169
      %p415 = pneg %p193
      %p416 = pneg %p190
      %p417 = pneg %p214
      %p418 = pneg %p211
      %p419 = pneg %p235
      %p420 = pneg %p232
      %p421 = pneg %p256
      %p422 = pneg %p253
      %p423 = pneg %p284
      %p424 = pneg %p281
      %s425 = smul.u32 16, %s26
      %p426 = scmp.lt.s32.totalorder %s25, 1
      %s427 = scalar_select %p426, %s25, 1
      %p428 = scmp.lt.s32.totalorder %s425, 31
      %s429 = scalar_select %p428, %s425, 31
      %s430 = smul.addr %s427, 32
      %s431 = sadd.s32 %s429, %s430
      %s432 = smul.addr %s431, 8
      %s433 = scalar_lea.vmem %s10, %s432
      %s434 = smul.u32 8, %s26
      %s435 = ssub.s32 18, %s434
      %p436 = scmp.lt.s32.totalorder %s435, 8
      %s437 = scalar_select %p436, %s435, 8
      %s438 = smul.u32 64, %s437
      %s439 = smul.u32 %s438, 3
      %p440 = scmp.lt.s32.totalorder %s25, 1
      %s441 = scalar_select %p440, %s25, 1
      %p442 = scmp.lt.s32.totalorder %s434, 17
      %s443 = scalar_select %p442, %s434, 17
      %s444 = smul.addr %s443, 3
      %s445 = smul.addr %s441, 54
      %s446 = sadd.s32 %s444, %s445
      %s447 = smul.addr %s446, 4
      %s448 = scalar_lea.vmem %s0, %s447
      %s449 = smul.u32 8, %s26
      %s450 = ssub.s32 18, %s449
      %p451 = scmp.lt.s32.totalorder %s450, 8
      %s452 = scalar_select %p451, %s450, 8
      %s453 = smul.u32 64, %s452
      %s454 = smul.u32 %s453, 3
      %s455 = sadd.s32 %s26, 1
      %s456 = smul.u32 %s455, 4
      %s457 = smul.u32 2, %s456
      %p458 = scmp.lt.s32.totalorder %s25, 1
      %s459 = scalar_select %p458, %s25, 1
      %p460 = scmp.lt.s32.totalorder %s457, 17
      %s461 = scalar_select %p460, %s457, 17
      %s462 = smul.addr %s461, 3
      %s463 = smul.addr %s459, 54
      %s464 = sadd.s32 %s462, %s463
      %s465 = smul.addr %s464, 4
      %s466 = scalar_lea.vmem %s1, %s465
      %s467 = sadd.s32 %s26, 1
      %s468 = smul.u32 %s467, 4
      %s469 = smul.u32 2, %s468
      %s470 = smul.u32 16, %s26
      %p471 = scmp.lt.s32.totalorder %s25, 1
      %s472 = scalar_select %p471, %s25, 1
      %p473 = scmp.lt.s32.totalorder %s470, 31
      %s474 = scalar_select %p473, %s470, 31
      %s475 = smul.addr %s472, 32
      %s476 = sadd.s32 %s474, %s475
      %s477 = smul.addr %s476, 8
      %s478 = scalar_lea.vmem %s10, %s477
      %s479 = smul.u32 16, %s26
      %v481 = vld [vmem:[%s448] sm:$0xf]
      %v482 = vld [vmem:[%s448 + $0x4] sm:$0xf]
      %v483 = vld [vmem:[%s448 + $0x8] sm:$0x1]
      %v484 = vld [vmem:[%s448 + $0xc] sm:$0xf]
      %v485 = vld [vmem:[%s448 + $0x10] sm:$0xf]
      %v486 = vld [vmem:[%s448 + $0x14] sm:$0x1]
      %v487 = vld [vmem:[%s448 + $0x18] sm:$0xf]
      %v488 = vld [vmem:[%s448 + $0x1c] sm:$0xf]
      %v489 = vld [vmem:[%s448 + $0x20] sm:$0x1]
      %v490 = vld [vmem:[%s448 + $0x24] sm:$0xf]
      %v491 = vld [vmem:[%s448 + $0x28] sm:$0xf]
      %v492 = vld [vmem:[%s448 + $0x2c] sm:$0x1]
      %v493 = vld [vmem:[%s448 + $0x30] sm:$0xf]
      %v494 = vld [vmem:[%s448 + $0x34] sm:$0xf]
      %v495 = vld [vmem:[%s448 + $0x38] sm:$0x1]
      %v496 = vld [vmem:[%s448 + $0x3c] sm:$0xf]
      %v497 = vld [vmem:[%s448 + $0x40] sm:$0xf]
      %v498 = vld [vmem:[%s448 + $0x44] sm:$0x1]
      %v499 = vld [vmem:[%s448 + $0x48] sm:$0xf]
      %v500 = vld [vmem:[%s448 + $0x4c] sm:$0xf]
      %v501 = vld [vmem:[%s448 + $0x50] sm:$0x1]
      %v502 = vld [vmem:[%s448 + $0x54] sm:$0xf]
      %v503 = vld [vmem:[%s448 + $0x58] sm:$0xf]
      %v504 = vld [vmem:[%s448 + $0x5c] sm:$0x1]
      %s505 = smul.u32 %s26, 8
      %v531 = vunpack.c.l.s4 1966171168
      %v532 = vunpack.c.0.s8 %v531
      %v533 = vlaneseq
      %v534 = vshrl.u32 %v533, 7
      %v535 = vsub.s32 %v532, %v534
      %v536 = vrot.slane %v481, %v535
      %v537 = vcombine.high %v536, %v536
      %v539 = vunpack.c.l.s4 1966171168
      %v540 = vunpack.c.0.s8 %v539
      %v541 = vlaneseq
      %v542 = vshrl.u32 %v541, 7
      %v543 = vsub.s32 %v540, %v542
      %v544 = vrot.slane %v536, %v543
      %v546 = vunpack.c.l.s4 1966171168
      %v547 = vunpack.c.0.s8 %v546
      %v548 = vlaneseq
      %v549 = vshrl.u32 %v548, 7
      %v550 = vsub.s32 %v547, %v549
      %v551 = vrot.slane %v537, %v550
      %v552 = vcombine.high %v544, %v544
      %v553 = vcombine.high %v551, %v551
      %v555 = vunpack.c.l.s4 1966171168
      %v556 = vunpack.c.0.s8 %v555
      %v557 = vlaneseq
      %v558 = vshrl.u32 %v557, 7
      %v559 = vsub.s32 %v556, %v558
      %v560 = vrot.slane %v482, %v559
      %v561 = vcombine.high %v560, %v560
      %v563 = vunpack.c.l.s4 1966171168
      %v564 = vunpack.c.0.s8 %v563
      %v565 = vlaneseq
      %v566 = vshrl.u32 %v565, 7
      %v567 = vsub.s32 %v564, %v566
      %v568 = vrot.slane %v560, %v567
      %v570 = vunpack.c.l.s4 1966171168
      %v571 = vunpack.c.0.s8 %v570
      %v572 = vlaneseq
      %v573 = vshrl.u32 %v572, 7
      %v574 = vsub.s32 %v571, %v573
      %v575 = vrot.slane %v561, %v574
      %v576 = vcombine.high %v568, %v568
      %v577 = vcombine.high %v575, %v575
      %v579 = vunpack.c.l.s4 1966171168
      %v580 = vunpack.c.0.s8 %v579
      %v581 = vlaneseq
      %v582 = vshrl.u32 %v581, 7
      %v583 = vsub.s32 %v580, %v582
      %v584 = vrot.slane %v483, %v583
      %v586 = vunpack.c.l.s4 1966171168
      %v587 = vunpack.c.0.s8 %v586
      %v588 = vlaneseq
      %v589 = vshrl.u32 %v588, 7
      %v590 = vsub.s32 %v587, %v589
      %v591 = vrot.slane %v584, %v590
      %v593 = vunpack.c.l.s4 1966171168
      %v594 = vunpack.c.0.s8 %v593
      %v595 = vlaneseq
      %v596 = vshrl.u32 %v595, 7
      %v597 = vsub.s32 %v594, %v596
      %v598 = vrot.slane %v484, %v597
      %v599 = vcombine.high %v598, %v598
      %v601 = vunpack.c.l.s4 1966171168
      %v602 = vunpack.c.0.s8 %v601
      %v603 = vlaneseq
      %v604 = vshrl.u32 %v603, 7
      %v605 = vsub.s32 %v602, %v604
      %v606 = vrot.slane %v598, %v605
      %v608 = vunpack.c.l.s4 1966171168
      %v609 = vunpack.c.0.s8 %v608
      %v610 = vlaneseq
      %v611 = vshrl.u32 %v610, 7
      %v612 = vsub.s32 %v609, %v611
      %v613 = vrot.slane %v599, %v612
      %v614 = vcombine.high %v606, %v606
      %v615 = vcombine.high %v613, %v613
      %v617 = vunpack.c.l.s4 1966171168
      %v618 = vunpack.c.0.s8 %v617
      %v619 = vlaneseq
      %v620 = vshrl.u32 %v619, 7
      %v621 = vsub.s32 %v618, %v620
      %v622 = vrot.slane %v485, %v621
      %v623 = vcombine.high %v622, %v622
      %v625 = vunpack.c.l.s4 1966171168
      %v626 = vunpack.c.0.s8 %v625
      %v627 = vlaneseq
      %v628 = vshrl.u32 %v627, 7
      %v629 = vsub.s32 %v626, %v628
      %v630 = vrot.slane %v622, %v629
      %v632 = vunpack.c.l.s4 1966171168
      %v633 = vunpack.c.0.s8 %v632
      %v634 = vlaneseq
      %v635 = vshrl.u32 %v634, 7
      %v636 = vsub.s32 %v633, %v635
      %v637 = vrot.slane %v623, %v636
      %v638 = vcombine.high %v630, %v630
      %v639 = vcombine.high %v637, %v637
      %v641 = vunpack.c.l.s4 1966171168
      %v642 = vunpack.c.0.s8 %v641
      %v643 = vlaneseq
      %v644 = vshrl.u32 %v643, 7
      %v645 = vsub.s32 %v642, %v644
      %v646 = vrot.slane %v486, %v645
      %v648 = vunpack.c.l.s4 1966171168
      %v649 = vunpack.c.0.s8 %v648
      %v650 = vlaneseq
      %v651 = vshrl.u32 %v650, 7
      %v652 = vsub.s32 %v649, %v651
      %v653 = vrot.slane %v646, %v652
      %v655 = vunpack.c.l.s4 1966171168
      %v656 = vunpack.c.0.s8 %v655
      %v657 = vlaneseq
      %v658 = vshrl.u32 %v657, 7
      %v659 = vsub.s32 %v656, %v658
      %v660 = vrot.slane %v487, %v659
      %v661 = vcombine.high %v660, %v660
      %v663 = vunpack.c.l.s4 1966171168
      %v664 = vunpack.c.0.s8 %v663
      %v665 = vlaneseq
      %v666 = vshrl.u32 %v665, 7
      %v667 = vsub.s32 %v664, %v666
      %v668 = vrot.slane %v660, %v667
      %v670 = vunpack.c.l.s4 1966171168
      %v671 = vunpack.c.0.s8 %v670
      %v672 = vlaneseq
      %v673 = vshrl.u32 %v672, 7
      %v674 = vsub.s32 %v671, %v673
      %v675 = vrot.slane %v661, %v674
      %v676 = vcombine.high %v668, %v668
      %v677 = vcombine.high %v675, %v675
      %v679 = vunpack.c.l.s4 1966171168
      %v680 = vunpack.c.0.s8 %v679
      %v681 = vlaneseq
      %v682 = vshrl.u32 %v681, 7
      %v683 = vsub.s32 %v680, %v682
      %v684 = vrot.slane %v488, %v683
      %v685 = vcombine.high %v684, %v684
      %v687 = vunpack.c.l.s4 1966171168
      %v688 = vunpack.c.0.s8 %v687
      %v689 = vlaneseq
      %v690 = vshrl.u32 %v689, 7
      %v691 = vsub.s32 %v688, %v690
      %v692 = vrot.slane %v684, %v691
      %v694 = vunpack.c.l.s4 1966171168
      %v695 = vunpack.c.0.s8 %v694
      %v696 = vlaneseq
      %v697 = vshrl.u32 %v696, 7
      %v698 = vsub.s32 %v695, %v697
      %v699 = vrot.slane %v685, %v698
      %v700 = vcombine.high %v692, %v692
      %v701 = vcombine.high %v699, %v699
      %v703 = vunpack.c.l.s4 1966171168
      %v704 = vunpack.c.0.s8 %v703
      %v705 = vlaneseq
      %v706 = vshrl.u32 %v705, 7
      %v707 = vsub.s32 %v704, %v706
      %v708 = vrot.slane %v489, %v707
      %v710 = vunpack.c.l.s4 1966171168
      %v711 = vunpack.c.0.s8 %v710
      %v712 = vlaneseq
      %v713 = vshrl.u32 %v712, 7
      %v714 = vsub.s32 %v711, %v713
      %v715 = vrot.slane %v708, %v714
      %v717 = vunpack.c.l.s4 1966171168
      %v718 = vunpack.c.0.s8 %v717
      %v719 = vlaneseq
      %v720 = vshrl.u32 %v719, 7
      %v721 = vsub.s32 %v718, %v720
      %v722 = vrot.slane %v490, %v721
      %v723 = vcombine.high %v722, %v722
      %v725 = vunpack.c.l.s4 1966171168
      %v726 = vunpack.c.0.s8 %v725
      %v727 = vlaneseq
      %v728 = vshrl.u32 %v727, 7
      %v729 = vsub.s32 %v726, %v728
      %v730 = vrot.slane %v722, %v729
      %v732 = vunpack.c.l.s4 1966171168
      %v733 = vunpack.c.0.s8 %v732
      %v734 = vlaneseq
      %v735 = vshrl.u32 %v734, 7
      %v736 = vsub.s32 %v733, %v735
      %v737 = vrot.slane %v723, %v736
      %v738 = vcombine.high %v730, %v730
      %v739 = vcombine.high %v737, %v737
      %v741 = vunpack.c.l.s4 1966171168
      %v742 = vunpack.c.0.s8 %v741
      %v743 = vlaneseq
      %v744 = vshrl.u32 %v743, 7
      %v745 = vsub.s32 %v742, %v744
      %v746 = vrot.slane %v491, %v745
      %v747 = vcombine.high %v746, %v746
      %v749 = vunpack.c.l.s4 1966171168
      %v750 = vunpack.c.0.s8 %v749
      %v751 = vlaneseq
      %v752 = vshrl.u32 %v751, 7
      %v753 = vsub.s32 %v750, %v752
      %v754 = vrot.slane %v746, %v753
      %v756 = vunpack.c.l.s4 1966171168
      %v757 = vunpack.c.0.s8 %v756
      %v758 = vlaneseq
      %v759 = vshrl.u32 %v758, 7
      %v760 = vsub.s32 %v757, %v759
      %v761 = vrot.slane %v747, %v760
      %v762 = vcombine.high %v754, %v754
      %v763 = vcombine.high %v761, %v761
      %v765 = vunpack.c.l.s4 1966171168
      %v766 = vunpack.c.0.s8 %v765
      %v767 = vlaneseq
      %v768 = vshrl.u32 %v767, 7
      %v769 = vsub.s32 %v766, %v768
      %v770 = vrot.slane %v492, %v769
      %v772 = vunpack.c.l.s4 1966171168
      %v773 = vunpack.c.0.s8 %v772
      %v774 = vlaneseq
      %v775 = vshrl.u32 %v774, 7
      %v776 = vsub.s32 %v773, %v775
      %v777 = vrot.slane %v770, %v776
      %v779 = vunpack.c.l.s4 1966171168
      %v780 = vunpack.c.0.s8 %v779
      %v781 = vlaneseq
      %v782 = vshrl.u32 %v781, 7
      %v783 = vsub.s32 %v780, %v782
      %v784 = vrot.slane %v493, %v783
      %v785 = vcombine.high %v784, %v784
      %v787 = vunpack.c.l.s4 1966171168
      %v788 = vunpack.c.0.s8 %v787
      %v789 = vlaneseq
      %v790 = vshrl.u32 %v789, 7
      %v791 = vsub.s32 %v788, %v790
      %v792 = vrot.slane %v784, %v791
      %v794 = vunpack.c.l.s4 1966171168
      %v795 = vunpack.c.0.s8 %v794
      %v796 = vlaneseq
      %v797 = vshrl.u32 %v796, 7
      %v798 = vsub.s32 %v795, %v797
      %v799 = vrot.slane %v785, %v798
      %v800 = vcombine.high %v792, %v792
      %v801 = vcombine.high %v799, %v799
      %v803 = vunpack.c.l.s4 1966171168
      %v804 = vunpack.c.0.s8 %v803
      %v805 = vlaneseq
      %v806 = vshrl.u32 %v805, 7
      %v807 = vsub.s32 %v804, %v806
      %v808 = vrot.slane %v494, %v807
      %v809 = vcombine.high %v808, %v808
      %v811 = vunpack.c.l.s4 1966171168
      %v812 = vunpack.c.0.s8 %v811
      %v813 = vlaneseq
      %v814 = vshrl.u32 %v813, 7
      %v815 = vsub.s32 %v812, %v814
      %v816 = vrot.slane %v808, %v815
      %v818 = vunpack.c.l.s4 1966171168
      %v819 = vunpack.c.0.s8 %v818
      %v820 = vlaneseq
      %v821 = vshrl.u32 %v820, 7
      %v822 = vsub.s32 %v819, %v821
      %v823 = vrot.slane %v809, %v822
      %v824 = vcombine.high %v816, %v816
      %v825 = vcombine.high %v823, %v823
      %v827 = vunpack.c.l.s4 1966171168
      %v828 = vunpack.c.0.s8 %v827
      %v829 = vlaneseq
      %v830 = vshrl.u32 %v829, 7
      %v831 = vsub.s32 %v828, %v830
      %v832 = vrot.slane %v495, %v831
      %v834 = vunpack.c.l.s4 1966171168
      %v835 = vunpack.c.0.s8 %v834
      %v836 = vlaneseq
      %v837 = vshrl.u32 %v836, 7
      %v838 = vsub.s32 %v835, %v837
      %v839 = vrot.slane %v832, %v838
      %v841 = vunpack.c.l.s4 1966171168
      %v842 = vunpack.c.0.s8 %v841
      %v843 = vlaneseq
      %v844 = vshrl.u32 %v843, 7
      %v845 = vsub.s32 %v842, %v844
      %v846 = vrot.slane %v496, %v845
      %v847 = vcombine.high %v846, %v846
      %v849 = vunpack.c.l.s4 1966171168
      %v850 = vunpack.c.0.s8 %v849
      %v851 = vlaneseq
      %v852 = vshrl.u32 %v851, 7
      %v853 = vsub.s32 %v850, %v852
      %v854 = vrot.slane %v846, %v853
      %v856 = vunpack.c.l.s4 1966171168
      %v857 = vunpack.c.0.s8 %v856
      %v858 = vlaneseq
      %v859 = vshrl.u32 %v858, 7
      %v860 = vsub.s32 %v857, %v859
      %v861 = vrot.slane %v847, %v860
      %v862 = vcombine.high %v854, %v854
      %v863 = vcombine.high %v861, %v861
      %v865 = vunpack.c.l.s4 1966171168
      %v866 = vunpack.c.0.s8 %v865
      %v867 = vlaneseq
      %v868 = vshrl.u32 %v867, 7
      %v869 = vsub.s32 %v866, %v868
      %v870 = vrot.slane %v497, %v869
      %v871 = vcombine.high %v870, %v870
      %v873 = vunpack.c.l.s4 1966171168
      %v874 = vunpack.c.0.s8 %v873
      %v875 = vlaneseq
      %v876 = vshrl.u32 %v875, 7
      %v877 = vsub.s32 %v874, %v876
      %v878 = vrot.slane %v870, %v877
      %v880 = vunpack.c.l.s4 1966171168
      %v881 = vunpack.c.0.s8 %v880
      %v882 = vlaneseq
      %v883 = vshrl.u32 %v882, 7
      %v884 = vsub.s32 %v881, %v883
      %v885 = vrot.slane %v871, %v884
      %v886 = vcombine.high %v878, %v878
      %v887 = vcombine.high %v885, %v885
      %v889 = vunpack.c.l.s4 1966171168
      %v890 = vunpack.c.0.s8 %v889
      %v891 = vlaneseq
      %v892 = vshrl.u32 %v891, 7
      %v893 = vsub.s32 %v890, %v892
      %v894 = vrot.slane %v498, %v893
      %v896 = vunpack.c.l.s4 1966171168
      %v897 = vunpack.c.0.s8 %v896
      %v898 = vlaneseq
      %v899 = vshrl.u32 %v898, 7
      %v900 = vsub.s32 %v897, %v899
      %v901 = vrot.slane %v894, %v900
      %v903 = vunpack.c.l.s4 1966171168
      %v904 = vunpack.c.0.s8 %v903
      %v905 = vlaneseq
      %v906 = vshrl.u32 %v905, 7
      %v907 = vsub.s32 %v904, %v906
      %v908 = vrot.slane %v499, %v907
      %v909 = vcombine.high %v908, %v908
      %v911 = vunpack.c.l.s4 1966171168
      %v912 = vunpack.c.0.s8 %v911
      %v913 = vlaneseq
      %v914 = vshrl.u32 %v913, 7
      %v915 = vsub.s32 %v912, %v914
      %v916 = vrot.slane %v908, %v915
      %v918 = vunpack.c.l.s4 1966171168
      %v919 = vunpack.c.0.s8 %v918
      %v920 = vlaneseq
      %v921 = vshrl.u32 %v920, 7
      %v922 = vsub.s32 %v919, %v921
      %v923 = vrot.slane %v909, %v922
      %v924 = vcombine.high %v916, %v916
      %v925 = vcombine.high %v923, %v923
      %v927 = vunpack.c.l.s4 1966171168
      %v928 = vunpack.c.0.s8 %v927
      %v929 = vlaneseq
      %v930 = vshrl.u32 %v929, 7
      %v931 = vsub.s32 %v928, %v930
      %v932 = vrot.slane %v500, %v931
      %v933 = vcombine.high %v932, %v932
      %v935 = vunpack.c.l.s4 1966171168
      %v936 = vunpack.c.0.s8 %v935
      %v937 = vlaneseq
      %v938 = vshrl.u32 %v937, 7
      %v939 = vsub.s32 %v936, %v938
      %v940 = vrot.slane %v932, %v939
      %v942 = vunpack.c.l.s4 1966171168
      %v943 = vunpack.c.0.s8 %v942
      %v944 = vlaneseq
      %v945 = vshrl.u32 %v944, 7
      %v946 = vsub.s32 %v943, %v945
      %v947 = vrot.slane %v933, %v946
      %v948 = vcombine.high %v940, %v940
      %v949 = vcombine.high %v947, %v947
      %v951 = vunpack.c.l.s4 1966171168
      %v952 = vunpack.c.0.s8 %v951
      %v953 = vlaneseq
      %v954 = vshrl.u32 %v953, 7
      %v955 = vsub.s32 %v952, %v954
      %v956 = vrot.slane %v501, %v955
      %v958 = vunpack.c.l.s4 1966171168
      %v959 = vunpack.c.0.s8 %v958
      %v960 = vlaneseq
      %v961 = vshrl.u32 %v960, 7
      %v962 = vsub.s32 %v959, %v961
      %v963 = vrot.slane %v956, %v962
      %v965 = vunpack.c.l.s4 1966171168
      %v966 = vunpack.c.0.s8 %v965
      %v967 = vlaneseq
      %v968 = vshrl.u32 %v967, 7
      %v969 = vsub.s32 %v966, %v968
      %v970 = vrot.slane %v502, %v969
      %v971 = vcombine.high %v970, %v970
      %v973 = vunpack.c.l.s4 1966171168
      %v974 = vunpack.c.0.s8 %v973
      %v975 = vlaneseq
      %v976 = vshrl.u32 %v975, 7
      %v977 = vsub.s32 %v974, %v976
      %v978 = vrot.slane %v970, %v977
      %v980 = vunpack.c.l.s4 1966171168
      %v981 = vunpack.c.0.s8 %v980
      %v982 = vlaneseq
      %v983 = vshrl.u32 %v982, 7
      %v984 = vsub.s32 %v981, %v983
      %v985 = vrot.slane %v971, %v984
      %v986 = vcombine.high %v978, %v978
      %v987 = vcombine.high %v985, %v985
      %v989 = vunpack.c.l.s4 1966171168
      %v990 = vunpack.c.0.s8 %v989
      %v991 = vlaneseq
      %v992 = vshrl.u32 %v991, 7
      %v993 = vsub.s32 %v990, %v992
      %v994 = vrot.slane %v503, %v993
      %v995 = vcombine.high %v994, %v994
      %v997 = vunpack.c.l.s4 1966171168
      %v998 = vunpack.c.0.s8 %v997
      %v999 = vlaneseq
      %v1000 = vshrl.u32 %v999, 7
      %v1001 = vsub.s32 %v998, %v1000
      %v1002 = vrot.slane %v994, %v1001
      %v1004 = vunpack.c.l.s4 1966171168
      %v1005 = vunpack.c.0.s8 %v1004
      %v1006 = vlaneseq
      %v1007 = vshrl.u32 %v1006, 7
      %v1008 = vsub.s32 %v1005, %v1007
      %v1009 = vrot.slane %v995, %v1008
      %v1010 = vcombine.high %v1002, %v1002
      %v1011 = vcombine.high %v1009, %v1009
      %v1013 = vunpack.c.l.s4 1966171168
      %v1014 = vunpack.c.0.s8 %v1013
      %v1015 = vlaneseq
      %v1016 = vshrl.u32 %v1015, 7
      %v1017 = vsub.s32 %v1014, %v1016
      %v1018 = vrot.slane %v504, %v1017
      %v1020 = vunpack.c.l.s4 1966171168
      %v1021 = vunpack.c.0.s8 %v1020
      %v1022 = vlaneseq
      %v1023 = vshrl.u32 %v1022, 7
      %v1024 = vsub.s32 %v1021, %v1023
      %v1025 = vrot.slane %v1018, %v1024
      %v1026 = vld [vmem:[%s2] sm:$0xf]
      %v1027 = vld [vmem:[%s3] sm:$0x1]
      %v1029 = vlaneseq
      %v1030 = vshrl.u32 %v1029, 7
      %v1031 = vsub.s32 0, %v1030
      %v1032 = vrot.slane %v1027, %v1031
      %v1034 = vcombine.low %v544, %v551
      %v1035 = vcombine.low %v552, %v553
      %v1036 = vcombine.low %v568, %v575
      %v1037 = vcombine.low %v576, %v577
      %v1039 = vunpack.c.l.s4 1966171168
      %v1040 = vunpack.c.0.s8 %v1039
      %v1041 = vlaneseq
      %v1042 = vshrl.u32 %v1041, 7
      %v1043 = vsub.s32 %v1040, %v1042
      %v1044 = vrot.slane %v1034, %v1043
      %v1046 = vunpack.c.l.s4 1966171168
      %v1047 = vunpack.c.0.s8 %v1046
      %v1048 = vlaneseq
      %v1049 = vshrl.u32 %v1048, 7
      %v1050 = vsub.s32 %v1047, %v1049
      %v1051 = vrot.slane %v1035, %v1050
      %v1053 = vunpack.c.l.s4 1966171168
      %v1054 = vunpack.c.0.s8 %v1053
      %v1055 = vlaneseq
      %v1056 = vshrl.u32 %v1055, 7
      %v1057 = vsub.s32 %v1054, %v1056
      %v1058 = vrot.slane %v1036, %v1057
      %v1060 = vunpack.c.l.s4 1966171168
      %v1061 = vunpack.c.0.s8 %v1060
      %v1062 = vlaneseq
      %v1063 = vshrl.u32 %v1062, 7
      %v1064 = vsub.s32 %v1061, %v1063
      %v1065 = vrot.slane %v1037, %v1064
      %v1066 = vcombine.low %v1044, %v1051
      %v1067 = vcombine.low %v1058, %v1065
      %v1069 = vunpack.c.l.s4 1966171168
      %v1070 = vunpack.c.0.s8 %v1069
      %v1071 = vlaneseq
      %v1072 = vshrl.u32 %v1071, 7
      %v1073 = vsub.s32 %v1070, %v1072
      %v1074 = vrot.slane %v1066, %v1073
      %v1076 = vunpack.c.l.s4 1966171168
      %v1077 = vunpack.c.0.s8 %v1076
      %v1078 = vlaneseq
      %v1079 = vshrl.u32 %v1078, 7
      %v1080 = vsub.s32 %v1077, %v1079
      %v1081 = vrot.slane %v1067, %v1080
      %v1082 = vcombine.low %v1074, %v1081
      %v1083 = vcombine.low %v591, %v606
      %v1084 = vcombine.low %v613, %v614
      %v1085 = vcombine.low %v615, %v630
      %v1086 = vcombine.low %v637, %v638
      %v1088 = vunpack.c.l.s4 1966171168
      %v1089 = vunpack.c.0.s8 %v1088
      %v1090 = vlaneseq
      %v1091 = vshrl.u32 %v1090, 7
      %v1092 = vsub.s32 %v1089, %v1091
      %v1093 = vrot.slane %v1083, %v1092
      %v1095 = vunpack.c.l.s4 1966171168
      %v1096 = vunpack.c.0.s8 %v1095
      %v1097 = vlaneseq
      %v1098 = vshrl.u32 %v1097, 7
      %v1099 = vsub.s32 %v1096, %v1098
      %v1100 = vrot.slane %v1084, %v1099
      %v1102 = vunpack.c.l.s4 1966171168
      %v1103 = vunpack.c.0.s8 %v1102
      %v1104 = vlaneseq
      %v1105 = vshrl.u32 %v1104, 7
      %v1106 = vsub.s32 %v1103, %v1105
      %v1107 = vrot.slane %v1085, %v1106
      %v1109 = vunpack.c.l.s4 1966171168
      %v1110 = vunpack.c.0.s8 %v1109
      %v1111 = vlaneseq
      %v1112 = vshrl.u32 %v1111, 7
      %v1113 = vsub.s32 %v1110, %v1112
      %v1114 = vrot.slane %v1086, %v1113
      %v1115 = vcombine.low %v1093, %v1100
      %v1116 = vcombine.low %v1107, %v1114
      %v1118 = vunpack.c.l.s4 1966171168
      %v1119 = vunpack.c.0.s8 %v1118
      %v1120 = vlaneseq
      %v1121 = vshrl.u32 %v1120, 7
      %v1122 = vsub.s32 %v1119, %v1121
      %v1123 = vrot.slane %v1115, %v1122
      %v1125 = vunpack.c.l.s4 1966171168
      %v1126 = vunpack.c.0.s8 %v1125
      %v1127 = vlaneseq
      %v1128 = vshrl.u32 %v1127, 7
      %v1129 = vsub.s32 %v1126, %v1128
      %v1130 = vrot.slane %v1116, %v1129
      %v1131 = vcombine.low %v1123, %v1130
      %v1132 = vcombine.low %v639, %v653
      %v1133 = vcombine.low %v668, %v675
      %v1134 = vcombine.low %v676, %v677
      %v1135 = vcombine.low %v692, %v699
      %v1137 = vunpack.c.l.s4 1966171168
      %v1138 = vunpack.c.0.s8 %v1137
      %v1139 = vlaneseq
      %v1140 = vshrl.u32 %v1139, 7
      %v1141 = vsub.s32 %v1138, %v1140
      %v1142 = vrot.slane %v1132, %v1141
      %v1144 = vunpack.c.l.s4 1966171168
      %v1145 = vunpack.c.0.s8 %v1144
      %v1146 = vlaneseq
      %v1147 = vshrl.u32 %v1146, 7
      %v1148 = vsub.s32 %v1145, %v1147
      %v1149 = vrot.slane %v1133, %v1148
      %v1151 = vunpack.c.l.s4 1966171168
      %v1152 = vunpack.c.0.s8 %v1151
      %v1153 = vlaneseq
      %v1154 = vshrl.u32 %v1153, 7
      %v1155 = vsub.s32 %v1152, %v1154
      %v1156 = vrot.slane %v1134, %v1155
      %v1158 = vunpack.c.l.s4 1966171168
      %v1159 = vunpack.c.0.s8 %v1158
      %v1160 = vlaneseq
      %v1161 = vshrl.u32 %v1160, 7
      %v1162 = vsub.s32 %v1159, %v1161
      %v1163 = vrot.slane %v1135, %v1162
      %v1164 = vcombine.low %v1142, %v1149
      %v1165 = vcombine.low %v1156, %v1163
      %v1167 = vunpack.c.l.s4 1966171168
      %v1168 = vunpack.c.0.s8 %v1167
      %v1169 = vlaneseq
      %v1170 = vshrl.u32 %v1169, 7
      %v1171 = vsub.s32 %v1168, %v1170
      %v1172 = vrot.slane %v1164, %v1171
      %v1174 = vunpack.c.l.s4 1966171168
      %v1175 = vunpack.c.0.s8 %v1174
      %v1176 = vlaneseq
      %v1177 = vshrl.u32 %v1176, 7
      %v1178 = vsub.s32 %v1175, %v1177
      %v1179 = vrot.slane %v1165, %v1178
      %v1180 = vcombine.low %v1172, %v1179
      %v1181 = vcombine.low %v700, %v701
      %v1182 = vcombine.low %v715, %v730
      %v1183 = vcombine.low %v737, %v738
      %v1184 = vcombine.low %v739, %v754
      %v1186 = vunpack.c.l.s4 1966171168
      %v1187 = vunpack.c.0.s8 %v1186
      %v1188 = vlaneseq
      %v1189 = vshrl.u32 %v1188, 7
      %v1190 = vsub.s32 %v1187, %v1189
      %v1191 = vrot.slane %v1181, %v1190
      %v1193 = vunpack.c.l.s4 1966171168
      %v1194 = vunpack.c.0.s8 %v1193
      %v1195 = vlaneseq
      %v1196 = vshrl.u32 %v1195, 7
      %v1197 = vsub.s32 %v1194, %v1196
      %v1198 = vrot.slane %v1182, %v1197
      %v1200 = vunpack.c.l.s4 1966171168
      %v1201 = vunpack.c.0.s8 %v1200
      %v1202 = vlaneseq
      %v1203 = vshrl.u32 %v1202, 7
      %v1204 = vsub.s32 %v1201, %v1203
      %v1205 = vrot.slane %v1183, %v1204
      %v1207 = vunpack.c.l.s4 1966171168
      %v1208 = vunpack.c.0.s8 %v1207
      %v1209 = vlaneseq
      %v1210 = vshrl.u32 %v1209, 7
      %v1211 = vsub.s32 %v1208, %v1210
      %v1212 = vrot.slane %v1184, %v1211
      %v1213 = vcombine.low %v1191, %v1198
      %v1214 = vcombine.low %v1205, %v1212
      %v1216 = vunpack.c.l.s4 1966171168
      %v1217 = vunpack.c.0.s8 %v1216
      %v1218 = vlaneseq
      %v1219 = vshrl.u32 %v1218, 7
      %v1220 = vsub.s32 %v1217, %v1219
      %v1221 = vrot.slane %v1213, %v1220
      %v1223 = vunpack.c.l.s4 1966171168
      %v1224 = vunpack.c.0.s8 %v1223
      %v1225 = vlaneseq
      %v1226 = vshrl.u32 %v1225, 7
      %v1227 = vsub.s32 %v1224, %v1226
      %v1228 = vrot.slane %v1214, %v1227
      %v1229 = vcombine.low %v1221, %v1228
      %v1230 = vcombine.low %v761, %v762
      %v1231 = vcombine.low %v763, %v777
      %v1232 = vcombine.low %v792, %v799
      %v1233 = vcombine.low %v800, %v801
      %v1235 = vunpack.c.l.s4 1966171168
      %v1236 = vunpack.c.0.s8 %v1235
      %v1237 = vlaneseq
      %v1238 = vshrl.u32 %v1237, 7
      %v1239 = vsub.s32 %v1236, %v1238
      %v1240 = vrot.slane %v1230, %v1239
      %v1242 = vunpack.c.l.s4 1966171168
      %v1243 = vunpack.c.0.s8 %v1242
      %v1244 = vlaneseq
      %v1245 = vshrl.u32 %v1244, 7
      %v1246 = vsub.s32 %v1243, %v1245
      %v1247 = vrot.slane %v1231, %v1246
      %v1249 = vunpack.c.l.s4 1966171168
      %v1250 = vunpack.c.0.s8 %v1249
      %v1251 = vlaneseq
      %v1252 = vshrl.u32 %v1251, 7
      %v1253 = vsub.s32 %v1250, %v1252
      %v1254 = vrot.slane %v1232, %v1253
      %v1256 = vunpack.c.l.s4 1966171168
      %v1257 = vunpack.c.0.s8 %v1256
      %v1258 = vlaneseq
      %v1259 = vshrl.u32 %v1258, 7
      %v1260 = vsub.s32 %v1257, %v1259
      %v1261 = vrot.slane %v1233, %v1260
      %v1262 = vcombine.low %v1240, %v1247
      %v1263 = vcombine.low %v1254, %v1261
      %v1265 = vunpack.c.l.s4 1966171168
      %v1266 = vunpack.c.0.s8 %v1265
      %v1267 = vlaneseq
      %v1268 = vshrl.u32 %v1267, 7
      %v1269 = vsub.s32 %v1266, %v1268
      %v1270 = vrot.slane %v1262, %v1269
      %v1272 = vunpack.c.l.s4 1966171168
      %v1273 = vunpack.c.0.s8 %v1272
      %v1274 = vlaneseq
      %v1275 = vshrl.u32 %v1274, 7
      %v1276 = vsub.s32 %v1273, %v1275
      %v1277 = vrot.slane %v1263, %v1276
      %v1278 = vcombine.low %v1270, %v1277
      %v1279 = vcombine.low %v816, %v823
      %v1280 = vcombine.low %v824, %v825
      %v1281 = vcombine.low %v839, %v854
      %v1282 = vcombine.low %v861, %v862
      %v1284 = vunpack.c.l.s4 1966171168
      %v1285 = vunpack.c.0.s8 %v1284
      %v1286 = vlaneseq
      %v1287 = vshrl.u32 %v1286, 7
      %v1288 = vsub.s32 %v1285, %v1287
      %v1289 = vrot.slane %v1279, %v1288
      %v1291 = vunpack.c.l.s4 1966171168
      %v1292 = vunpack.c.0.s8 %v1291
      %v1293 = vlaneseq
      %v1294 = vshrl.u32 %v1293, 7
      %v1295 = vsub.s32 %v1292, %v1294
      %v1296 = vrot.slane %v1280, %v1295
      %v1298 = vunpack.c.l.s4 1966171168
      %v1299 = vunpack.c.0.s8 %v1298
      %v1300 = vlaneseq
      %v1301 = vshrl.u32 %v1300, 7
      %v1302 = vsub.s32 %v1299, %v1301
      %v1303 = vrot.slane %v1281, %v1302
      %v1305 = vunpack.c.l.s4 1966171168
      %v1306 = vunpack.c.0.s8 %v1305
      %v1307 = vlaneseq
      %v1308 = vshrl.u32 %v1307, 7
      %v1309 = vsub.s32 %v1306, %v1308
      %v1310 = vrot.slane %v1282, %v1309
      %v1311 = vcombine.low %v1289, %v1296
      %v1312 = vcombine.low %v1303, %v1310
      %v1314 = vunpack.c.l.s4 1966171168
      %v1315 = vunpack.c.0.s8 %v1314
      %v1316 = vlaneseq
      %v1317 = vshrl.u32 %v1316, 7
      %v1318 = vsub.s32 %v1315, %v1317
      %v1319 = vrot.slane %v1311, %v1318
      %v1321 = vunpack.c.l.s4 1966171168
      %v1322 = vunpack.c.0.s8 %v1321
      %v1323 = vlaneseq
      %v1324 = vshrl.u32 %v1323, 7
      %v1325 = vsub.s32 %v1322, %v1324
      %v1326 = vrot.slane %v1312, %v1325
      %v1327 = vcombine.low %v1319, %v1326
      %v1328 = vcombine.low %v863, %v878
      %v1329 = vcombine.low %v885, %v886
      %v1330 = vcombine.low %v887, %v901
      %v1331 = vcombine.low %v916, %v923
      %v1333 = vunpack.c.l.s4 1966171168
      %v1334 = vunpack.c.0.s8 %v1333
      %v1335 = vlaneseq
      %v1336 = vshrl.u32 %v1335, 7
      %v1337 = vsub.s32 %v1334, %v1336
      %v1338 = vrot.slane %v1328, %v1337
      %v1340 = vunpack.c.l.s4 1966171168
      %v1341 = vunpack.c.0.s8 %v1340
      %v1342 = vlaneseq
      %v1343 = vshrl.u32 %v1342, 7
      %v1344 = vsub.s32 %v1341, %v1343
      %v1345 = vrot.slane %v1329, %v1344
      %v1347 = vunpack.c.l.s4 1966171168
      %v1348 = vunpack.c.0.s8 %v1347
      %v1349 = vlaneseq
      %v1350 = vshrl.u32 %v1349, 7
      %v1351 = vsub.s32 %v1348, %v1350
      %v1352 = vrot.slane %v1330, %v1351
      %v1354 = vunpack.c.l.s4 1966171168
      %v1355 = vunpack.c.0.s8 %v1354
      %v1356 = vlaneseq
      %v1357 = vshrl.u32 %v1356, 7
      %v1358 = vsub.s32 %v1355, %v1357
      %v1359 = vrot.slane %v1331, %v1358
      %v1360 = vcombine.low %v1338, %v1345
      %v1361 = vcombine.low %v1352, %v1359
      %v1363 = vunpack.c.l.s4 1966171168
      %v1364 = vunpack.c.0.s8 %v1363
      %v1365 = vlaneseq
      %v1366 = vshrl.u32 %v1365, 7
      %v1367 = vsub.s32 %v1364, %v1366
      %v1368 = vrot.slane %v1360, %v1367
      %v1370 = vunpack.c.l.s4 1966171168
      %v1371 = vunpack.c.0.s8 %v1370
      %v1372 = vlaneseq
      %v1373 = vshrl.u32 %v1372, 7
      %v1374 = vsub.s32 %v1371, %v1373
      %v1375 = vrot.slane %v1361, %v1374
      %v1376 = vcombine.low %v1368, %v1375
      %v1377 = vcombine.low %v924, %v925
      %v1378 = vcombine.low %v940, %v947
      %v1379 = vcombine.low %v948, %v949
      %v1380 = vcombine.low %v963, %v978
      %v1382 = vunpack.c.l.s4 1966171168
      %v1383 = vunpack.c.0.s8 %v1382
      %v1384 = vlaneseq
      %v1385 = vshrl.u32 %v1384, 7
      %v1386 = vsub.s32 %v1383, %v1385
      %v1387 = vrot.slane %v1377, %v1386
      %v1389 = vunpack.c.l.s4 1966171168
      %v1390 = vunpack.c.0.s8 %v1389
      %v1391 = vlaneseq
      %v1392 = vshrl.u32 %v1391, 7
      %v1393 = vsub.s32 %v1390, %v1392
      %v1394 = vrot.slane %v1378, %v1393
      %v1396 = vunpack.c.l.s4 1966171168
      %v1397 = vunpack.c.0.s8 %v1396
      %v1398 = vlaneseq
      %v1399 = vshrl.u32 %v1398, 7
      %v1400 = vsub.s32 %v1397, %v1399
      %v1401 = vrot.slane %v1379, %v1400
      %v1403 = vunpack.c.l.s4 1966171168
      %v1404 = vunpack.c.0.s8 %v1403
      %v1405 = vlaneseq
      %v1406 = vshrl.u32 %v1405, 7
      %v1407 = vsub.s32 %v1404, %v1406
      %v1408 = vrot.slane %v1380, %v1407
      %v1409 = vcombine.low %v1387, %v1394
      %v1410 = vcombine.low %v1401, %v1408
      %v1412 = vunpack.c.l.s4 1966171168
      %v1413 = vunpack.c.0.s8 %v1412
      %v1414 = vlaneseq
      %v1415 = vshrl.u32 %v1414, 7
      %v1416 = vsub.s32 %v1413, %v1415
      %v1417 = vrot.slane %v1409, %v1416
      %v1419 = vunpack.c.l.s4 1966171168
      %v1420 = vunpack.c.0.s8 %v1419
      %v1421 = vlaneseq
      %v1422 = vshrl.u32 %v1421, 7
      %v1423 = vsub.s32 %v1420, %v1422
      %v1424 = vrot.slane %v1410, %v1423
      %v1425 = vcombine.low %v1417, %v1424
      %v1426 = vcombine.low %v985, %v986
      %v1427 = vcombine.low %v987, %v1002
      %v1428 = vcombine.low %v1009, %v1010
      %v1429 = vcombine.low %v1011, %v1025
      %v1431 = vunpack.c.l.s4 1966171168
      %v1432 = vunpack.c.0.s8 %v1431
      %v1433 = vlaneseq
      %v1434 = vshrl.u32 %v1433, 7
      %v1435 = vsub.s32 %v1432, %v1434
      %v1436 = vrot.slane %v1426, %v1435
      %v1438 = vunpack.c.l.s4 1966171168
      %v1439 = vunpack.c.0.s8 %v1438
      %v1440 = vlaneseq
      %v1441 = vshrl.u32 %v1440, 7
      %v1442 = vsub.s32 %v1439, %v1441
      %v1443 = vrot.slane %v1427, %v1442
      %v1445 = vunpack.c.l.s4 1966171168
      %v1446 = vunpack.c.0.s8 %v1445
      %v1447 = vlaneseq
      %v1448 = vshrl.u32 %v1447, 7
      %v1449 = vsub.s32 %v1446, %v1448
      %v1450 = vrot.slane %v1428, %v1449
      %v1452 = vunpack.c.l.s4 1966171168
      %v1453 = vunpack.c.0.s8 %v1452
      %v1454 = vlaneseq
      %v1455 = vshrl.u32 %v1454, 7
      %v1456 = vsub.s32 %v1453, %v1455
      %v1457 = vrot.slane %v1429, %v1456
      %v1458 = vcombine.low %v1436, %v1443
      %v1459 = vcombine.low %v1450, %v1457
      %v1461 = vunpack.c.l.s4 1966171168
      %v1462 = vunpack.c.0.s8 %v1461
      %v1463 = vlaneseq
      %v1464 = vshrl.u32 %v1463, 7
      %v1465 = vsub.s32 %v1462, %v1464
      %v1466 = vrot.slane %v1458, %v1465
      %v1468 = vunpack.c.l.s4 1966171168
      %v1469 = vunpack.c.0.s8 %v1468
      %v1470 = vlaneseq
      %v1471 = vshrl.u32 %v1470, 7
      %v1472 = vsub.s32 %v1469, %v1471
      %v1473 = vrot.slane %v1459, %v1472
      %v1474 = vcombine.low %v1466, %v1473
      %vm1475 = vcmask 64512
      %v1477 = vsel %vm1475, %v1082, 0
      %v1480 = vsel %vm1475, %v1131, 0
      %v1483 = vsel %vm1475, %v1180, 0
      %v1486 = vsel %vm1475, %v1229, 0
      %v1489 = vsel %vm1475, %v1278, 0
      %v1492 = vsel %vm1475, %v1327, 0
      %v1495 = vsel %vm1475, %v1376, 0
      %v1498 = vsel %vm1475, %v1425, 0
      %v1501 = vsel %vm1475, %v1474, 0
      %vm1503 = vcmask 1043456
      %v1505 = vsel %vm1503, %v1026, 0
      %1507 = vmatprep.subr.bf16.mxu0 0
      %1508 = vmatpush1.bf16.msra.mxu0 %v1505
      %1509 = vmatprep.subr.bf16.mxu0 0
      %1510 = vmatpush1.bf16.msra.mxu0 0
      %1511 = vmatprep.subr.bf16.mxu0 0
      %1512 = vmatpush1.bf16.msra.mxu0 0
      %1513 = vmatprep.subr.bf16.mxu0 0
      %1514 = vmatpush1.bf16.msra.mxu0 0
      %1515 = vmatprep.subr.bf16.mxu0 0
      %1516 = vmatpush1.bf16.msra.mxu0 0
      %1517 = vmatprep.subr.bf16.mxu0 0
      %1518 = vmatpush1.bf16.msra.mxu0 0
      %1519 = vmatprep.subr.bf16.mxu0 0
      %1520 = vmatpush1.bf16.msra.mxu0 0
      %1521 = vmatprep.subr.bf16.mxu0 0
      %1522 = vmatpush1.bf16.msra.mxu0 0
      %1523 = vmatprep.subr.bf16.mxu0 0
      %1524 = vmatpush1.bf16.msra.mxu0 0
      %1525 = vmatprep.subr.bf16.mxu0 0
      %1526 = vmatpush1.bf16.msra.mxu0 0
      %1527 = vmatprep.subr.bf16.mxu0 0
      %1528 = vmatpush1.bf16.msra.mxu0 0
      %1529 = vmatprep.subr.bf16.mxu0 0
      %1530 = vmatpush1.bf16.msra.mxu0 0
      %1531 = vmatprep.subr.bf16.mxu0 0
      %1532 = vmatpush1.bf16.msra.mxu0 0
      %1533 = vmatprep.subr.bf16.mxu0 0
      %1534 = vmatpush1.bf16.msra.mxu0 0
      %1535 = vmatprep.subr.bf16.mxu0 0
      %1536 = vmatpush1.bf16.msra.mxu0 0
      %1537 = vmatprep.subr.bf16.mxu0 0
      %1538 = vmatpush1.bf16.msra.mxu0 0
      %1539 = vmatprep.mubr.bf16.mxu0 0
      %1540 = vmatmul.mubr.bf16.gmra.mrb[0].mxu0 %v1477
      %v1541 = vpop.f32.mrb[0].mxu0
      %v1542 = vadd.f32 %v1032, %v1541
      %v1543 = vpop.f32.mrb[0].mxu0
      %v1544 = vpop.f32.mrb[0].mxu0
      %v1545 = vadd.f32 %v1032, %v1544
      %v1546 = vpop.f32.mrb[0].mxu0
      %1547 = vmatprep.mubr.bf16.mxu0 0
      %1548 = vmatmul.mubr.bf16.gmra.mrb[0].mxu0 %v1480
      %v1549 = vpop.f32.mrb[0].mxu0
      %v1550 = vadd.f32 %v1032, %v1549
      %v1551 = vpop.f32.mrb[0].mxu0
      %v1552 = vpop.f32.mrb[0].mxu0
      %v1553 = vadd.f32 %v1032, %v1552
      %v1554 = vpop.f32.mrb[0].mxu0
      %1555 = vmatprep.mubr.bf16.mxu0 0
      %1556 = vmatmul.mubr.bf16.gmra.mrb[0].mxu0 %v1483
      %v1557 = vpop.f32.mrb[0].mxu0
      %v1558 = vadd.f32 %v1032, %v1557
      %v1559 = vpop.f32.mrb[0].mxu0
      %v1560 = vpop.f32.mrb[0].mxu0
      %v1561 = vadd.f32 %v1032, %v1560
      %v1562 = vpop.f32.mrb[0].mxu0
      %1563 = vmatprep.mubr.bf16.mxu0 0
      %1564 = vmatmul.mubr.bf16.gmra.mrb[0].mxu0 %v1486
      %v1565 = vpop.f32.mrb[0].mxu0
      %v1566 = vadd.f32 %v1032, %v1565
      %v1567 = vpop.f32.mrb[0].mxu0
      %v1568 = vpop.f32.mrb[0].mxu0
      %v1569 = vadd.f32 %v1032, %v1568
      %v1570 = vpop.f32.mrb[0].mxu0
      %1571 = vmatprep.mubr.bf16.mxu0 0
      %1572 = vmatmul.mubr.bf16.gmra.mrb[0].mxu0 %v1489
      %v1573 = vpop.f32.mrb[0].mxu0
      %v1574 = vadd.f32 %v1032, %v1573
      %v1575 = vpop.f32.mrb[0].mxu0
      %v1576 = vpop.f32.mrb[0].mxu0
      %v1577 = vadd.f32 %v1032, %v1576
      %v1578 = vpop.f32.mrb[0].mxu0
      %1579 = vmatprep.mubr.bf16.mxu0 0
      %1580 = vmatmul.mubr.bf16.gmra.mrb[0].mxu0 %v1492
      %v1581 = vpop.f32.mrb[0].mxu0
      %v1582 = vadd.f32 %v1032, %v1581
      %v1583 = vpop.f32.mrb[0].mxu0
      %v1584 = vpop.f32.mrb[0].mxu0
      %v1585 = vadd.f32 %v1032, %v1584
      %v1586 = vpop.f32.mrb[0].mxu0
      %1587 = vmatprep.mubr.bf16.mxu0 0
      %1588 = vmatmul.mubr.bf16.gmra.mrb[0].mxu0 %v1495
      %v1589 = vpop.f32.mrb[0].mxu0
      %v1590 = vadd.f32 %v1032, %v1589
      %v1591 = vpop.f32.mrb[0].mxu0
      %v1592 = vpop.f32.mrb[0].mxu0
      %v1593 = vadd.f32 %v1032, %v1592
      %v1594 = vpop.f32.mrb[0].mxu0
      %1595 = vmatprep.mubr.bf16.mxu0 0
      %1596 = vmatmul.mubr.bf16.gmra.mrb[0].mxu0 %v1498
      %v1597 = vpop.f32.mrb[0].mxu0
      %v1598 = vadd.f32 %v1032, %v1597
      %v1599 = vpop.f32.mrb[0].mxu0
      %v1600 = vpop.f32.mrb[0].mxu0
      %v1601 = vadd.f32 %v1032, %v1600
      %v1602 = vpop.f32.mrb[0].mxu0
      %1603 = vmatprep.mubr.bf16.mxu0 0
      %1604 = vmatmul.mubr.bf16.gmra.mrb[0].mxu0 %v1501
      %v1605 = vpop.f32.mrb[0].mxu0
      %v1606 = vadd.f32 %v1032, %v1605
      %v1607 = vpop.f32.mrb[0].mxu0
      %v1608 = vpop.f32.mrb[0].mxu0
      %v1609 = vadd.f32 %v1032, %v1608
      %v1610 = vpop.f32.mrb[0].mxu0
      %1611 = vdwg.mxu0
      %v1612 = vmax.f32 %v1542, 0.0
      %v1613 = vmax.f32 %v1545, 0.0
      %v1614 = vmax.f32 %v1550, 0.0
      %v1615 = vmax.f32 %v1553, 0.0
      %v1616 = vmax.f32 %v1558, 0.0
      %v1617 = vmax.f32 %v1561, 0.0
      %v1618 = vmax.f32 %v1566, 0.0
      %v1619 = vmax.f32 %v1569, 0.0
      %v1620 = vmax.f32 %v1574, 0.0
      %v1621 = vmax.f32 %v1577, 0.0
      %v1622 = vmax.f32 %v1582, 0.0
      %v1623 = vmax.f32 %v1585, 0.0
      %v1624 = vmax.f32 %v1590, 0.0
      %v1625 = vmax.f32 %v1593, 0.0
      %v1626 = vmax.f32 %v1598, 0.0
      %v1627 = vmax.f32 %v1601, 0.0
      %v1628 = vmax.f32 %v1606, 0.0
      %v1629 = vmax.f32 %v1609, 0.0
      %v1630 = vpack.c.bf16 %v1613, %v1612
      %v1631 = vpack.c.bf16 %v1615, %v1614
      %v1632 = vpack.c.bf16 %v1617, %v1616
      %v1633 = vpack.c.bf16 %v1619, %v1618
      %v1634 = vpack.c.bf16 %v1621, %v1620
      %v1635 = vpack.c.bf16 %v1623, %v1622
      %v1636 = vpack.c.bf16 %v1625, %v1624
      %v1637 = vpack.c.bf16 %v1627, %v1626
      %v1638 = vpack.c.bf16 %v1629, %v1628
      %v1639 = vld [vmem:[%s4] sm:$0xf]
      %v1640 = vld [vmem:[%s4 + $0x4] sm:$0xf]
      %v1641 = vld [vmem:[%s5] sm:$0x1]
      %v1643 = vlaneseq
      %v1644 = vshrl.u32 %v1643, 7
      %v1645 = vsub.s32 0, %v1644
      %v1646 = vrot.slane %v1641, %v1645
      %v1650 = vunpack.c.l.b16 %v1639
      %v1651 = vunpack.c.l.b16 %v1640
      %v1652 = vpack.c.b16 %v1651, %v1650
      %vm1654 = vcmask 130048
      %v1656 = vsel %vm1654, %v1630, 0
      %v1659 = vsel %vm1654, %v1631, 0
      %v1662 = vsel %vm1654, %v1632, 0
      %v1665 = vsel %vm1654, %v1633, 0
      %v1668 = vsel %vm1654, %v1634, 0
      %v1671 = vsel %vm1654, %v1635, 0
      %v1674 = vsel %vm1654, %v1636, 0
      %v1677 = vsel %vm1654, %v1637, 0
      %v1680 = vsel %vm1654, %v1638, 0
      %1682 = vmatprep.subr.bf16.mxu0 0
      %1683 = vmatpush1.bf16.msra.mxu0 %v1652
      %1684 = vmatprep.subr.bf16.mxu0 0
      %1685 = vmatpush1.bf16.msra.mxu0 0
      %1686 = vmatprep.subr.bf16.mxu0 0
      %1687 = vmatpush1.bf16.msra.mxu0 0
      %1688 = vmatprep.subr.bf16.mxu0 0
      %1689 = vmatpush1.bf16.msra.mxu0 0
      %1690 = vmatprep.subr.bf16.mxu0 0
      %1691 = vmatpush1.bf16.msra.mxu0 0
      %1692 = vmatprep.subr.bf16.mxu0 0
      %1693 = vmatpush1.bf16.msra.mxu0 0
      %1694 = vmatprep.subr.bf16.mxu0 0
      %1695 = vmatpush1.bf16.msra.mxu0 0
      %1696 = vmatprep.subr.bf16.mxu0 0
      %1697 = vmatpush1.bf16.msra.mxu0 0
      %1698 = vmatprep.subr.bf16.mxu0 0
      %1699 = vmatpush1.bf16.msra.mxu0 0
      %1700 = vmatprep.subr.bf16.mxu0 0
      %1701 = vmatpush1.bf16.msra.mxu0 0
      %1702 = vmatprep.subr.bf16.mxu0 0
      %1703 = vmatpush1.bf16.msra.mxu0 0
      %1704 = vmatprep.subr.bf16.mxu0 0
      %1705 = vmatpush1.bf16.msra.mxu0 0
      %1706 = vmatprep.subr.bf16.mxu0 0
      %1707 = vmatpush1.bf16.msra.mxu0 0
      %1708 = vmatprep.subr.bf16.mxu0 0
      %1709 = vmatpush1.bf16.msra.mxu0 0
      %1710 = vmatprep.subr.bf16.mxu0 0
      %1711 = vmatpush1.bf16.msra.mxu0 0
      %1712 = vmatprep.subr.bf16.mxu0 0
      %1713 = vmatpush1.bf16.msra.mxu0 0
      %1714 = vmatprep.mubr.bf16.mxu0 0
      %1715 = vmatmul.mubr.bf16.gmra.mrb[0].mxu0 %v1656
      %v1716 = vpop.f32.mrb[0].mxu0
      %v1717 = vadd.f32 %v1646, %v1716
      %v1718 = vpop.f32.mrb[0].mxu0
      %v1719 = vpop.f32.mrb[0].mxu0
      %v1720 = vadd.f32 %v1646, %v1719
      %v1721 = vpop.f32.mrb[0].mxu0
      %1722 = vmatprep.mubr.bf16.mxu0 0
      %1723 = vmatmul.mubr.bf16.gmra.mrb[0].mxu0 %v1659
      %v1724 = vpop.f32.mrb[0].mxu0
      %v1725 = vadd.f32 %v1646, %v1724
      %v1726 = vpop.f32.mrb[0].mxu0
      %v1727 = vpop.f32.mrb[0].mxu0
      %v1728 = vadd.f32 %v1646, %v1727
      %v1729 = vpop.f32.mrb[0].mxu0
      %1730 = vmatprep.mubr.bf16.mxu0 0
      %1731 = vmatmul.mubr.bf16.gmra.mrb[0].mxu0 %v1662
      %v1732 = vpop.f32.mrb[0].mxu0
      %v1733 = vadd.f32 %v1646, %v1732
      %v1734 = vpop.f32.mrb[0].mxu0
      %v1735 = vpop.f32.mrb[0].mxu0
      %v1736 = vadd.f32 %v1646, %v1735
      %v1737 = vpop.f32.mrb[0].mxu0
      %1738 = vmatprep.mubr.bf16.mxu0 0
      %1739 = vmatmul.mubr.bf16.gmra.mrb[0].mxu0 %v1665
      %v1740 = vpop.f32.mrb[0].mxu0
      %v1741 = vadd.f32 %v1646, %v1740
      %v1742 = vpop.f32.mrb[0].mxu0
      %v1743 = vpop.f32.mrb[0].mxu0
      %v1744 = vadd.f32 %v1646, %v1743
      %v1745 = vpop.f32.mrb[0].mxu0
      %1746 = vmatprep.mubr.bf16.mxu0 0
      %1747 = vmatmul.mubr.bf16.gmra.mrb[0].mxu0 %v1668
      %v1748 = vpop.f32.mrb[0].mxu0
      %v1749 = vadd.f32 %v1646, %v1748
      %v1750 = vpop.f32.mrb[0].mxu0
      %v1751 = vpop.f32.mrb[0].mxu0
      %v1752 = vadd.f32 %v1646, %v1751
      %v1753 = vpop.f32.mrb[0].mxu0
      %1754 = vmatprep.mubr.bf16.mxu0 0
      %1755 = vmatmul.mubr.bf16.gmra.mrb[0].mxu0 %v1671
      %v1756 = vpop.f32.mrb[0].mxu0
      %v1757 = vadd.f32 %v1646, %v1756
      %v1758 = vpop.f32.mrb[0].mxu0
      %v1759 = vpop.f32.mrb[0].mxu0
      %v1760 = vadd.f32 %v1646, %v1759
      %v1761 = vpop.f32.mrb[0].mxu0
      %1762 = vmatprep.mubr.bf16.mxu0 0
      %1763 = vmatmul.mubr.bf16.gmra.mrb[0].mxu0 %v1674
      %v1764 = vpop.f32.mrb[0].mxu0
      %v1765 = vadd.f32 %v1646, %v1764
      %v1766 = vpop.f32.mrb[0].mxu0
      %v1767 = vpop.f32.mrb[0].mxu0
      %v1768 = vadd.f32 %v1646, %v1767
      %v1769 = vpop.f32.mrb[0].mxu0
      %1770 = vmatprep.mubr.bf16.mxu0 0
      %1771 = vmatmul.mubr.bf16.gmra.mrb[0].mxu0 %v1677
      %v1772 = vpop.f32.mrb[0].mxu0
      %v1773 = vadd.f32 %v1646, %v1772
      %v1774 = vpop.f32.mrb[0].mxu0
      %v1775 = vpop.f32.mrb[0].mxu0
      %v1776 = vadd.f32 %v1646, %v1775
      %v1777 = vpop.f32.mrb[0].mxu0
      %1778 = vmatprep.mubr.bf16.mxu0 0
      %1779 = vmatmul.mubr.bf16.gmra.mrb[0].mxu0 %v1680
      %v1780 = vpop.f32.mrb[0].mxu0
      %v1781 = vadd.f32 %v1646, %v1780
      %v1782 = vpop.f32.mrb[0].mxu0
      %v1783 = vpop.f32.mrb[0].mxu0
      %v1784 = vadd.f32 %v1646, %v1783
      %v1785 = vpop.f32.mrb[0].mxu0
      %1786 = vdwg.mxu0
      %v1787 = vmax.f32 %v1717, 0.0
      %v1788 = vmax.f32 %v1720, 0.0
      %v1789 = vmax.f32 %v1725, 0.0
      %v1790 = vmax.f32 %v1728, 0.0
      %v1791 = vmax.f32 %v1733, 0.0
      %v1792 = vmax.f32 %v1736, 0.0
      %v1793 = vmax.f32 %v1741, 0.0
      %v1794 = vmax.f32 %v1744, 0.0
      %v1795 = vmax.f32 %v1749, 0.0
      %v1796 = vmax.f32 %v1752, 0.0
      %v1797 = vmax.f32 %v1757, 0.0
      %v1798 = vmax.f32 %v1760, 0.0
      %v1799 = vmax.f32 %v1765, 0.0
      %v1800 = vmax.f32 %v1768, 0.0
      %v1801 = vmax.f32 %v1773, 0.0
      %v1802 = vmax.f32 %v1776, 0.0
      %v1803 = vmax.f32 %v1781, 0.0
      %v1804 = vmax.f32 %v1784, 0.0
      %v1805 = vstv %s505
      %v1806 = vadd.s32 %v1805, 1
      %v1807 = vadd.s32 %v1805, 2
      %v1808 = vadd.s32 %v1805, 3
      %v1809 = vadd.s32 %v1805, 4
      %v1810 = vadd.s32 %v1805, 5
      %v1811 = vadd.s32 %v1805, 6
      %v1812 = vadd.s32 %v1805, 7
      %v1813 = vlaneseq
      %v1814 = vshrl.u32 %v1813, 7
      %v1815 = vadd.s32 %v1814, 8
      %v1816 = vadd.s32 %v1814, 16
      %vm1817 = vcmp.ge.s32.totalorder %v1805, 1
      %vm1818 = vcmp.ge.s32.totalorder %v1806, 1
      %vm1819 = vcmp.ge.s32.totalorder %v1807, 1
      %vm1820 = vcmp.ge.s32.totalorder %v1808, 1
      %vm1821 = vcmp.ge.s32.totalorder %v1809, 1
      %vm1822 = vcmp.ge.s32.totalorder %v1810, 1
      %vm1823 = vcmp.ge.s32.totalorder %v1811, 1
      %vm1824 = vcmp.ge.s32.totalorder %v1812, 1
      %vm1825 = vcmp.le.s32.totalorder %v1805, 16
      %vm1826 = vcmp.le.s32.totalorder %v1806, 16
      %vm1827 = vcmp.le.s32.totalorder %v1807, 16
      %vm1828 = vcmp.le.s32.totalorder %v1808, 16
      %vm1829 = vcmp.le.s32.totalorder %v1809, 16
      %vm1830 = vcmp.le.s32.totalorder %v1810, 16
      %vm1831 = vcmp.le.s32.totalorder %v1811, 16
      %vm1832 = vcmp.le.s32.totalorder %v1812, 16
      %vm1833 = vmand %vm1817, %vm1825
      %vm1834 = vmand %vm1818, %vm1826
      %vm1835 = vmand %vm1819, %vm1827
      %vm1836 = vmand %vm1820, %vm1828
      %vm1837 = vmand %vm1821, %vm1829
      %vm1838 = vmand %vm1822, %vm1830
      %vm1839 = vmand %vm1823, %vm1831
      %vm1840 = vmand %vm1824, %vm1832
      %vm1841 = vcmp.ge.s32.totalorder %v1814, 1
      %vm1842 = vcmp.ge.s32.totalorder %v1815, 1
      %vm1843 = vcmp.ge.s32.totalorder %v1816, 1
      %vm1844 = vmand %vm1833, %vm1841
      %vm1845 = vmand %vm1833, %vm1842
      %vm1846 = vmand %vm1833, %vm1843
      %vm1847 = vmand %vm1834, %vm1841
      %vm1848 = vmand %vm1834, %vm1842
      %vm1849 = vmand %vm1834, %vm1843
      %vm1850 = vmand %vm1835, %vm1841
      %vm1851 = vmand %vm1835, %vm1842
      %vm1852 = vmand %vm1835, %vm1843
      %vm1853 = vmand %vm1836, %vm1841
      %vm1854 = vmand %vm1836, %vm1842
      %vm1855 = vmand %vm1836, %vm1843
      %vm1856 = vmand %vm1837, %vm1841
      %vm1857 = vmand %vm1837, %vm1842
      %vm1858 = vmand %vm1837, %vm1843
      %vm1859 = vmand %vm1838, %vm1841
      %vm1860 = vmand %vm1838, %vm1842
      %vm1861 = vmand %vm1838, %vm1843
      %vm1862 = vmand %vm1839, %vm1841
      %vm1863 = vmand %vm1839, %vm1842
      %vm1864 = vmand %vm1839, %vm1843
      %vm1865 = vmand %vm1840, %vm1841
      %vm1866 = vmand %vm1840, %vm1842
      %vm1867 = vmand %vm1840, %vm1843
      %vm1868 = vcmp.le.s32.totalorder %v1814, 16
      %vm1869 = vcmp.le.s32.totalorder %v1815, 16
      %vm1870 = vcmp.le.s32.totalorder %v1816, 16
      %vm1871 = vmand %vm1844, %vm1868
      %vm1872 = vmand %vm1845, %vm1869
      %vm1873 = vmand %vm1846, %vm1870
      %vm1874 = vmand %vm1847, %vm1868
      %vm1875 = vmand %vm1848, %vm1869
      %vm1876 = vmand %vm1849, %vm1870
      %vm1877 = vmand %vm1850, %vm1868
      %vm1878 = vmand %vm1851, %vm1869
      %vm1879 = vmand %vm1852, %vm1870
      %vm1880 = vmand %vm1853, %vm1868
      %vm1881 = vmand %vm1854, %vm1869
      %vm1882 = vmand %vm1855, %vm1870
      %vm1883 = vmand %vm1856, %vm1868
      %vm1884 = vmand %vm1857, %vm1869
      %vm1885 = vmand %vm1858, %vm1870
      %vm1886 = vmand %vm1859, %vm1868
      %vm1887 = vmand %vm1860, %vm1869
      %vm1888 = vmand %vm1861, %vm1870
      %vm1889 = vmand %vm1862, %vm1868
      %vm1890 = vmand %vm1863, %vm1869
      %vm1891 = vmand %vm1864, %vm1870
      %vm1892 = vmand %vm1865, %vm1868
      %vm1893 = vmand %vm1866, %vm1869
      %vm1894 = vmand %vm1867, %vm1870
      %v1895 = vsel %vm1871, 1, 0
      %v1896 = vsel %vm1872, 1, 0
      %v1897 = vsel %vm1873, 1, 0
      %v1898 = vsel %vm1874, 1, 0
      %v1899 = vsel %vm1875, 1, 0
      %v1900 = vsel %vm1876, 1, 0
      %v1901 = vsel %vm1877, 1, 0
      %v1902 = vsel %vm1878, 1, 0
      %v1903 = vsel %vm1879, 1, 0
      %v1904 = vsel %vm1880, 1, 0
      %v1905 = vsel %vm1881, 1, 0
      %v1906 = vsel %vm1882, 1, 0
      %v1907 = vsel %vm1883, 1, 0
      %v1908 = vsel %vm1884, 1, 0
      %v1909 = vsel %vm1885, 1, 0
      %v1910 = vsel %vm1886, 1, 0
      %v1911 = vsel %vm1887, 1, 0
      %v1912 = vsel %vm1888, 1, 0
      %v1913 = vsel %vm1889, 1, 0
      %v1914 = vsel %vm1890, 1, 0
      %v1915 = vsel %vm1891, 1, 0
      %v1916 = vsel %vm1892, 1, 0
      %v1917 = vsel %vm1893, 1, 0
      %v1918 = vsel %vm1894, 1, 0
      %v1919 = vcvt.s32.f32 %v1895
      %v1920 = vcvt.s32.f32 %v1896
      %v1921 = vcvt.s32.f32 %v1897
      %v1922 = vcvt.s32.f32 %v1898
      %v1923 = vcvt.s32.f32 %v1899
      %v1924 = vcvt.s32.f32 %v1900
      %v1925 = vcvt.s32.f32 %v1901
      %v1926 = vcvt.s32.f32 %v1902
      %v1927 = vcvt.s32.f32 %v1903
      %v1928 = vcvt.s32.f32 %v1904
      %v1929 = vcvt.s32.f32 %v1905
      %v1930 = vcvt.s32.f32 %v1906
      %v1931 = vcvt.s32.f32 %v1907
      %v1932 = vcvt.s32.f32 %v1908
      %v1933 = vcvt.s32.f32 %v1909
      %v1934 = vcvt.s32.f32 %v1910
      %v1935 = vcvt.s32.f32 %v1911
      %v1936 = vcvt.s32.f32 %v1912
      %v1937 = vcvt.s32.f32 %v1913
      %v1938 = vcvt.s32.f32 %v1914
      %v1939 = vcvt.s32.f32 %v1915
      %v1940 = vcvt.s32.f32 %v1916
      %v1941 = vcvt.s32.f32 %v1917
      %v1942 = vcvt.s32.f32 %v1918
      %v1968 = vunpack.c.l.s4 269488144
      %v1969 = vunpack.c.0.s8 %v1968
      %v1970 = vlaneseq
      %v1971 = vshrl.u32 %v1970, 7
      %v1972 = vsub.s32 %v1969, %v1971
      %v1973 = vrot.slane %v1919, %v1972
      %v1975 = vunpack.c.l.s4 842150450
      %v1976 = vunpack.c.0.s8 %v1975
      %v1977 = vlaneseq
      %v1978 = vshrl.u32 %v1977, 7
      %v1979 = vsub.s32 %v1976, %v1978
      %v1980 = vrot.slane %v1919, %v1979
      %v1982 = vunpack.c.l.s4 1414812756
      %v1983 = vunpack.c.0.s8 %v1982
      %v1984 = vlaneseq
      %v1985 = vshrl.u32 %v1984, 7
      %v1986 = vsub.s32 %v1983, %v1985
      %v1987 = vrot.slane %v1919, %v1986
      %v1989 = vunpack.c.l.s4 1987475062
      %v1990 = vunpack.c.0.s8 %v1989
      %v1991 = vlaneseq
      %v1992 = vshrl.u32 %v1991, 7
      %v1993 = vsub.s32 %v1990, %v1992
      %v1994 = vrot.slane %v1919, %v1993
      %v1996 = vunpack.c.l.s4 269488144
      %v1997 = vunpack.c.0.s8 %v1996
      %v1998 = vlaneseq
      %v1999 = vshrl.u32 %v1998, 7
      %v2000 = vsub.s32 %v1997, %v1999
      %v2001 = vrot.slane %v1920, %v2000
      %v2003 = vunpack.c.l.s4 842150450
      %v2004 = vunpack.c.0.s8 %v2003
      %v2005 = vlaneseq
      %v2006 = vshrl.u32 %v2005, 7
      %v2007 = vsub.s32 %v2004, %v2006
      %v2008 = vrot.slane %v1920, %v2007
      %v2010 = vunpack.c.l.s4 1414812756
      %v2011 = vunpack.c.0.s8 %v2010
      %v2012 = vlaneseq
      %v2013 = vshrl.u32 %v2012, 7
      %v2014 = vsub.s32 %v2011, %v2013
      %v2015 = vrot.slane %v1920, %v2014
      %v2017 = vunpack.c.l.s4 1987475062
      %v2018 = vunpack.c.0.s8 %v2017
      %v2019 = vlaneseq
      %v2020 = vshrl.u32 %v2019, 7
      %v2021 = vsub.s32 %v2018, %v2020
      %v2022 = vrot.slane %v1920, %v2021
      %v2024 = vunpack.c.l.s4 269488144
      %v2025 = vunpack.c.0.s8 %v2024
      %v2026 = vlaneseq
      %v2027 = vshrl.u32 %v2026, 7
      %v2028 = vsub.s32 %v2025, %v2027
      %v2029 = vrot.slane %v1921, %v2028
      %v2031 = vunpack.c.l.s4 269488144
      %v2032 = vunpack.c.0.s8 %v2031
      %v2033 = vlaneseq
      %v2034 = vshrl.u32 %v2033, 7
      %v2035 = vsub.s32 %v2032, %v2034
      %v2036 = vrot.slane %v1922, %v2035
      %v2038 = vunpack.c.l.s4 842150450
      %v2039 = vunpack.c.0.s8 %v2038
      %v2040 = vlaneseq
      %v2041 = vshrl.u32 %v2040, 7
      %v2042 = vsub.s32 %v2039, %v2041
      %v2043 = vrot.slane %v1922, %v2042
      %v2045 = vunpack.c.l.s4 1414812756
      %v2046 = vunpack.c.0.s8 %v2045
      %v2047 = vlaneseq
      %v2048 = vshrl.u32 %v2047, 7
      %v2049 = vsub.s32 %v2046, %v2048
      %v2050 = vrot.slane %v1922, %v2049
      %v2052 = vunpack.c.l.s4 1987475062
      %v2053 = vunpack.c.0.s8 %v2052
      %v2054 = vlaneseq
      %v2055 = vshrl.u32 %v2054, 7
      %v2056 = vsub.s32 %v2053, %v2055
      %v2057 = vrot.slane %v1922, %v2056
      %v2059 = vunpack.c.l.s4 269488144
      %v2060 = vunpack.c.0.s8 %v2059
      %v2061 = vlaneseq
      %v2062 = vshrl.u32 %v2061, 7
      %v2063 = vsub.s32 %v2060, %v2062
      %v2064 = vrot.slane %v1923, %v2063
      %v2066 = vunpack.c.l.s4 842150450
      %v2067 = vunpack.c.0.s8 %v2066
      %v2068 = vlaneseq
      %v2069 = vshrl.u32 %v2068, 7
      %v2070 = vsub.s32 %v2067, %v2069
      %v2071 = vrot.slane %v1923, %v2070
      %v2073 = vunpack.c.l.s4 1414812756
      %v2074 = vunpack.c.0.s8 %v2073
      %v2075 = vlaneseq
      %v2076 = vshrl.u32 %v2075, 7
      %v2077 = vsub.s32 %v2074, %v2076
      %v2078 = vrot.slane %v1923, %v2077
      %v2080 = vunpack.c.l.s4 1987475062
      %v2081 = vunpack.c.0.s8 %v2080
      %v2082 = vlaneseq
      %v2083 = vshrl.u32 %v2082, 7
      %v2084 = vsub.s32 %v2081, %v2083
      %v2085 = vrot.slane %v1923, %v2084
      %v2087 = vunpack.c.l.s4 269488144
      %v2088 = vunpack.c.0.s8 %v2087
      %v2089 = vlaneseq
      %v2090 = vshrl.u32 %v2089, 7
      %v2091 = vsub.s32 %v2088, %v2090
      %v2092 = vrot.slane %v1924, %v2091
      %v2094 = vunpack.c.l.s4 269488144
      %v2095 = vunpack.c.0.s8 %v2094
      %v2096 = vlaneseq
      %v2097 = vshrl.u32 %v2096, 7
      %v2098 = vsub.s32 %v2095, %v2097
      %v2099 = vrot.slane %v1925, %v2098
      %v2101 = vunpack.c.l.s4 842150450
      %v2102 = vunpack.c.0.s8 %v2101
      %v2103 = vlaneseq
      %v2104 = vshrl.u32 %v2103, 7
      %v2105 = vsub.s32 %v2102, %v2104
      %v2106 = vrot.slane %v1925, %v2105
      %v2108 = vunpack.c.l.s4 1414812756
      %v2109 = vunpack.c.0.s8 %v2108
      %v2110 = vlaneseq
      %v2111 = vshrl.u32 %v2110, 7
      %v2112 = vsub.s32 %v2109, %v2111
      %v2113 = vrot.slane %v1925, %v2112
      %v2115 = vunpack.c.l.s4 1987475062
      %v2116 = vunpack.c.0.s8 %v2115
      %v2117 = vlaneseq
      %v2118 = vshrl.u32 %v2117, 7
      %v2119 = vsub.s32 %v2116, %v2118
      %v2120 = vrot.slane %v1925, %v2119
      %v2122 = vunpack.c.l.s4 269488144
      %v2123 = vunpack.c.0.s8 %v2122
      %v2124 = vlaneseq
      %v2125 = vshrl.u32 %v2124, 7
      %v2126 = vsub.s32 %v2123, %v2125
      %v2127 = vrot.slane %v1926, %v2126
      %v2129 = vunpack.c.l.s4 842150450
      %v2130 = vunpack.c.0.s8 %v2129
      %v2131 = vlaneseq
      %v2132 = vshrl.u32 %v2131, 7
      %v2133 = vsub.s32 %v2130, %v2132
      %v2134 = vrot.slane %v1926, %v2133
      %v2136 = vunpack.c.l.s4 1414812756
      %v2137 = vunpack.c.0.s8 %v2136
      %v2138 = vlaneseq
      %v2139 = vshrl.u32 %v2138, 7
      %v2140 = vsub.s32 %v2137, %v2139
      %v2141 = vrot.slane %v1926, %v2140
      %v2143 = vunpack.c.l.s4 1987475062
      %v2144 = vunpack.c.0.s8 %v2143
      %v2145 = vlaneseq
      %v2146 = vshrl.u32 %v2145, 7
      %v2147 = vsub.s32 %v2144, %v2146
      %v2148 = vrot.slane %v1926, %v2147
      %v2150 = vunpack.c.l.s4 269488144
      %v2151 = vunpack.c.0.s8 %v2150
      %v2152 = vlaneseq
      %v2153 = vshrl.u32 %v2152, 7
      %v2154 = vsub.s32 %v2151, %v2153
      %v2155 = vrot.slane %v1927, %v2154
      %v2157 = vunpack.c.l.s4 269488144
      %v2158 = vunpack.c.0.s8 %v2157
      %v2159 = vlaneseq
      %v2160 = vshrl.u32 %v2159, 7
      %v2161 = vsub.s32 %v2158, %v2160
      %v2162 = vrot.slane %v1928, %v2161
      %v2164 = vunpack.c.l.s4 842150450
      %v2165 = vunpack.c.0.s8 %v2164
      %v2166 = vlaneseq
      %v2167 = vshrl.u32 %v2166, 7
      %v2168 = vsub.s32 %v2165, %v2167
      %v2169 = vrot.slane %v1928, %v2168
      %v2171 = vunpack.c.l.s4 1414812756
      %v2172 = vunpack.c.0.s8 %v2171
      %v2173 = vlaneseq
      %v2174 = vshrl.u32 %v2173, 7
      %v2175 = vsub.s32 %v2172, %v2174
      %v2176 = vrot.slane %v1928, %v2175
      %v2178 = vunpack.c.l.s4 1987475062
      %v2179 = vunpack.c.0.s8 %v2178
      %v2180 = vlaneseq
      %v2181 = vshrl.u32 %v2180, 7
      %v2182 = vsub.s32 %v2179, %v2181
      %v2183 = vrot.slane %v1928, %v2182
      %v2185 = vunpack.c.l.s4 269488144
      %v2186 = vunpack.c.0.s8 %v2185
      %v2187 = vlaneseq
      %v2188 = vshrl.u32 %v2187, 7
      %v2189 = vsub.s32 %v2186, %v2188
      %v2190 = vrot.slane %v1929, %v2189
      %v2192 = vunpack.c.l.s4 842150450
      %v2193 = vunpack.c.0.s8 %v2192
      %v2194 = vlaneseq
      %v2195 = vshrl.u32 %v2194, 7
      %v2196 = vsub.s32 %v2193, %v2195
      %v2197 = vrot.slane %v1929, %v2196
      %v2199 = vunpack.c.l.s4 1414812756
      %v2200 = vunpack.c.0.s8 %v2199
      %v2201 = vlaneseq
      %v2202 = vshrl.u32 %v2201, 7
      %v2203 = vsub.s32 %v2200, %v2202
      %v2204 = vrot.slane %v1929, %v2203
      %v2206 = vunpack.c.l.s4 1987475062
      %v2207 = vunpack.c.0.s8 %v2206
      %v2208 = vlaneseq
      %v2209 = vshrl.u32 %v2208, 7
      %v2210 = vsub.s32 %v2207, %v2209
      %v2211 = vrot.slane %v1929, %v2210
      %v2213 = vunpack.c.l.s4 269488144
      %v2214 = vunpack.c.0.s8 %v2213
      %v2215 = vlaneseq
      %v2216 = vshrl.u32 %v2215, 7
      %v2217 = vsub.s32 %v2214, %v2216
      %v2218 = vrot.slane %v1930, %v2217
      %v2220 = vunpack.c.l.s4 269488144
      %v2221 = vunpack.c.0.s8 %v2220
      %v2222 = vlaneseq
      %v2223 = vshrl.u32 %v2222, 7
      %v2224 = vsub.s32 %v2221, %v2223
      %v2225 = vrot.slane %v1931, %v2224
      %v2227 = vunpack.c.l.s4 842150450
      %v2228 = vunpack.c.0.s8 %v2227
      %v2229 = vlaneseq
      %v2230 = vshrl.u32 %v2229, 7
      %v2231 = vsub.s32 %v2228, %v2230
      %v2232 = vrot.slane %v1931, %v2231
      %v2234 = vunpack.c.l.s4 1414812756
      %v2235 = vunpack.c.0.s8 %v2234
      %v2236 = vlaneseq
      %v2237 = vshrl.u32 %v2236, 7
      %v2238 = vsub.s32 %v2235, %v2237
      %v2239 = vrot.slane %v1931, %v2238
      %v2241 = vunpack.c.l.s4 1987475062
      %v2242 = vunpack.c.0.s8 %v2241
      %v2243 = vlaneseq
      %v2244 = vshrl.u32 %v2243, 7
      %v2245 = vsub.s32 %v2242, %v2244
      %v2246 = vrot.slane %v1931, %v2245
      %v2248 = vunpack.c.l.s4 269488144
      %v2249 = vunpack.c.0.s8 %v2248
      %v2250 = vlaneseq
      %v2251 = vshrl.u32 %v2250, 7
      %v2252 = vsub.s32 %v2249, %v2251
      %v2253 = vrot.slane %v1932, %v2252
      %v2255 = vunpack.c.l.s4 842150450
      %v2256 = vunpack.c.0.s8 %v2255
      %v2257 = vlaneseq
      %v2258 = vshrl.u32 %v2257, 7
      %v2259 = vsub.s32 %v2256, %v2258
      %v2260 = vrot.slane %v1932, %v2259
      %v2262 = vunpack.c.l.s4 1414812756
      %v2263 = vunpack.c.0.s8 %v2262
      %v2264 = vlaneseq
      %v2265 = vshrl.u32 %v2264, 7
      %v2266 = vsub.s32 %v2263, %v2265
      %v2267 = vrot.slane %v1932, %v2266
      %v2269 = vunpack.c.l.s4 1987475062
      %v2270 = vunpack.c.0.s8 %v2269
      %v2271 = vlaneseq
      %v2272 = vshrl.u32 %v2271, 7
      %v2273 = vsub.s32 %v2270, %v2272
      %v2274 = vrot.slane %v1932, %v2273
      %v2276 = vunpack.c.l.s4 269488144
      %v2277 = vunpack.c.0.s8 %v2276
      %v2278 = vlaneseq
      %v2279 = vshrl.u32 %v2278, 7
      %v2280 = vsub.s32 %v2277, %v2279
      %v2281 = vrot.slane %v1933, %v2280
      %v2283 = vunpack.c.l.s4 269488144
      %v2284 = vunpack.c.0.s8 %v2283
      %v2285 = vlaneseq
      %v2286 = vshrl.u32 %v2285, 7
      %v2287 = vsub.s32 %v2284, %v2286
      %v2288 = vrot.slane %v1934, %v2287
      %v2290 = vunpack.c.l.s4 842150450
      %v2291 = vunpack.c.0.s8 %v2290
      %v2292 = vlaneseq
      %v2293 = vshrl.u32 %v2292, 7
      %v2294 = vsub.s32 %v2291, %v2293
      %v2295 = vrot.slane %v1934, %v2294
      %v2297 = vunpack.c.l.s4 1414812756
      %v2298 = vunpack.c.0.s8 %v2297
      %v2299 = vlaneseq
      %v2300 = vshrl.u32 %v2299, 7
      %v2301 = vsub.s32 %v2298, %v2300
      %v2302 = vrot.slane %v1934, %v2301
      %v2304 = vunpack.c.l.s4 1987475062
      %v2305 = vunpack.c.0.s8 %v2304
      %v2306 = vlaneseq
      %v2307 = vshrl.u32 %v2306, 7
      %v2308 = vsub.s32 %v2305, %v2307
      %v2309 = vrot.slane %v1934, %v2308
      %v2311 = vunpack.c.l.s4 269488144
      %v2312 = vunpack.c.0.s8 %v2311
      %v2313 = vlaneseq
      %v2314 = vshrl.u32 %v2313, 7
      %v2315 = vsub.s32 %v2312, %v2314
      %v2316 = vrot.slane %v1935, %v2315
      %v2318 = vunpack.c.l.s4 842150450
      %v2319 = vunpack.c.0.s8 %v2318
      %v2320 = vlaneseq
      %v2321 = vshrl.u32 %v2320, 7
      %v2322 = vsub.s32 %v2319, %v2321
      %v2323 = vrot.slane %v1935, %v2322
      %v2325 = vunpack.c.l.s4 1414812756
      %v2326 = vunpack.c.0.s8 %v2325
      %v2327 = vlaneseq
      %v2328 = vshrl.u32 %v2327, 7
      %v2329 = vsub.s32 %v2326, %v2328
      %v2330 = vrot.slane %v1935, %v2329
      %v2332 = vunpack.c.l.s4 1987475062
      %v2333 = vunpack.c.0.s8 %v2332
      %v2334 = vlaneseq
      %v2335 = vshrl.u32 %v2334, 7
      %v2336 = vsub.s32 %v2333, %v2335
      %v2337 = vrot.slane %v1935, %v2336
      %v2339 = vunpack.c.l.s4 269488144
      %v2340 = vunpack.c.0.s8 %v2339
      %v2341 = vlaneseq
      %v2342 = vshrl.u32 %v2341, 7
      %v2343 = vsub.s32 %v2340, %v2342
      %v2344 = vrot.slane %v1936, %v2343
      %v2346 = vunpack.c.l.s4 269488144
      %v2347 = vunpack.c.0.s8 %v2346
      %v2348 = vlaneseq
      %v2349 = vshrl.u32 %v2348, 7
      %v2350 = vsub.s32 %v2347, %v2349
      %v2351 = vrot.slane %v1937, %v2350
      %v2353 = vunpack.c.l.s4 842150450
      %v2354 = vunpack.c.0.s8 %v2353
      %v2355 = vlaneseq
      %v2356 = vshrl.u32 %v2355, 7
      %v2357 = vsub.s32 %v2354, %v2356
      %v2358 = vrot.slane %v1937, %v2357
      %v2360 = vunpack.c.l.s4 1414812756
      %v2361 = vunpack.c.0.s8 %v2360
      %v2362 = vlaneseq
      %v2363 = vshrl.u32 %v2362, 7
      %v2364 = vsub.s32 %v2361, %v2363
      %v2365 = vrot.slane %v1937, %v2364
      %v2367 = vunpack.c.l.s4 1987475062
      %v2368 = vunpack.c.0.s8 %v2367
      %v2369 = vlaneseq
      %v2370 = vshrl.u32 %v2369, 7
      %v2371 = vsub.s32 %v2368, %v2370
      %v2372 = vrot.slane %v1937, %v2371
      %v2374 = vunpack.c.l.s4 269488144
      %v2375 = vunpack.c.0.s8 %v2374
      %v2376 = vlaneseq
      %v2377 = vshrl.u32 %v2376, 7
      %v2378 = vsub.s32 %v2375, %v2377
      %v2379 = vrot.slane %v1938, %v2378
      %v2381 = vunpack.c.l.s4 842150450
      %v2382 = vunpack.c.0.s8 %v2381
      %v2383 = vlaneseq
      %v2384 = vshrl.u32 %v2383, 7
      %v2385 = vsub.s32 %v2382, %v2384
      %v2386 = vrot.slane %v1938, %v2385
      %v2388 = vunpack.c.l.s4 1414812756
      %v2389 = vunpack.c.0.s8 %v2388
      %v2390 = vlaneseq
      %v2391 = vshrl.u32 %v2390, 7
      %v2392 = vsub.s32 %v2389, %v2391
      %v2393 = vrot.slane %v1938, %v2392
      %v2395 = vunpack.c.l.s4 1987475062
      %v2396 = vunpack.c.0.s8 %v2395
      %v2397 = vlaneseq
      %v2398 = vshrl.u32 %v2397, 7
      %v2399 = vsub.s32 %v2396, %v2398
      %v2400 = vrot.slane %v1938, %v2399
      %v2402 = vunpack.c.l.s4 269488144
      %v2403 = vunpack.c.0.s8 %v2402
      %v2404 = vlaneseq
      %v2405 = vshrl.u32 %v2404, 7
      %v2406 = vsub.s32 %v2403, %v2405
      %v2407 = vrot.slane %v1939, %v2406
      %v2409 = vunpack.c.l.s4 269488144
      %v2410 = vunpack.c.0.s8 %v2409
      %v2411 = vlaneseq
      %v2412 = vshrl.u32 %v2411, 7
      %v2413 = vsub.s32 %v2410, %v2412
      %v2414 = vrot.slane %v1940, %v2413
      %v2416 = vunpack.c.l.s4 842150450
      %v2417 = vunpack.c.0.s8 %v2416
      %v2418 = vlaneseq
      %v2419 = vshrl.u32 %v2418, 7
      %v2420 = vsub.s32 %v2417, %v2419
      %v2421 = vrot.slane %v1940, %v2420
      %v2423 = vunpack.c.l.s4 1414812756
      %v2424 = vunpack.c.0.s8 %v2423
      %v2425 = vlaneseq
      %v2426 = vshrl.u32 %v2425, 7
      %v2427 = vsub.s32 %v2424, %v2426
      %v2428 = vrot.slane %v1940, %v2427
      %v2430 = vunpack.c.l.s4 1987475062
      %v2431 = vunpack.c.0.s8 %v2430
      %v2432 = vlaneseq
      %v2433 = vshrl.u32 %v2432, 7
      %v2434 = vsub.s32 %v2431, %v2433
      %v2435 = vrot.slane %v1940, %v2434
      %v2437 = vunpack.c.l.s4 269488144
      %v2438 = vunpack.c.0.s8 %v2437
      %v2439 = vlaneseq
      %v2440 = vshrl.u32 %v2439, 7
      %v2441 = vsub.s32 %v2438, %v2440
      %v2442 = vrot.slane %v1941, %v2441
      %v2444 = vunpack.c.l.s4 842150450
      %v2445 = vunpack.c.0.s8 %v2444
      %v2446 = vlaneseq
      %v2447 = vshrl.u32 %v2446, 7
      %v2448 = vsub.s32 %v2445, %v2447
      %v2449 = vrot.slane %v1941, %v2448
      %v2451 = vunpack.c.l.s4 1414812756
      %v2452 = vunpack.c.0.s8 %v2451
      %v2453 = vlaneseq
      %v2454 = vshrl.u32 %v2453, 7
      %v2455 = vsub.s32 %v2452, %v2454
      %v2456 = vrot.slane %v1941, %v2455
      %v2458 = vunpack.c.l.s4 1987475062
      %v2459 = vunpack.c.0.s8 %v2458
      %v2460 = vlaneseq
      %v2461 = vshrl.u32 %v2460, 7
      %v2462 = vsub.s32 %v2459, %v2461
      %v2463 = vrot.slane %v1941, %v2462
      %v2465 = vunpack.c.l.s4 269488144
      %v2466 = vunpack.c.0.s8 %v2465
      %v2467 = vlaneseq
      %v2468 = vshrl.u32 %v2467, 7
      %v2469 = vsub.s32 %v2466, %v2468
      %v2470 = vrot.slane %v1942, %v2469
      %v2471 = vcombine.low %v1973, %v1980
      %v2472 = vcombine.low %v1987, %v1994
      %v2474 = vunpack.c.l.s4 1983009808
      %v2475 = vunpack.c.0.s8 %v2474
      %v2476 = vlaneseq
      %v2477 = vshrl.u32 %v2476, 7
      %v2478 = vsub.s32 %v2475, %v2477
      %v2479 = vrot.slane %v2471, %v2478
      %v2481 = vunpack.c.l.s4 1983009808
      %v2482 = vunpack.c.0.s8 %v2481
      %v2483 = vlaneseq
      %v2484 = vshrl.u32 %v2483, 7
      %v2485 = vsub.s32 %v2482, %v2484
      %v2486 = vrot.slane %v2472, %v2485
      %v2487 = vcombine.low %v2479, %v2486
      %v2488 = vcombine.low %v2001, %v2008
      %v2489 = vcombine.low %v2015, %v2022
      %v2491 = vunpack.c.l.s4 1983009808
      %v2492 = vunpack.c.0.s8 %v2491
      %v2493 = vlaneseq
      %v2494 = vshrl.u32 %v2493, 7
      %v2495 = vsub.s32 %v2492, %v2494
      %v2496 = vrot.slane %v2488, %v2495
      %v2498 = vunpack.c.l.s4 1983009808
      %v2499 = vunpack.c.0.s8 %v2498
      %v2500 = vlaneseq
      %v2501 = vshrl.u32 %v2500, 7
      %v2502 = vsub.s32 %v2499, %v2501
      %v2503 = vrot.slane %v2489, %v2502
      %v2504 = vcombine.low %v2496, %v2503
      %v2505 = vcombine.low %v2029, %v2036
      %v2506 = vcombine.low %v2043, %v2050
      %v2508 = vunpack.c.l.s4 1983009808
      %v2509 = vunpack.c.0.s8 %v2508
      %v2510 = vlaneseq
      %v2511 = vshrl.u32 %v2510, 7
      %v2512 = vsub.s32 %v2509, %v2511
      %v2513 = vrot.slane %v2505, %v2512
      %v2515 = vunpack.c.l.s4 1983009808
      %v2516 = vunpack.c.0.s8 %v2515
      %v2517 = vlaneseq
      %v2518 = vshrl.u32 %v2517, 7
      %v2519 = vsub.s32 %v2516, %v2518
      %v2520 = vrot.slane %v2506, %v2519
      %v2521 = vcombine.low %v2513, %v2520
      %v2522 = vcombine.low %v2057, %v2064
      %v2523 = vcombine.low %v2071, %v2078
      %v2525 = vunpack.c.l.s4 1983009808
      %v2526 = vunpack.c.0.s8 %v2525
      %v2527 = vlaneseq
      %v2528 = vshrl.u32 %v2527, 7
      %v2529 = vsub.s32 %v2526, %v2528
      %v2530 = vrot.slane %v2522, %v2529
      %v2532 = vunpack.c.l.s4 1983009808
      %v2533 = vunpack.c.0.s8 %v2532
      %v2534 = vlaneseq
      %v2535 = vshrl.u32 %v2534, 7
      %v2536 = vsub.s32 %v2533, %v2535
      %v2537 = vrot.slane %v2523, %v2536
      %v2538 = vcombine.low %v2530, %v2537
      %v2539 = vcombine.low %v2085, %v2092
      %v2540 = vcombine.low %v2099, %v2106
      %v2542 = vunpack.c.l.s4 1983009808
      %v2543 = vunpack.c.0.s8 %v2542
      %v2544 = vlaneseq
      %v2545 = vshrl.u32 %v2544, 7
      %v2546 = vsub.s32 %v2543, %v2545
      %v2547 = vrot.slane %v2539, %v2546
      %v2549 = vunpack.c.l.s4 1983009808
      %v2550 = vunpack.c.0.s8 %v2549
      %v2551 = vlaneseq
      %v2552 = vshrl.u32 %v2551, 7
      %v2553 = vsub.s32 %v2550, %v2552
      %v2554 = vrot.slane %v2540, %v2553
      %v2555 = vcombine.low %v2547, %v2554
      %v2556 = vcombine.low %v2113, %v2120
      %v2557 = vcombine.low %v2127, %v2134
      %v2559 = vunpack.c.l.s4 1983009808
      %v2560 = vunpack.c.0.s8 %v2559
      %v2561 = vlaneseq
      %v2562 = vshrl.u32 %v2561, 7
      %v2563 = vsub.s32 %v2560, %v2562
      %v2564 = vrot.slane %v2556, %v2563
      %v2566 = vunpack.c.l.s4 1983009808
      %v2567 = vunpack.c.0.s8 %v2566
      %v2568 = vlaneseq
      %v2569 = vshrl.u32 %v2568, 7
      %v2570 = vsub.s32 %v2567, %v2569
      %v2571 = vrot.slane %v2557, %v2570
      %v2572 = vcombine.low %v2564, %v2571
      %v2573 = vcombine.low %v2141, %v2148
      %v2574 = vcombine.low %v2155, %v2162
      %v2576 = vunpack.c.l.s4 1983009808
      %v2577 = vunpack.c.0.s8 %v2576
      %v2578 = vlaneseq
      %v2579 = vshrl.u32 %v2578, 7
      %v2580 = vsub.s32 %v2577, %v2579
      %v2581 = vrot.slane %v2573, %v2580
      %v2583 = vunpack.c.l.s4 1983009808
      %v2584 = vunpack.c.0.s8 %v2583
      %v2585 = vlaneseq
      %v2586 = vshrl.u32 %v2585, 7
      %v2587 = vsub.s32 %v2584, %v2586
      %v2588 = vrot.slane %v2574, %v2587
      %v2589 = vcombine.low %v2581, %v2588
      %v2590 = vcombine.low %v2169, %v2176
      %v2591 = vcombine.low %v2183, %v2190
      %v2593 = vunpack.c.l.s4 1983009808
      %v2594 = vunpack.c.0.s8 %v2593
      %v2595 = vlaneseq
      %v2596 = vshrl.u32 %v2595, 7
      %v2597 = vsub.s32 %v2594, %v2596
      %v2598 = vrot.slane %v2590, %v2597
      %v2600 = vunpack.c.l.s4 1983009808
      %v2601 = vunpack.c.0.s8 %v2600
      %v2602 = vlaneseq
      %v2603 = vshrl.u32 %v2602, 7
      %v2604 = vsub.s32 %v2601, %v2603
      %v2605 = vrot.slane %v2591, %v2604
      %v2606 = vcombine.low %v2598, %v2605
      %v2607 = vcombine.low %v2197, %v2204
      %v2608 = vcombine.low %v2211, %v2218
      %v2610 = vunpack.c.l.s4 1983009808
      %v2611 = vunpack.c.0.s8 %v2610
      %v2612 = vlaneseq
      %v2613 = vshrl.u32 %v2612, 7
      %v2614 = vsub.s32 %v2611, %v2613
      %v2615 = vrot.slane %v2607, %v2614
      %v2617 = vunpack.c.l.s4 1983009808
      %v2618 = vunpack.c.0.s8 %v2617
      %v2619 = vlaneseq
      %v2620 = vshrl.u32 %v2619, 7
      %v2621 = vsub.s32 %v2618, %v2620
      %v2622 = vrot.slane %v2608, %v2621
      %v2623 = vcombine.low %v2615, %v2622
      %v2624 = vcombine.low %v2225, %v2232
      %v2625 = vcombine.low %v2239, %v2246
      %v2627 = vunpack.c.l.s4 1983009808
      %v2628 = vunpack.c.0.s8 %v2627
      %v2629 = vlaneseq
      %v2630 = vshrl.u32 %v2629, 7
      %v2631 = vsub.s32 %v2628, %v2630
      %v2632 = vrot.slane %v2624, %v2631
      %v2634 = vunpack.c.l.s4 1983009808
      %v2635 = vunpack.c.0.s8 %v2634
      %v2636 = vlaneseq
      %v2637 = vshrl.u32 %v2636, 7
      %v2638 = vsub.s32 %v2635, %v2637
      %v2639 = vrot.slane %v2625, %v2638
      %v2640 = vcombine.low %v2632, %v2639
      %v2641 = vcombine.low %v2253, %v2260
      %v2642 = vcombine.low %v2267, %v2274
      %v2644 = vunpack.c.l.s4 1983009808
      %v2645 = vunpack.c.0.s8 %v2644
      %v2646 = vlaneseq
      %v2647 = vshrl.u32 %v2646, 7
      %v2648 = vsub.s32 %v2645, %v2647
      %v2649 = vrot.slane %v2641, %v2648
      %v2651 = vunpack.c.l.s4 1983009808
      %v2652 = vunpack.c.0.s8 %v2651
      %v2653 = vlaneseq
      %v2654 = vshrl.u32 %v2653, 7
      %v2655 = vsub.s32 %v2652, %v2654
      %v2656 = vrot.slane %v2642, %v2655
      %v2657 = vcombine.low %v2649, %v2656
      %v2658 = vcombine.low %v2281, %v2288
      %v2659 = vcombine.low %v2295, %v2302
      %v2661 = vunpack.c.l.s4 1983009808
      %v2662 = vunpack.c.0.s8 %v2661
      %v2663 = vlaneseq
      %v2664 = vshrl.u32 %v2663, 7
      %v2665 = vsub.s32 %v2662, %v2664
      %v2666 = vrot.slane %v2658, %v2665
      %v2668 = vunpack.c.l.s4 1983009808
      %v2669 = vunpack.c.0.s8 %v2668
      %v2670 = vlaneseq
      %v2671 = vshrl.u32 %v2670, 7
      %v2672 = vsub.s32 %v2669, %v2671
      %v2673 = vrot.slane %v2659, %v2672
      %v2674 = vcombine.low %v2666, %v2673
      %v2675 = vcombine.low %v2309, %v2316
      %v2676 = vcombine.low %v2323, %v2330
      %v2678 = vunpack.c.l.s4 1983009808
      %v2679 = vunpack.c.0.s8 %v2678
      %v2680 = vlaneseq
      %v2681 = vshrl.u32 %v2680, 7
      %v2682 = vsub.s32 %v2679, %v2681
      %v2683 = vrot.slane %v2675, %v2682
      %v2685 = vunpack.c.l.s4 1983009808
      %v2686 = vunpack.c.0.s8 %v2685
      %v2687 = vlaneseq
      %v2688 = vshrl.u32 %v2687, 7
      %v2689 = vsub.s32 %v2686, %v2688
      %v2690 = vrot.slane %v2676, %v2689
      %v2691 = vcombine.low %v2683, %v2690
      %v2692 = vcombine.low %v2337, %v2344
      %v2693 = vcombine.low %v2351, %v2358
      %v2695 = vunpack.c.l.s4 1983009808
      %v2696 = vunpack.c.0.s8 %v2695
      %v2697 = vlaneseq
      %v2698 = vshrl.u32 %v2697, 7
      %v2699 = vsub.s32 %v2696, %v2698
      %v2700 = vrot.slane %v2692, %v2699
      %v2702 = vunpack.c.l.s4 1983009808
      %v2703 = vunpack.c.0.s8 %v2702
      %v2704 = vlaneseq
      %v2705 = vshrl.u32 %v2704, 7
      %v2706 = vsub.s32 %v2703, %v2705
      %v2707 = vrot.slane %v2693, %v2706
      %v2708 = vcombine.low %v2700, %v2707
      %v2709 = vcombine.low %v2365, %v2372
      %v2710 = vcombine.low %v2379, %v2386
      %v2712 = vunpack.c.l.s4 1983009808
      %v2713 = vunpack.c.0.s8 %v2712
      %v2714 = vlaneseq
      %v2715 = vshrl.u32 %v2714, 7
      %v2716 = vsub.s32 %v2713, %v2715
      %v2717 = vrot.slane %v2709, %v2716
      %v2719 = vunpack.c.l.s4 1983009808
      %v2720 = vunpack.c.0.s8 %v2719
      %v2721 = vlaneseq
      %v2722 = vshrl.u32 %v2721, 7
      %v2723 = vsub.s32 %v2720, %v2722
      %v2724 = vrot.slane %v2710, %v2723
      %v2725 = vcombine.low %v2717, %v2724
      %v2726 = vcombine.low %v2393, %v2400
      %v2727 = vcombine.low %v2407, %v2414
      %v2729 = vunpack.c.l.s4 1983009808
      %v2730 = vunpack.c.0.s8 %v2729
      %v2731 = vlaneseq
      %v2732 = vshrl.u32 %v2731, 7
      %v2733 = vsub.s32 %v2730, %v2732
      %v2734 = vrot.slane %v2726, %v2733
      %v2736 = vunpack.c.l.s4 1983009808
      %v2737 = vunpack.c.0.s8 %v2736
      %v2738 = vlaneseq
      %v2739 = vshrl.u32 %v2738, 7
      %v2740 = vsub.s32 %v2737, %v2739
      %v2741 = vrot.slane %v2727, %v2740
      %v2742 = vcombine.low %v2734, %v2741
      %v2743 = vcombine.low %v2421, %v2428
      %v2744 = vcombine.low %v2435, %v2442
      %v2746 = vunpack.c.l.s4 1983009808
      %v2747 = vunpack.c.0.s8 %v2746
      %v2748 = vlaneseq
      %v2749 = vshrl.u32 %v2748, 7
      %v2750 = vsub.s32 %v2747, %v2749
      %v2751 = vrot.slane %v2743, %v2750
      %v2753 = vunpack.c.l.s4 1983009808
      %v2754 = vunpack.c.0.s8 %v2753
      %v2755 = vlaneseq
      %v2756 = vshrl.u32 %v2755, 7
      %v2757 = vsub.s32 %v2754, %v2756
      %v2758 = vrot.slane %v2744, %v2757
      %v2759 = vcombine.low %v2751, %v2758
      %v2760 = vcombine.low %v2449, %v2456
      %v2761 = vcombine.low %v2463, %v2470
      %v2763 = vunpack.c.l.s4 1983009808
      %v2764 = vunpack.c.0.s8 %v2763
      %v2765 = vlaneseq
      %v2766 = vshrl.u32 %v2765, 7
      %v2767 = vsub.s32 %v2764, %v2766
      %v2768 = vrot.slane %v2760, %v2767
      %v2770 = vunpack.c.l.s4 1983009808
      %v2771 = vunpack.c.0.s8 %v2770
      %v2772 = vlaneseq
      %v2773 = vshrl.u32 %v2772, 7
      %v2774 = vsub.s32 %v2771, %v2773
      %v2775 = vrot.slane %v2761, %v2774
      %v2776 = vcombine.low %v2768, %v2775
      %v2795 = vmul.f32 %v1787, %v2487
      %v2796 = vmul.f32 %v1788, %v2504
      %v2797 = vmul.f32 %v1789, %v2521
      %v2798 = vmul.f32 %v1790, %v2538
      %v2799 = vmul.f32 %v1791, %v2555
      %v2800 = vmul.f32 %v1792, %v2572
      %v2801 = vmul.f32 %v1793, %v2589
      %v2802 = vmul.f32 %v1794, %v2606
      %v2803 = vmul.f32 %v1795, %v2623
      %v2804 = vmul.f32 %v1796, %v2640
      %v2805 = vmul.f32 %v1797, %v2657
      %v2806 = vmul.f32 %v1798, %v2674
      %v2807 = vmul.f32 %v1799, %v2691
      %v2808 = vmul.f32 %v1800, %v2708
      %v2809 = vmul.f32 %v1801, %v2725
      %v2810 = vmul.f32 %v1802, %v2742
      %v2811 = vmul.f32 %v1803, %v2759
      %v2812 = vmul.f32 %v1804, %v2776
      %v2813 = vpack.c.bf16 %v2796, %v2795
      %v2814 = vpack.c.bf16 %v2798, %v2797
      %v2815 = vpack.c.bf16 %v2800, %v2799
      %v2816 = vpack.c.bf16 %v2802, %v2801
      %v2817 = vpack.c.bf16 %v2804, %v2803
      %v2818 = vpack.c.bf16 %v2806, %v2805
      %v2819 = vpack.c.bf16 %v2808, %v2807
      %v2820 = vpack.c.bf16 %v2810, %v2809
      %v2821 = vpack.c.bf16 %v2812, %v2811
      %2822 = vst.msk [vmem:[#allocation2] sm:$0xff] %vm1654, %v1612
      %2823 = vst.msk [vmem:[#allocation2 + $0x8] sm:$0xff] %vm1654, %v1613
      %vm2824 = vcmask 123904
      %2825 = vst.msk [vmem:[#allocation2 + $0x10] sm:$0x3] %vm2824, %v1614
      %v2828 = vunpack.c.l.b16 %v2813
      %v2829 = vunpack.c.h.b16 %v2813
      %v2830 = vunpack.c.l.b16 %v2814
      %v2831 = vpack.c.b16 %v2828, %v2828
      %v2832 = vpack.c.b16 %v2829, %v2829
      %v2833 = vpack.c.b16 %v2830, %v2830
      %vm2837 = vcmask 27648
      %2838 = vst.msk [vmem:[#allocation3] sm:$0xf] %vm2837, %v2831
      %2839 = vst.msk [vmem:[#allocation3 + $0x4] sm:$0xf] %vm2837, %v2832
      %vm2840 = vcmask 24576
      %2841 = vst.msk [vmem:[#allocation3 + $0x8] sm:$0x1] %vm2840, %v2833
      %s2842 = scalar_lea.vmem [#allocation2], 24
      %vm2843 = vcmask 130050
      %2844 = vst.msk [vmem:[%s2842 - $0x2] sm:$0xfc] %vm2843, %v1614
      %2845 = vst.msk [vmem:[%s2842 + $0x6] sm:$0xff] %vm1654, %v1615
      %vm2846 = vcmask 125952
      %2847 = vst.msk [vmem:[%s2842 + $0xe] sm:$0xf] %vm2846, %v1616
      %v2849 = vunpack.c.h.b16 %v2814
      %v2850 = vunpack.c.l.b16 %v2815
      %v2851 = vpack.c.b16 %v2849, %v2849
      %v2852 = vpack.c.b16 %v2850, %v2850
      %vm2853 = vcmask 1042432
      %vm2854 = vcmask 1046532
      %vm2855 = vmor %vm2853, %vm2854
      %v2856 = vrot.slane %v2833, 5
      %v2857 = vrot.slane %v2856, 4
      %v2858 = vrot.slane %v2851, 5
      %v2859 = vsel %vm2855, %v2857, %v2858
      %v2860 = vrot.slane %v2858, 4
      %v2861 = vrot.slane %v2852, 5
      %v2862 = vsel %vm2855, %v2860, %v2861
      %v2863 = vrot.slane %v2861, 4
      %s2867 = scalar_lea.vmem [#allocation3], 12
      %2868 = vst.msk [vmem:[%s2867] sm:$0xf] %vm2837, %v2859
      %2869 = vst.msk [vmem:[%s2867 + $0x4] sm:$0xf] %vm2837, %v2862
      %2870 = vst.msk [vmem:[%s2867 + $0x8] sm:$0x1] %vm2840, %v2863
      %s2871 = scalar_lea.vmem [#allocation2], 48
      %vm2872 = vcmask 130052
      %2873 = vst.msk [vmem:[%s2871 - $0x4] sm:$0xf0] %vm2872, %v1616
      %2874 = vst.msk [vmem:[%s2871 + $0x4] sm:$0xff] %vm1654, %v1617
      %vm2875 = vcmask 128000
      %2876 = vst.msk [vmem:[%s2871 + $0xc] sm:$0x3f] %vm2875, %v1618
      %v2878 = vunpack.c.h.b16 %v2815
      %v2879 = vunpack.c.l.b16 %v2816
      %v2880 = vpack.c.b16 %v2878, %v2878
      %v2881 = vpack.c.b16 %v2879, %v2879
      %vm2882 = vcmask 1041408
      %vm2883 = vcmask 1045508
      %vm2884 = vmor %vm2882, %vm2883
      %v2885 = vrot.slane %v2852, 6
      %v2886 = vrot.slane %v2885, 4
      %v2887 = vrot.slane %v2880, 6
      %v2888 = vsel %vm2884, %v2886, %v2887
      %v2889 = vrot.slane %v2887, 4
      %v2890 = vrot.slane %v2881, 6
      %v2891 = vsel %vm2884, %v2889, %v2890
      %v2892 = vrot.slane %v2890, 4
      %s2896 = scalar_lea.vmem [#allocation3], 24
      %2897 = vst.msk [vmem:[%s2896] sm:$0xf] %vm2837, %v2888
      %2898 = vst.msk [vmem:[%s2896 + $0x4] sm:$0xf] %vm2837, %v2891
      %2899 = vst.msk [vmem:[%s2896 + $0x8] sm:$0x1] %vm2840, %v2892
      %s2900 = scalar_lea.vmem [#allocation2], 72
      %vm2901 = vcmask 130054
      %2902 = vst.msk [vmem:[%s2900 - $0x6] sm:$0xc0] %vm2901, %v1618
      %2903 = vst.msk [vmem:[%s2900 + $0x2] sm:$0xff] %vm1654, %v1619
      %2904 = vst.msk [vmem:[%s2900 + $0xa] sm:$0xff] %vm1654, %v1620
      %v2906 = vunpack.c.h.b16 %v2816
      %v2907 = vunpack.c.l.b16 %v2817
      %v2908 = vpack.c.b16 %v2906, %v2906
      %v2909 = vpack.c.b16 %v2907, %v2907
      %vm2910 = vcmask 1040384
      %vm2911 = vcmask 1044484
      %vm2912 = vmor %vm2910, %vm2911
      %v2913 = vrot.slane %v2881, 7
      %v2914 = vrot.slane %v2913, 4
      %v2915 = vrot.slane %v2908, 7
      %v2916 = vsel %vm2912, %v2914, %v2915
      %v2917 = vrot.slane %v2915, 4
      %v2918 = vrot.slane %v2909, 7
      %v2919 = vsel %vm2912, %v2917, %v2918
      %v2920 = vrot.slane %v2918, 4
      %s2924 = scalar_lea.vmem [#allocation3], 36
      %2925 = vst.msk [vmem:[%s2924] sm:$0xf] %vm2837, %v2916
      %2926 = vst.msk [vmem:[%s2924 + $0x4] sm:$0xf] %vm2837, %v2919
      %2927 = vst.msk [vmem:[%s2924 + $0x8] sm:$0x1] %vm2840, %v2920
      %s2928 = scalar_lea.vmem [#allocation2], 96
      %2929 = vst.msk [vmem:[%s2928] sm:$0xff] %vm1654, %v1621
      %2930 = vst.msk [vmem:[%s2928 + $0x8] sm:$0xff] %vm1654, %v1622
      %2931 = vst.msk [vmem:[%s2928 + $0x10] sm:$0x3] %vm2824, %v1623
      %v2933 = vunpack.c.h.b16 %v2817
      %v2934 = vunpack.c.l.b16 %v2818
      %v2935 = vunpack.c.h.b16 %v2818
      %v2936 = vpack.c.b16 %v2933, %v2933
      %v2937 = vpack.c.b16 %v2934, %v2934
      %v2938 = vpack.c.b16 %v2935, %v2935
      %s2942 = scalar_lea.vmem [#allocation3], 48
      %2943 = vst.msk [vmem:[%s2942] sm:$0xf] %vm2837, %v2936
      %2944 = vst.msk [vmem:[%s2942 + $0x4] sm:$0xf] %vm2837, %v2937
      %2945 = vst.msk [vmem:[%s2942 + $0x8] sm:$0x1] %vm2840, %v2938
      %s2946 = scalar_lea.vmem [#allocation2], 120
      %2947 = vst.msk [vmem:[%s2946 - $0x2] sm:$0xfc] %vm2843, %v1623
      %2948 = vst.msk [vmem:[%s2946 + $0x6] sm:$0xff] %vm1654, %v1624
      %2949 = vst.msk [vmem:[%s2946 + $0xe] sm:$0xf] %vm2846, %v1625
      %v2951 = vunpack.c.l.b16 %v2819
      %v2952 = vunpack.c.h.b16 %v2819
      %v2953 = vpack.c.b16 %v2951, %v2951
      %v2954 = vpack.c.b16 %v2952, %v2952
      %v2955 = vrot.slane %v2938, 5
      %v2956 = vrot.slane %v2955, 4
      %v2957 = vrot.slane %v2953, 5
      %v2958 = vsel %vm2855, %v2956, %v2957
      %v2959 = vrot.slane %v2957, 4
      %v2960 = vrot.slane %v2954, 5
      %v2961 = vsel %vm2855, %v2959, %v2960
      %v2962 = vrot.slane %v2960, 4
      %s2966 = scalar_lea.vmem [#allocation3], 60
      %2967 = vst.msk [vmem:[%s2966] sm:$0xf] %vm2837, %v2958
      %2968 = vst.msk [vmem:[%s2966 + $0x4] sm:$0xf] %vm2837, %v2961
      %2969 = vst.msk [vmem:[%s2966 + $0x8] sm:$0x1] %vm2840, %v2962
      %s2970 = scalar_lea.vmem [#allocation2], 144
      %2971 = vst.msk [vmem:[%s2970 - $0x4] sm:$0xf0] %vm2872, %v1625
      %2972 = vst.msk [vmem:[%s2970 + $0x4] sm:$0xff] %vm1654, %v1626
      %2973 = vst.msk [vmem:[%s2970 + $0xc] sm:$0x3f] %vm2875, %v1627
      %v2975 = vunpack.c.l.b16 %v2820
      %v2976 = vunpack.c.h.b16 %v2820
      %v2977 = vpack.c.b16 %v2975, %v2975
      %v2978 = vpack.c.b16 %v2976, %v2976
      %v2979 = vrot.slane %v2954, 6
      %v2980 = vrot.slane %v2979, 4
      %v2981 = vrot.slane %v2977, 6
      %v2982 = vsel %vm2884, %v2980, %v2981
      %v2983 = vrot.slane %v2981, 4
      %v2984 = vrot.slane %v2978, 6
      %v2985 = vsel %vm2884, %v2983, %v2984
      %v2986 = vrot.slane %v2984, 4
      %s2990 = scalar_lea.vmem [#allocation3], 72
      %2991 = vst.msk [vmem:[%s2990] sm:$0xf] %vm2837, %v2982
      %2992 = vst.msk [vmem:[%s2990 + $0x4] sm:$0xf] %vm2837, %v2985
      %2993 = vst.msk [vmem:[%s2990 + $0x8] sm:$0x1] %vm2840, %v2986
      %s2994 = scalar_lea.vmem [#allocation2], 168
      %2995 = vst.msk [vmem:[%s2994 - $0x6] sm:$0xc0] %vm2901, %v1627
      %2996 = vst.msk [vmem:[%s2994 + $0x2] sm:$0xff] %vm1654, %v1628
      %2997 = vst.msk [vmem:[%s2994 + $0xa] sm:$0xff] %vm1654, %v1629
      %v2999 = vunpack.c.l.b16 %v2821
      %v3000 = vunpack.c.h.b16 %v2821
      %v3001 = vpack.c.b16 %v2999, %v2999
      %v3002 = vpack.c.b16 %v3000, %v3000
      %v3003 = vrot.slane %v2978, 7
      %v3004 = vrot.slane %v3003, 4
      %v3005 = vrot.slane %v3001, 7
      %v3006 = vsel %vm2912, %v3004, %v3005
      %v3007 = vrot.slane %v3005, 4
      %v3008 = vrot.slane %v3002, 7
      %v3009 = vsel %vm2912, %v3007, %v3008
      %v3010 = vrot.slane %v3008, 4
      %s3014 = scalar_lea.vmem [#allocation3], 84
      %3015 = vst.msk [vmem:[%s3014] sm:$0xf] %vm2837, %v3006
      %3016 = vst.msk [vmem:[%s3014 + $0x4] sm:$0xf] %vm2837, %v3009
      %3017 = vst.msk [vmem:[%s3014 + $0x8] sm:$0x1] %vm2840, %v3010
      %v3018 = vld [vmem:[%s466] sm:$0xf]
      %v3019 = vld [vmem:[%s466 + $0x4] sm:$0xf]
      %v3020 = vld [vmem:[%s466 + $0x8] sm:$0x1]
      %v3021 = vld [vmem:[%s466 + $0xc] sm:$0xf]
      %v3022 = vld [vmem:[%s466 + $0x10] sm:$0xf]
      %v3023 = vld [vmem:[%s466 + $0x14] sm:$0x1]
      %s3024 = sadd.s32 %s26, 1
      %s3025 = smul.u32 %s3024, 8
      %v3033 = vunpack.c.l.s4 1966171168
      %v3034 = vunpack.c.0.s8 %v3033
      %v3035 = vlaneseq
      %v3036 = vshrl.u32 %v3035, 7
      %v3037 = vsub.s32 %v3034, %v3036
      %v3038 = vrot.slane %v3018, %v3037
      %v3039 = vcombine.high %v3038, %v3038
      %v3041 = vunpack.c.l.s4 1966171168
      %v3042 = vunpack.c.0.s8 %v3041
      %v3043 = vlaneseq
      %v3044 = vshrl.u32 %v3043, 7
      %v3045 = vsub.s32 %v3042, %v3044
      %v3046 = vrot.slane %v3038, %v3045
      %v3048 = vunpack.c.l.s4 1966171168
      %v3049 = vunpack.c.0.s8 %v3048
      %v3050 = vlaneseq
      %v3051 = vshrl.u32 %v3050, 7
      %v3052 = vsub.s32 %v3049, %v3051
      %v3053 = vrot.slane %v3039, %v3052
      %v3054 = vcombine.high %v3046, %v3046
      %v3055 = vcombine.high %v3053, %v3053
      %v3057 = vunpack.c.l.s4 1966171168
      %v3058 = vunpack.c.0.s8 %v3057
      %v3059 = vlaneseq
      %v3060 = vshrl.u32 %v3059, 7
      %v3061 = vsub.s32 %v3058, %v3060
      %v3062 = vrot.slane %v3019, %v3061
      %v3063 = vcombine.high %v3062, %v3062
      %v3065 = vunpack.c.l.s4 1966171168
      %v3066 = vunpack.c.0.s8 %v3065
      %v3067 = vlaneseq
      %v3068 = vshrl.u32 %v3067, 7
      %v3069 = vsub.s32 %v3066, %v3068
      %v3070 = vrot.slane %v3062, %v3069
      %v3072 = vunpack.c.l.s4 1966171168
      %v3073 = vunpack.c.0.s8 %v3072
      %v3074 = vlaneseq
      %v3075 = vshrl.u32 %v3074, 7
      %v3076 = vsub.s32 %v3073, %v3075
      %v3077 = vrot.slane %v3063, %v3076
      %v3078 = vcombine.high %v3070, %v3070
      %v3079 = vcombine.high %v3077, %v3077
      %v3081 = vunpack.c.l.s4 1966171168
      %v3082 = vunpack.c.0.s8 %v3081
      %v3083 = vlaneseq
      %v3084 = vshrl.u32 %v3083, 7
      %v3085 = vsub.s32 %v3082, %v3084
      %v3086 = vrot.slane %v3020, %v3085
      %v3088 = vunpack.c.l.s4 1966171168
      %v3089 = vunpack.c.0.s8 %v3088
      %v3090 = vlaneseq
      %v3091 = vshrl.u32 %v3090, 7
      %v3092 = vsub.s32 %v3089, %v3091
      %v3093 = vrot.slane %v3086, %v3092
      %v3095 = vunpack.c.l.s4 1966171168
      %v3096 = vunpack.c.0.s8 %v3095
      %v3097 = vlaneseq
      %v3098 = vshrl.u32 %v3097, 7
      %v3099 = vsub.s32 %v3096, %v3098
      %v3100 = vrot.slane %v3021, %v3099
      %v3101 = vcombine.high %v3100, %v3100
      %v3103 = vunpack.c.l.s4 1966171168
      %v3104 = vunpack.c.0.s8 %v3103
      %v3105 = vlaneseq
      %v3106 = vshrl.u32 %v3105, 7
      %v3107 = vsub.s32 %v3104, %v3106
      %v3108 = vrot.slane %v3100, %v3107
      %v3110 = vunpack.c.l.s4 1966171168
      %v3111 = vunpack.c.0.s8 %v3110
      %v3112 = vlaneseq
      %v3113 = vshrl.u32 %v3112, 7
      %v3114 = vsub.s32 %v3111, %v3113
      %v3115 = vrot.slane %v3101, %v3114
      %v3116 = vcombine.high %v3108, %v3108
      %v3117 = vcombine.high %v3115, %v3115
      %v3119 = vunpack.c.l.s4 1966171168
      %v3120 = vunpack.c.0.s8 %v3119
      %v3121 = vlaneseq
      %v3122 = vshrl.u32 %v3121, 7
      %v3123 = vsub.s32 %v3120, %v3122
      %v3124 = vrot.slane %v3022, %v3123
      %v3125 = vcombine.high %v3124, %v3124
      %v3127 = vunpack.c.l.s4 1966171168
      %v3128 = vunpack.c.0.s8 %v3127
      %v3129 = vlaneseq
      %v3130 = vshrl.u32 %v3129, 7
      %v3131 = vsub.s32 %v3128, %v3130
      %v3132 = vrot.slane %v3124, %v3131
      %v3134 = vunpack.c.l.s4 1966171168
      %v3135 = vunpack.c.0.s8 %v3134
      %v3136 = vlaneseq
      %v3137 = vshrl.u32 %v3136, 7
      %v3138 = vsub.s32 %v3135, %v3137
      %v3139 = vrot.slane %v3125, %v3138
      %v3140 = vcombine.high %v3132, %v3132
      %v3141 = vcombine.high %v3139, %v3139
      %v3143 = vunpack.c.l.s4 1966171168
      %v3144 = vunpack.c.0.s8 %v3143
      %v3145 = vlaneseq
      %v3146 = vshrl.u32 %v3145, 7
      %v3147 = vsub.s32 %v3144, %v3146
      %v3148 = vrot.slane %v3023, %v3147
      %v3150 = vunpack.c.l.s4 1966171168
      %v3151 = vunpack.c.0.s8 %v3150
      %v3152 = vlaneseq
      %v3153 = vshrl.u32 %v3152, 7
      %v3154 = vsub.s32 %v3151, %v3153
      %v3155 = vrot.slane %v3148, %v3154
      %v3156 = vld [vmem:[%s2] sm:$0xf]
      %v3157 = vld [vmem:[%s3] sm:$0x1]
      %v3159 = vlaneseq
      %v3160 = vshrl.u32 %v3159, 7
      %v3161 = vsub.s32 0, %v3160
      %v3162 = vrot.slane %v3157, %v3161
      %v3164 = vcombine.low %v3046, %v3053
      %v3165 = vcombine.low %v3054, %v3055
      %v3166 = vcombine.low %v3070, %v3077
      %v3167 = vcombine.low %v3078, %v3079
      %v3169 = vunpack.c.l.s4 1966171168
      %v3170 = vunpack.c.0.s8 %v3169
      %v3171 = vlaneseq
      %v3172 = vshrl.u32 %v3171, 7
      %v3173 = vsub.s32 %v3170, %v3172
      %v3174 = vrot.slane %v3164, %v3173
      %v3176 = vunpack.c.l.s4 1966171168
      %v3177 = vunpack.c.0.s8 %v3176
      %v3178 = vlaneseq
      %v3179 = vshrl.u32 %v3178, 7
      %v3180 = vsub.s32 %v3177, %v3179
      %v3181 = vrot.slane %v3165, %v3180
      %v3183 = vunpack.c.l.s4 1966171168
      %v3184 = vunpack.c.0.s8 %v3183
      %v3185 = vlaneseq
      %v3186 = vshrl.u32 %v3185, 7
      %v3187 = vsub.s32 %v3184, %v3186
      %v3188 = vrot.slane %v3166, %v3187
      %v3190 = vunpack.c.l.s4 1966171168
      %v3191 = vunpack.c.0.s8 %v3190
      %v3192 = vlaneseq
      %v3193 = vshrl.u32 %v3192, 7
      %v3194 = vsub.s32 %v3191, %v3193
      %v3195 = vrot.slane %v3167, %v3194
      %v3196 = vcombine.low %v3174, %v3181
      %v3197 = vcombine.low %v3188, %v3195
      %v3199 = vunpack.c.l.s4 1966171168
      %v3200 = vunpack.c.0.s8 %v3199
      %v3201 = vlaneseq
      %v3202 = vshrl.u32 %v3201, 7
      %v3203 = vsub.s32 %v3200, %v3202
      %v3204 = vrot.slane %v3196, %v3203
      %v3206 = vunpack.c.l.s4 1966171168
      %v3207 = vunpack.c.0.s8 %v3206
      %v3208 = vlaneseq
      %v3209 = vshrl.u32 %v3208, 7
      %v3210 = vsub.s32 %v3207, %v3209
      %v3211 = vrot.slane %v3197, %v3210
      %v3212 = vcombine.low %v3204, %v3211
      %v3213 = vcombine.low %v3093, %v3108
      %v3214 = vcombine.low %v3115, %v3116
      %v3215 = vcombine.low %v3117, %v3132
      %v3216 = vcombine.low %v3139, %v3140
      %v3218 = vunpack.c.l.s4 1966171168
      %v3219 = vunpack.c.0.s8 %v3218
      %v3220 = vlaneseq
      %v3221 = vshrl.u32 %v3220, 7
      %v3222 = vsub.s32 %v3219, %v3221
      %v3223 = vrot.slane %v3213, %v3222
      %v3225 = vunpack.c.l.s4 1966171168
      %v3226 = vunpack.c.0.s8 %v3225
      %v3227 = vlaneseq
      %v3228 = vshrl.u32 %v3227, 7
      %v3229 = vsub.s32 %v3226, %v3228
      %v3230 = vrot.slane %v3214, %v3229
      %v3232 = vunpack.c.l.s4 1966171168
      %v3233 = vunpack.c.0.s8 %v3232
      %v3234 = vlaneseq
      %v3235 = vshrl.u32 %v3234, 7
      %v3236 = vsub.s32 %v3233, %v3235
      %v3237 = vrot.slane %v3215, %v3236
      %v3239 = vunpack.c.l.s4 1966171168
      %v3240 = vunpack.c.0.s8 %v3239
      %v3241 = vlaneseq
      %v3242 = vshrl.u32 %v3241, 7
      %v3243 = vsub.s32 %v3240, %v3242
      %v3244 = vrot.slane %v3216, %v3243
      %v3245 = vcombine.low %v3223, %v3230
      %v3246 = vcombine.low %v3237, %v3244
      %v3248 = vunpack.c.l.s4 1966171168
      %v3249 = vunpack.c.0.s8 %v3248
      %v3250 = vlaneseq
      %v3251 = vshrl.u32 %v3250, 7
      %v3252 = vsub.s32 %v3249, %v3251
      %v3253 = vrot.slane %v3245, %v3252
      %v3255 = vunpack.c.l.s4 1966171168
      %v3256 = vunpack.c.0.s8 %v3255
      %v3257 = vlaneseq
      %v3258 = vshrl.u32 %v3257, 7
      %v3259 = vsub.s32 %v3256, %v3258
      %v3260 = vrot.slane %v3246, %v3259
      %v3261 = vcombine.low %v3253, %v3260
      %v3262 = vcombine.low %v3141, %v3155
      %v3264 = vunpack.c.l.s4 1966171168
      %v3265 = vunpack.c.0.s8 %v3264
      %v3266 = vlaneseq
      %v3267 = vshrl.u32 %v3266, 7
      %v3268 = vsub.s32 %v3265, %v3267
      %v3269 = vrot.slane %v3262, %v3268
      %v3271 = vunpack.c.l.s4 1966171168
      %v3272 = vunpack.c.0.s8 %v3271
      %v3273 = vlaneseq
      %v3274 = vshrl.u32 %v3273, 7
      %v3275 = vsub.s32 %v3272, %v3274
      %v3276 = vrot.slane %v3269, %v3275
      %v3278 = vsel %vm1475, %v3212, 0
      %v3281 = vsel %vm1475, %v3261, 0
      %v3284 = vsel %vm1475, %v3276, 0
      %v3287 = vsel %vm1503, %v3156, 0
      %3289 = vmatprep.subr.bf16.mxu0 0
      %3290 = vmatpush1.bf16.msra.mxu0 %v3287
      %3291 = vmatprep.subr.bf16.mxu0 0
      %3292 = vmatpush1.bf16.msra.mxu0 0
      %3293 = vmatprep.subr.bf16.mxu0 0
      %3294 = vmatpush1.bf16.msra.mxu0 0
      %3295 = vmatprep.subr.bf16.mxu0 0
      %3296 = vmatpush1.bf16.msra.mxu0 0
      %3297 = vmatprep.subr.bf16.mxu0 0
      %3298 = vmatpush1.bf16.msra.mxu0 0
      %3299 = vmatprep.subr.bf16.mxu0 0
      %3300 = vmatpush1.bf16.msra.mxu0 0
      %3301 = vmatprep.subr.bf16.mxu0 0
      %3302 = vmatpush1.bf16.msra.mxu0 0
      %3303 = vmatprep.subr.bf16.mxu0 0
      %3304 = vmatpush1.bf16.msra.mxu0 0
      %3305 = vmatprep.subr.bf16.mxu0 0
      %3306 = vmatpush1.bf16.msra.mxu0 0
      %3307 = vmatprep.subr.bf16.mxu0 0
      %3308 = vmatpush1.bf16.msra.mxu0 0
      %3309 = vmatprep.subr.bf16.mxu0 0
      %3310 = vmatpush1.bf16.msra.mxu0 0
      %3311 = vmatprep.subr.bf16.mxu0 0
      %3312 = vmatpush1.bf16.msra.mxu0 0
      %3313 = vmatprep.subr.bf16.mxu0 0
      %3314 = vmatpush1.bf16.msra.mxu0 0
      %3315 = vmatprep.subr.bf16.mxu0 0
      %3316 = vmatpush1.bf16.msra.mxu0 0
      %3317 = vmatprep.subr.bf16.mxu0 0
      %3318 = vmatpush1.bf16.msra.mxu0 0
      %3319 = vmatprep.subr.bf16.mxu0 0
      %3320 = vmatpush1.bf16.msra.mxu0 0
      %3321 = vmatprep.mubr.bf16.mxu0 0
      %3322 = vmatmul.mubr.bf16.gmra.mrb[0].mxu0 %v3278
      %v3323 = vpop.f32.mrb[0].mxu0
      %v3324 = vadd.f32 %v3162, %v3323
      %v3325 = vpop.f32.mrb[0].mxu0
      %v3326 = vpop.f32.mrb[0].mxu0
      %v3327 = vadd.f32 %v3162, %v3326
      %v3328 = vpop.f32.mrb[0].mxu0
      %3329 = vmatprep.mubr.bf16.mxu0 0
      %3330 = vmatmul.mubr.bf16.gmra.mrb[0].mxu0 %v3281
      %v3331 = vpop.f32.mrb[0].mxu0
      %v3332 = vadd.f32 %v3162, %v3331
      %v3333 = vpop.f32.mrb[0].mxu0
      %v3334 = vpop.f32.mrb[0].mxu0
      %v3335 = vadd.f32 %v3162, %v3334
      %v3336 = vpop.f32.mrb[0].mxu0
      %3337 = vmatprep.mubr.bf16.mxu0 0
      %3338 = vmatmul.mubr.bf16.gmra.mrb[0].mxu0 %v3284
      %v3339 = vpop.f32.mrb[0].mxu0
      %v3340 = vadd.f32 %v3162, %v3339
      %v3341 = vpop.f32.mrb[0].mxu0
      %v3342 = vpop.f32.mrb[0].mxu0
      %v3343 = vpop.f32.mrb[0].mxu0
      %3344 = vdwg.mxu0
      %v3345 = vmax.f32 %v3324, 0.0
      %v3346 = vmax.f32 %v3327, 0.0
      %v3347 = vmax.f32 %v3332, 0.0
      %v3348 = vmax.f32 %v3335, 0.0
      %v3349 = vmax.f32 %v3340, 0.0
      %v3350 = vpack.c.bf16 %v3346, %v3345
      %v3351 = vpack.c.bf16 %v3348, %v3347
      %v3352 = vpack.c.bf16 %v3349, %v3349
      %v3353 = vld [vmem:[%s4] sm:$0xf]
      %v3354 = vld [vmem:[%s4 + $0x4] sm:$0xf]
      %v3355 = vld [vmem:[%s5] sm:$0x1]
      %v3357 = vlaneseq
      %v3358 = vshrl.u32 %v3357, 7
      %v3359 = vsub.s32 0, %v3358
      %v3360 = vrot.slane %v3355, %v3359
      %v3364 = vunpack.c.l.b16 %v3353
      %v3365 = vunpack.c.l.b16 %v3354
      %v3366 = vpack.c.b16 %v3365, %v3364
      %v3369 = vsel %vm1654, %v3350, 0
      %v3372 = vsel %vm1654, %v3351, 0
      %v3375 = vsel %vm1654, %v3352, 0
      %3377 = vmatprep.subr.bf16.mxu0 0
      %3378 = vmatpush1.bf16.msra.mxu0 %v3366
      %3379 = vmatprep.subr.bf16.mxu0 0
      %3380 = vmatpush1.bf16.msra.mxu0 0
      %3381 = vmatprep.subr.bf16.mxu0 0
      %3382 = vmatpush1.bf16.msra.mxu0 0
      %3383 = vmatprep.subr.bf16.mxu0 0
      %3384 = vmatpush1.bf16.msra.mxu0 0
      %3385 = vmatprep.subr.bf16.mxu0 0
      %3386 = vmatpush1.bf16.msra.mxu0 0
      %3387 = vmatprep.subr.bf16.mxu0 0
      %3388 = vmatpush1.bf16.msra.mxu0 0
      %3389 = vmatprep.subr.bf16.mxu0 0
      %3390 = vmatpush1.bf16.msra.mxu0 0
      %3391 = vmatprep.subr.bf16.mxu0 0
      %3392 = vmatpush1.bf16.msra.mxu0 0
      %3393 = vmatprep.subr.bf16.mxu0 0
      %3394 = vmatpush1.bf16.msra.mxu0 0
      %3395 = vmatprep.subr.bf16.mxu0 0
      %3396 = vmatpush1.bf16.msra.mxu0 0
      %3397 = vmatprep.subr.bf16.mxu0 0
      %3398 = vmatpush1.bf16.msra.mxu0 0
      %3399 = vmatprep.subr.bf16.mxu0 0
      %3400 = vmatpush1.bf16.msra.mxu0 0
      %3401 = vmatprep.subr.bf16.mxu0 0
      %3402 = vmatpush1.bf16.msra.mxu0 0
      %3403 = vmatprep.subr.bf16.mxu0 0
      %3404 = vmatpush1.bf16.msra.mxu0 0
      %3405 = vmatprep.subr.bf16.mxu0 0
      %3406 = vmatpush1.bf16.msra.mxu0 0
      %3407 = vmatprep.subr.bf16.mxu0 0
      %3408 = vmatpush1.bf16.msra.mxu0 0
      %3409 = vmatprep.mubr.bf16.mxu0 0
      %3410 = vmatmul.mubr.bf16.gmra.mrb[0].mxu0 %v3369
      %v3411 = vpop.f32.mrb[0].mxu0
      %v3412 = vadd.f32 %v3360, %v3411
      %v3413 = vpop.f32.mrb[0].mxu0
      %v3414 = vpop.f32.mrb[0].mxu0
      %v3415 = vadd.f32 %v3360, %v3414
      %v3416 = vpop.f32.mrb[0].mxu0
      %3417 = vmatprep.mubr.bf16.mxu0 0
      %3418 = vmatmul.mubr.bf16.gmra.mrb[0].mxu0 %v3372
      %v3419 = vpop.f32.mrb[0].mxu0
      %v3420 = vadd.f32 %v3360, %v3419
      %v3421 = vpop.f32.mrb[0].mxu0
      %v3422 = vpop.f32.mrb[0].mxu0
      %v3423 = vadd.f32 %v3360, %v3422
      %v3424 = vpop.f32.mrb[0].mxu0
      %3425 = vmatprep.mubr.bf16.mxu0 0
      %3426 = vmatmul.mubr.bf16.gmra.mrb[0].mxu0 %v3375
      %v3427 = vpop.f32.mrb[0].mxu0
      %v3428 = vadd.f32 %v3360, %v3427
      %v3429 = vpop.f32.mrb[0].mxu0
      %v3430 = vpop.f32.mrb[0].mxu0
      %v3431 = vpop.f32.mrb[0].mxu0
      %3432 = vdwg.mxu0
      %v3433 = vmax.f32 %v3412, 0.0
      %v3434 = vmax.f32 %v3415, 0.0
      %v3435 = vmax.f32 %v3420, 0.0
      %v3436 = vmax.f32 %v3423, 0.0
      %v3437 = vmax.f32 %v3428, 0.0
      %v3438 = vstv %s3025
      %v3439 = vadd.s32 %v3438, 1
      %vm3440 = vcmp.ge.s32.totalorder %v3438, 1
      %vm3441 = vcmp.ge.s32.totalorder %v3439, 1
      %vm3442 = vcmp.le.s32.totalorder %v3438, 16
      %vm3443 = vcmp.le.s32.totalorder %v3439, 16
      %vm3444 = vmand %vm3440, %vm3442
      %vm3445 = vmand %vm3441, %vm3443
      %vm3446 = vmand %vm3444, %vm1841
      %vm3447 = vmand %vm3444, %vm1842
      %vm3448 = vmand %vm3444, %vm1843
      %vm3449 = vmand %vm3445, %vm1841
      %vm3450 = vmand %vm3445, %vm1842
      %vm3451 = vmand %vm3445, %vm1843
      %vm3452 = vmand %vm3446, %vm1868
      %vm3453 = vmand %vm3447, %vm1869
      %vm3454 = vmand %vm3448, %vm1870
      %vm3455 = vmand %vm3449, %vm1868
      %vm3456 = vmand %vm3450, %vm1869
      %vm3457 = vmand %vm3451, %vm1870
      %v3458 = vsel %vm3452, 1, 0
      %v3459 = vsel %vm3453, 1, 0
      %v3460 = vsel %vm3454, 1, 0
      %v3461 = vsel %vm3455, 1, 0
      %v3462 = vsel %vm3456, 1, 0
      %v3463 = vsel %vm3457, 1, 0
      %v3464 = vcvt.s32.f32 %v3458
      %v3465 = vcvt.s32.f32 %v3459
      %v3466 = vcvt.s32.f32 %v3460
      %v3467 = vcvt.s32.f32 %v3461
      %v3468 = vcvt.s32.f32 %v3462
      %v3469 = vcvt.s32.f32 %v3463
      %v3477 = vunpack.c.l.s4 269488144
      %v3478 = vunpack.c.0.s8 %v3477
      %v3479 = vlaneseq
      %v3480 = vshrl.u32 %v3479, 7
      %v3481 = vsub.s32 %v3478, %v3480
      %v3482 = vrot.slane %v3464, %v3481
      %v3484 = vunpack.c.l.s4 842150450
      %v3485 = vunpack.c.0.s8 %v3484
      %v3486 = vlaneseq
      %v3487 = vshrl.u32 %v3486, 7
      %v3488 = vsub.s32 %v3485, %v3487
      %v3489 = vrot.slane %v3464, %v3488
      %v3491 = vunpack.c.l.s4 1414812756
      %v3492 = vunpack.c.0.s8 %v3491
      %v3493 = vlaneseq
      %v3494 = vshrl.u32 %v3493, 7
      %v3495 = vsub.s32 %v3492, %v3494
      %v3496 = vrot.slane %v3464, %v3495
      %v3498 = vunpack.c.l.s4 1987475062
      %v3499 = vunpack.c.0.s8 %v3498
      %v3500 = vlaneseq
      %v3501 = vshrl.u32 %v3500, 7
      %v3502 = vsub.s32 %v3499, %v3501
      %v3503 = vrot.slane %v3464, %v3502
      %v3505 = vunpack.c.l.s4 269488144
      %v3506 = vunpack.c.0.s8 %v3505
      %v3507 = vlaneseq
      %v3508 = vshrl.u32 %v3507, 7
      %v3509 = vsub.s32 %v3506, %v3508
      %v3510 = vrot.slane %v3465, %v3509
      %v3512 = vunpack.c.l.s4 842150450
      %v3513 = vunpack.c.0.s8 %v3512
      %v3514 = vlaneseq
      %v3515 = vshrl.u32 %v3514, 7
      %v3516 = vsub.s32 %v3513, %v3515
      %v3517 = vrot.slane %v3465, %v3516
      %v3519 = vunpack.c.l.s4 1414812756
      %v3520 = vunpack.c.0.s8 %v3519
      %v3521 = vlaneseq
      %v3522 = vshrl.u32 %v3521, 7
      %v3523 = vsub.s32 %v3520, %v3522
      %v3524 = vrot.slane %v3465, %v3523
      %v3526 = vunpack.c.l.s4 1987475062
      %v3527 = vunpack.c.0.s8 %v3526
      %v3528 = vlaneseq
      %v3529 = vshrl.u32 %v3528, 7
      %v3530 = vsub.s32 %v3527, %v3529
      %v3531 = vrot.slane %v3465, %v3530
      %v3533 = vunpack.c.l.s4 269488144
      %v3534 = vunpack.c.0.s8 %v3533
      %v3535 = vlaneseq
      %v3536 = vshrl.u32 %v3535, 7
      %v3537 = vsub.s32 %v3534, %v3536
      %v3538 = vrot.slane %v3466, %v3537
      %v3540 = vunpack.c.l.s4 269488144
      %v3541 = vunpack.c.0.s8 %v3540
      %v3542 = vlaneseq
      %v3543 = vshrl.u32 %v3542, 7
      %v3544 = vsub.s32 %v3541, %v3543
      %v3545 = vrot.slane %v3467, %v3544
      %v3547 = vunpack.c.l.s4 842150450
      %v3548 = vunpack.c.0.s8 %v3547
      %v3549 = vlaneseq
      %v3550 = vshrl.u32 %v3549, 7
      %v3551 = vsub.s32 %v3548, %v3550
      %v3552 = vrot.slane %v3467, %v3551
      %v3554 = vunpack.c.l.s4 1414812756
      %v3555 = vunpack.c.0.s8 %v3554
      %v3556 = vlaneseq
      %v3557 = vshrl.u32 %v3556, 7
      %v3558 = vsub.s32 %v3555, %v3557
      %v3559 = vrot.slane %v3467, %v3558
      %v3561 = vunpack.c.l.s4 1987475062
      %v3562 = vunpack.c.0.s8 %v3561
      %v3563 = vlaneseq
      %v3564 = vshrl.u32 %v3563, 7
      %v3565 = vsub.s32 %v3562, %v3564
      %v3566 = vrot.slane %v3467, %v3565
      %v3568 = vunpack.c.l.s4 269488144
      %v3569 = vunpack.c.0.s8 %v3568
      %v3570 = vlaneseq
      %v3571 = vshrl.u32 %v3570, 7
      %v3572 = vsub.s32 %v3569, %v3571
      %v3573 = vrot.slane %v3468, %v3572
      %v3575 = vunpack.c.l.s4 842150450
      %v3576 = vunpack.c.0.s8 %v3575
      %v3577 = vlaneseq
      %v3578 = vshrl.u32 %v3577, 7
      %v3579 = vsub.s32 %v3576, %v3578
      %v3580 = vrot.slane %v3468, %v3579
      %v3582 = vunpack.c.l.s4 1414812756
      %v3583 = vunpack.c.0.s8 %v3582
      %v3584 = vlaneseq
      %v3585 = vshrl.u32 %v3584, 7
      %v3586 = vsub.s32 %v3583, %v3585
      %v3587 = vrot.slane %v3468, %v3586
      %v3589 = vunpack.c.l.s4 1987475062
      %v3590 = vunpack.c.0.s8 %v3589
      %v3591 = vlaneseq
      %v3592 = vshrl.u32 %v3591, 7
      %v3593 = vsub.s32 %v3590, %v3592
      %v3594 = vrot.slane %v3468, %v3593
      %v3596 = vunpack.c.l.s4 269488144
      %v3597 = vunpack.c.0.s8 %v3596
      %v3598 = vlaneseq
      %v3599 = vshrl.u32 %v3598, 7
      %v3600 = vsub.s32 %v3597, %v3599
      %v3601 = vrot.slane %v3469, %v3600
      %v3602 = vcombine.low %v3482, %v3489
      %v3603 = vcombine.low %v3496, %v3503
      %v3605 = vunpack.c.l.s4 1983009808
      %v3606 = vunpack.c.0.s8 %v3605
      %v3607 = vlaneseq
      %v3608 = vshrl.u32 %v3607, 7
      %v3609 = vsub.s32 %v3606, %v3608
      %v3610 = vrot.slane %v3602, %v3609
      %v3612 = vunpack.c.l.s4 1983009808
      %v3613 = vunpack.c.0.s8 %v3612
      %v3614 = vlaneseq
      %v3615 = vshrl.u32 %v3614, 7
      %v3616 = vsub.s32 %v3613, %v3615
      %v3617 = vrot.slane %v3603, %v3616
      %v3618 = vcombine.low %v3610, %v3617
      %v3619 = vcombine.low %v3510, %v3517
      %v3620 = vcombine.low %v3524, %v3531
      %v3622 = vunpack.c.l.s4 1983009808
      %v3623 = vunpack.c.0.s8 %v3622
      %v3624 = vlaneseq
      %v3625 = vshrl.u32 %v3624, 7
      %v3626 = vsub.s32 %v3623, %v3625
      %v3627 = vrot.slane %v3619, %v3626
      %v3629 = vunpack.c.l.s4 1983009808
      %v3630 = vunpack.c.0.s8 %v3629
      %v3631 = vlaneseq
      %v3632 = vshrl.u32 %v3631, 7
      %v3633 = vsub.s32 %v3630, %v3632
      %v3634 = vrot.slane %v3620, %v3633
      %v3635 = vcombine.low %v3627, %v3634
      %v3636 = vcombine.low %v3538, %v3545
      %v3637 = vcombine.low %v3552, %v3559
      %v3639 = vunpack.c.l.s4 1983009808
      %v3640 = vunpack.c.0.s8 %v3639
      %v3641 = vlaneseq
      %v3642 = vshrl.u32 %v3641, 7
      %v3643 = vsub.s32 %v3640, %v3642
      %v3644 = vrot.slane %v3636, %v3643
      %v3646 = vunpack.c.l.s4 1983009808
      %v3647 = vunpack.c.0.s8 %v3646
      %v3648 = vlaneseq
      %v3649 = vshrl.u32 %v3648, 7
      %v3650 = vsub.s32 %v3647, %v3649
      %v3651 = vrot.slane %v3637, %v3650
      %v3652 = vcombine.low %v3644, %v3651
      %v3653 = vcombine.low %v3566, %v3573
      %v3654 = vcombine.low %v3580, %v3587
      %v3656 = vunpack.c.l.s4 1983009808
      %v3657 = vunpack.c.0.s8 %v3656
      %v3658 = vlaneseq
      %v3659 = vshrl.u32 %v3658, 7
      %v3660 = vsub.s32 %v3657, %v3659
      %v3661 = vrot.slane %v3653, %v3660
      %v3663 = vunpack.c.l.s4 1983009808
      %v3664 = vunpack.c.0.s8 %v3663
      %v3665 = vlaneseq
      %v3666 = vshrl.u32 %v3665, 7
      %v3667 = vsub.s32 %v3664, %v3666
      %v3668 = vrot.slane %v3654, %v3667
      %v3669 = vcombine.low %v3661, %v3668
      %v3670 = vcombine.low %v3594, %v3601
      %v3672 = vunpack.c.l.s4 1983009808
      %v3673 = vunpack.c.0.s8 %v3672
      %v3674 = vlaneseq
      %v3675 = vshrl.u32 %v3674, 7
      %v3676 = vsub.s32 %v3673, %v3675
      %v3677 = vrot.slane %v3670, %v3676
      %v3683 = vmul.f32 %v3433, %v3618
      %v3684 = vmul.f32 %v3434, %v3635
      %v3685 = vmul.f32 %v3435, %v3652
      %v3686 = vmul.f32 %v3436, %v3669
      %v3687 = vmul.f32 %v3437, %v3677
      %v3688 = vpack.c.bf16 %v3684, %v3683
      %v3689 = vpack.c.bf16 %v3686, %v3685
      %v3690 = vpack.c.bf16 %v3687, %v3687
      %s3691 = scalar_lea.vmem [#allocation2], 192
      %3692 = vst.msk [vmem:[%s3691] sm:$0xff] %vm1654, %v3345
      %3693 = vst.msk [vmem:[%s3691 + $0x8] sm:$0xff] %vm1654, %v3346
      %3694 = vst.msk [vmem:[%s3691 + $0x10] sm:$0x3] %vm2824, %v3347
      %v3697 = vunpack.c.l.b16 %v3688
      %v3698 = vunpack.c.h.b16 %v3688
      %v3699 = vunpack.c.l.b16 %v3689
      %v3700 = vpack.c.b16 %v3697, %v3697
      %v3701 = vpack.c.b16 %v3698, %v3698
      %v3702 = vpack.c.b16 %v3699, %v3699
      %s3706 = scalar_lea.vmem [#allocation3], 96
      %3707 = vst.msk [vmem:[%s3706] sm:$0xf] %vm2837, %v3700
      %3708 = vst.msk [vmem:[%s3706 + $0x4] sm:$0xf] %vm2837, %v3701
      %3709 = vst.msk [vmem:[%s3706 + $0x8] sm:$0x1] %vm2840, %v3702
      %s3710 = scalar_lea.vmem [#allocation2], 216
      %3711 = vst.msk [vmem:[%s3710 - $0x2] sm:$0xfc] %vm2843, %v3347
      %3712 = vst.msk [vmem:[%s3710 + $0x6] sm:$0xff] %vm1654, %v3348
      %3713 = vst.msk [vmem:[%s3710 + $0xe] sm:$0xf] %vm2846, %v3349
      %v3715 = vunpack.c.h.b16 %v3689
      %v3716 = vunpack.c.l.b16 %v3690
      %v3717 = vpack.c.b16 %v3715, %v3715
      %v3718 = vpack.c.b16 %v3716, %v3716
      %v3719 = vrot.slane %v3702, 5
      %v3720 = vrot.slane %v3719, 4
      %v3721 = vrot.slane %v3717, 5
      %v3722 = vsel %vm2855, %v3720, %v3721
      %v3723 = vrot.slane %v3721, 4
      %v3724 = vrot.slane %v3718, 5
      %v3725 = vsel %vm2855, %v3723, %v3724
      %v3726 = vrot.slane %v3724, 4
      %s3730 = scalar_lea.vmem [#allocation3], 108
      %3731 = vst.msk [vmem:[%s3730] sm:$0xf] %vm2837, %v3722
      %3732 = vst.msk [vmem:[%s3730 + $0x4] sm:$0xf] %vm2837, %v3725
      %3733 = vst.msk [vmem:[%s3730 + $0x8] sm:$0x1] %vm2840, %v3726
      %v3734 = vld [vmem:[#allocation3] sm:$0xf]
      %v3735 = vld [vmem:[#allocation3 + $0x4] sm:$0xf]
      %v3736 = vld [vmem:[#allocation3 + $0x8] sm:$0x1]
      %v3737 = vld [vmem:[#allocation3 + $0xc] sm:$0xf]
      %v3738 = vld [vmem:[#allocation3 + $0x10] sm:$0xf]
      %v3739 = vld [vmem:[#allocation3 + $0x14] sm:$0x1]
      %v3740 = vld [vmem:[#allocation3 + $0x18] sm:$0xf]
      %v3741 = vld [vmem:[#allocation3 + $0x1c] sm:$0xf]
      %v3742 = vld [vmem:[#allocation3 + $0x20] sm:$0x1]
      %v3743 = vld [vmem:[#allocation3 + $0x24] sm:$0xf]
      %v3744 = vld [vmem:[#allocation3 + $0x28] sm:$0xf]
      %v3745 = vld [vmem:[#allocation3 + $0x2c] sm:$0x1]
      %v3746 = vld [vmem:[#allocation3 + $0x30] sm:$0xf]
      %v3747 = vld [vmem:[#allocation3 + $0x34] sm:$0xf]
      %v3748 = vld [vmem:[#allocation3 + $0x38] sm:$0x1]
      %v3749 = vld [vmem:[#allocation3 + $0x3c] sm:$0xf]
      %v3750 = vld [vmem:[#allocation3 + $0x40] sm:$0xf]
      %v3751 = vld [vmem:[#allocation3 + $0x44] sm:$0x1]
      %v3752 = vld [vmem:[#allocation3 + $0x48] sm:$0xf]
      %v3753 = vld [vmem:[#allocation3 + $0x4c] sm:$0xf]
      %v3754 = vld [vmem:[#allocation3 + $0x50] sm:$0x1]
      %v3755 = vld [vmem:[#allocation3 + $0x54] sm:$0xf]
      %v3756 = vld [vmem:[#allocation3 + $0x58] sm:$0xf]
      %v3757 = vld [vmem:[#allocation3 + $0x5c] sm:$0x1]
      %v3758 = vld [vmem:[#allocation3 + $0x60] sm:$0xf]
      %v3759 = vld [vmem:[#allocation3 + $0x64] sm:$0xf]
      %v3760 = vld [vmem:[#allocation3 + $0x68] sm:$0x1]
      %v3761 = vld [vmem:[#allocation3 + $0x6c] sm:$0xf]
      %v3762 = vld [vmem:[#allocation3 + $0x70] sm:$0xf]
      %v3763 = vld [vmem:[#allocation3 + $0x74] sm:$0x1]
      %v3784 = vunpack.c.l.b16 %v3734
      %v3785 = vunpack.c.l.b16 %v3735
      %v3786 = vunpack.c.l.b16 %v3737
      %v3787 = vunpack.c.l.b16 %v3738
      %v3788 = vunpack.c.l.b16 %v3740
      %v3789 = vunpack.c.l.b16 %v3741
      %v3790 = vunpack.c.l.b16 %v3743
      %v3791 = vunpack.c.l.b16 %v3744
      %v3792 = vunpack.c.l.b16 %v3746
      %v3793 = vunpack.c.l.b16 %v3747
      %v3794 = vunpack.c.l.b16 %v3749
      %v3795 = vunpack.c.l.b16 %v3750
      %v3796 = vunpack.c.l.b16 %v3752
      %v3797 = vunpack.c.l.b16 %v3753
      %v3798 = vunpack.c.l.b16 %v3755
      %v3799 = vunpack.c.l.b16 %v3756
      %v3800 = vunpack.c.l.b16 %v3758
      %v3801 = vunpack.c.l.b16 %v3759
      %v3802 = vunpack.c.l.b16 %v3761
      %v3803 = vunpack.c.l.b16 %v3762
      %v3804 = vpack.c.b16 %v3785, %v3784
      %v3805 = vpack.c.b16 %v3787, %v3786
      %v3806 = vpack.c.b16 %v3789, %v3788
      %v3807 = vpack.c.b16 %v3791, %v3790
      %v3808 = vpack.c.b16 %v3793, %v3792
      %v3809 = vpack.c.b16 %v3795, %v3794
      %v3810 = vpack.c.b16 %v3797, %v3796
      %v3811 = vpack.c.b16 %v3799, %v3798
      %v3812 = vpack.c.b16 %v3801, %v3800
      %v3813 = vpack.c.b16 %v3803, %v3802
      %v3824 = vunpack.c.l.b16 %v3736
      %v3825 = vunpack.c.l.b16 %v3739
      %v3826 = vunpack.c.l.b16 %v3742
      %v3827 = vunpack.c.l.b16 %v3745
      %v3828 = vunpack.c.l.b16 %v3748
      %v3829 = vunpack.c.l.b16 %v3751
      %v3830 = vunpack.c.l.b16 %v3754
      %v3831 = vunpack.c.l.b16 %v3757
      %v3832 = vunpack.c.l.b16 %v3760
      %v3833 = vunpack.c.l.b16 %v3763
      %v3834 = vpack.c.b16 %v3824, %v3824
      %v3835 = vpack.c.b16 %v3825, %v3825
      %v3836 = vpack.c.b16 %v3826, %v3826
      %v3837 = vpack.c.b16 %v3827, %v3827
      %v3838 = vpack.c.b16 %v3828, %v3828
      %v3839 = vpack.c.b16 %v3829, %v3829
      %v3840 = vpack.c.b16 %v3830, %v3830
      %v3841 = vpack.c.b16 %v3831, %v3831
      %v3842 = vpack.c.b16 %v3832, %v3832
      %v3843 = vpack.c.b16 %v3833, %v3833
      %vm3844 = vsmask.f32 7424
      %v3846 = vshrl.u32 %v3804, 16
      %v3848 = vshll.u32 %v3804, 16
      %v3850 = vrot.slane %v3848, 1
      %v3851 = vor.u32 %v3846, %v3850
      %v3853 = vshll.u32 %v3834, 16
      %v3855 = vrot.slane %v3853, 1
      %v3856 = vsel %vm3844, %v3851, %v3855
      %v3858 = vshrl.u32 %v3805, 16
      %v3860 = vshll.u32 %v3805, 16
      %v3862 = vrot.slane %v3860, 1
      %v3863 = vor.u32 %v3858, %v3862
      %v3865 = vshll.u32 %v3835, 16
      %v3867 = vrot.slane %v3865, 1
      %v3868 = vsel %vm3844, %v3863, %v3867
      %v3870 = vshrl.u32 %v3806, 16
      %v3872 = vshll.u32 %v3806, 16
      %v3874 = vrot.slane %v3872, 1
      %v3875 = vor.u32 %v3870, %v3874
      %v3877 = vshll.u32 %v3836, 16
      %v3879 = vrot.slane %v3877, 1
      %v3880 = vsel %vm3844, %v3875, %v3879
      %v3882 = vshrl.u32 %v3807, 16
      %v3884 = vshll.u32 %v3807, 16
      %v3886 = vrot.slane %v3884, 1
      %v3887 = vor.u32 %v3882, %v3886
      %v3889 = vshll.u32 %v3837, 16
      %v3891 = vrot.slane %v3889, 1
      %v3892 = vsel %vm3844, %v3887, %v3891
      %v3894 = vshrl.u32 %v3808, 16
      %v3896 = vshll.u32 %v3808, 16
      %v3898 = vrot.slane %v3896, 1
      %v3899 = vor.u32 %v3894, %v3898
      %v3901 = vshll.u32 %v3838, 16
      %v3903 = vrot.slane %v3901, 1
      %v3904 = vsel %vm3844, %v3899, %v3903
      %v3906 = vshrl.u32 %v3809, 16
      %v3908 = vshll.u32 %v3809, 16
      %v3910 = vrot.slane %v3908, 1
      %v3911 = vor.u32 %v3906, %v3910
      %v3913 = vshll.u32 %v3839, 16
      %v3915 = vrot.slane %v3913, 1
      %v3916 = vsel %vm3844, %v3911, %v3915
      %v3918 = vshrl.u32 %v3810, 16
      %v3920 = vshll.u32 %v3810, 16
      %v3922 = vrot.slane %v3920, 1
      %v3923 = vor.u32 %v3918, %v3922
      %v3925 = vshll.u32 %v3840, 16
      %v3927 = vrot.slane %v3925, 1
      %v3928 = vsel %vm3844, %v3923, %v3927
      %v3930 = vshrl.u32 %v3811, 16
      %v3932 = vshll.u32 %v3811, 16
      %v3934 = vrot.slane %v3932, 1
      %v3935 = vor.u32 %v3930, %v3934
      %v3937 = vshll.u32 %v3841, 16
      %v3939 = vrot.slane %v3937, 1
      %v3940 = vsel %vm3844, %v3935, %v3939
      %v3942 = vshrl.u32 %v3812, 16
      %v3944 = vshll.u32 %v3812, 16
      %v3946 = vrot.slane %v3944, 1
      %v3947 = vor.u32 %v3942, %v3946
      %v3949 = vshll.u32 %v3842, 16
      %v3951 = vrot.slane %v3949, 1
      %v3952 = vsel %vm3844, %v3947, %v3951
      %v3954 = vshrl.u32 %v3813, 16
      %v3956 = vshll.u32 %v3813, 16
      %v3958 = vrot.slane %v3956, 1
      %v3959 = vor.u32 %v3954, %v3958
      %v3961 = vshll.u32 %v3843, 16
      %v3963 = vrot.slane %v3961, 1
      %v3964 = vsel %vm3844, %v3959, %v3963
      %3965 = vrot.lane.b32.xlu0 %v3856, 4
      %v3966 = vpop.permute.xlu0 %3965
      %3967 = vrot.lane.b32.xlu0 %v3868, 4
      %v3968 = vpop.permute.xlu0 %3967
      %3969 = vrot.lane.b32.xlu0 %v3880, 4
      %v3970 = vpop.permute.xlu0 %3969
      %3971 = vrot.lane.b32.xlu0 %v3892, 4
      %v3972 = vpop.permute.xlu0 %3971
      %3973 = vrot.lane.b32.xlu0 %v3904, 4
      %v3974 = vpop.permute.xlu0 %3973
      %3975 = vrot.lane.b32.xlu0 %v3916, 4
      %v3976 = vpop.permute.xlu0 %3975
      %3977 = vrot.lane.b32.xlu0 %v3928, 4
      %v3978 = vpop.permute.xlu0 %3977
      %3979 = vrot.lane.b32.xlu0 %v3940, 4
      %v3980 = vpop.permute.xlu0 %3979
      %3981 = vrot.lane.b32.xlu0 %v3952, 4
      %v3982 = vpop.permute.xlu0 %3981
      %3983 = vrot.lane.b32.xlu0 %v3964, 4
      %v3984 = vpop.permute.xlu0 %3983
      %vm3985 = vcmask 1046528
      %v3986 = vrot.slane %v3804, 1
      %v3987 = vrot.slane %v3834, 1
      %v3988 = vsel %vm3985, %v3986, %v3987
      %v3989 = vrot.slane %v3805, 1
      %v3990 = vrot.slane %v3835, 1
      %v3991 = vsel %vm3985, %v3989, %v3990
      %v3992 = vrot.slane %v3806, 1
      %v3993 = vrot.slane %v3836, 1
      %v3994 = vsel %vm3985, %v3992, %v3993
      %v3995 = vrot.slane %v3807, 1
      %v3996 = vrot.slane %v3837, 1
      %v3997 = vsel %vm3985, %v3995, %v3996
      %v3998 = vrot.slane %v3808, 1
      %v3999 = vrot.slane %v3838, 1
      %v4000 = vsel %vm3985, %v3998, %v3999
      %v4001 = vrot.slane %v3809, 1
      %v4002 = vrot.slane %v3839, 1
      %v4003 = vsel %vm3985, %v4001, %v4002
      %v4004 = vrot.slane %v3810, 1
      %v4005 = vrot.slane %v3840, 1
      %v4006 = vsel %vm3985, %v4004, %v4005
      %v4007 = vrot.slane %v3811, 1
      %v4008 = vrot.slane %v3841, 1
      %v4009 = vsel %vm3985, %v4007, %v4008
      %v4010 = vrot.slane %v3812, 1
      %v4011 = vrot.slane %v3842, 1
      %v4012 = vsel %vm3985, %v4010, %v4011
      %v4013 = vrot.slane %v3813, 1
      %v4014 = vrot.slane %v3843, 1
      %v4015 = vsel %vm3985, %v4013, %v4014
      %4016 = vrot.lane.b32.xlu0 %v3988, 8
      %v4017 = vpop.permute.xlu0 %4016
      %4018 = vrot.lane.b32.xlu0 %v3991, 8
      %v4019 = vpop.permute.xlu0 %4018
      %4020 = vrot.lane.b32.xlu0 %v3994, 8
      %v4021 = vpop.permute.xlu0 %4020
      %4022 = vrot.lane.b32.xlu0 %v3997, 8
      %v4023 = vpop.permute.xlu0 %4022
      %4024 = vrot.lane.b32.xlu0 %v4000, 8
      %v4025 = vpop.permute.xlu0 %4024
      %4026 = vrot.lane.b32.xlu0 %v4003, 8
      %v4027 = vpop.permute.xlu0 %4026
      %4028 = vrot.lane.b32.xlu0 %v4006, 8
      %v4029 = vpop.permute.xlu0 %4028
      %4030 = vrot.lane.b32.xlu0 %v4009, 8
      %v4031 = vpop.permute.xlu0 %4030
      %4032 = vrot.lane.b32.xlu0 %v4012, 8
      %v4033 = vpop.permute.xlu0 %4032
      %4034 = vrot.lane.b32.xlu0 %v4015, 8
      %v4035 = vpop.permute.xlu0 %4034
      %vm4036 = vcmask 31744
      %v4038 = vsel %vm4036, %v3804, %v3966
      %v4040 = vsel %vm4036, %v3805, %v3968
      %v4042 = vsel %vm4036, %v3806, %v3970
      %v4044 = vsel %vm4036, %v3807, %v3972
      %v4046 = vsel %vm4036, %v3808, %v3974
      %v4048 = vsel %vm4036, %v3809, %v3976
      %v4050 = vsel %vm4036, %v3810, %v3978
      %v4052 = vsel %vm4036, %v3811, %v3980
      %v4054 = vsel %vm4036, %v3812, %v3982
      %v4056 = vsel %vm4036, %v3813, %v3984
      %v4058 = vsel %vm1475, %v4038, %v4017
      %v4060 = vsel %vm1475, %v4040, %v4019
      %v4062 = vsel %vm1475, %v4042, %v4021
      %v4064 = vsel %vm1475, %v4044, %v4023
      %v4066 = vsel %vm1475, %v4046, %v4025
      %v4068 = vsel %vm1475, %v4048, %v4027
      %v4070 = vsel %vm1475, %v4050, %v4029
      %v4072 = vsel %vm1475, %v4052, %v4031
      %v4074 = vsel %vm1475, %v4054, %v4033
      %v4076 = vsel %vm1475, %v4056, %v4035
      %4085 = vrot.lane.b32.xlu0 %v4060, 12
      %v4086 = vpop.permute.xlu0 %4085
      %4087 = vrot.lane.b32.xlu0 %v4062, 12
      %v4088 = vpop.permute.xlu0 %4087
      %4089 = vrot.lane.b32.xlu0 %v4064, 12
      %v4090 = vpop.permute.xlu0 %4089
      %4091 = vrot.lane.b32.xlu0 %v4066, 12
      %v4092 = vpop.permute.xlu0 %4091
      %4093 = vrot.lane.b32.xlu0 %v4068, 12
      %v4094 = vpop.permute.xlu0 %4093
      %4095 = vrot.lane.b32.xlu0 %v4070, 12
      %v4096 = vpop.permute.xlu0 %4095
      %4097 = vrot.lane.b32.xlu0 %v4072, 12
      %v4098 = vpop.permute.xlu0 %4097
      %4099 = vrot.lane.b32.xlu0 %v4074, 12
      %v4100 = vpop.permute.xlu0 %4099
      %4102 = vrot.lane.b32.xlu0 %v4062, 24
      %v4103 = vpop.permute.xlu0 %4102
      %4104 = vrot.lane.b32.xlu0 %v4064, 24
      %v4105 = vpop.permute.xlu0 %4104
      %4106 = vrot.lane.b32.xlu0 %v4066, 24
      %v4107 = vpop.permute.xlu0 %4106
      %4108 = vrot.lane.b32.xlu0 %v4068, 24
      %v4109 = vpop.permute.xlu0 %4108
      %4110 = vrot.lane.b32.xlu0 %v4070, 24
      %v4111 = vpop.permute.xlu0 %4110
      %4112 = vrot.lane.b32.xlu0 %v4072, 24
      %v4113 = vpop.permute.xlu0 %4112
      %4114 = vrot.lane.b32.xlu0 %v4074, 24
      %v4115 = vpop.permute.xlu0 %4114
      %4116 = vrot.lane.b32.xlu0 %v4076, 24
      %v4117 = vpop.permute.xlu0 %4116
      %vm4118 = vcmask 97280
      %v4120 = vsel %vm4118, %v4058, %v4086
      %v4122 = vsel %vm4118, %v4060, %v4088
      %v4124 = vsel %vm4118, %v4062, %v4090
      %v4126 = vsel %vm4118, %v4064, %v4092
      %v4128 = vsel %vm4118, %v4066, %v4094
      %v4130 = vsel %vm4118, %v4068, %v4096
      %v4132 = vsel %vm4118, %v4070, %v4098
      %v4134 = vsel %vm4118, %v4072, %v4100
      %vm4135 = vcmask 195584
      %v4137 = vsel %vm4135, %v4120, %v4103
      %v4139 = vsel %vm4135, %v4122, %v4105
      %v4141 = vsel %vm4135, %v4124, %v4107
      %v4143 = vsel %vm4135, %v4126, %v4109
      %v4145 = vsel %vm4135, %v4128, %v4111
      %v4147 = vsel %vm4135, %v4130, %v4113
      %v4149 = vsel %vm4135, %v4132, %v4115
      %v4151 = vsel %vm4135, %v4134, %v4117
      %v4152 = vld [vmem:[%s6] sm:$0xf]
      %v4153 = vld [vmem:[%s6 + $0x4] sm:$0xf]
      %v4154 = vld [vmem:[%s6 + $0x8] sm:$0xf]
      %v4155 = vld [vmem:[%s6 + $0xc] sm:$0xf]
      %v4156 = vld [vmem:[%s6 + $0x10] sm:$0x3]
      %v4157 = vld [vmem:[%s7] sm:$0x1]
      %v4159 = vlaneseq
      %v4160 = vshrl.u32 %v4159, 7
      %v4161 = vsub.s32 0, %v4160
      %v4162 = vrot.slane %v4157, %v4161
      %v4169 = vunpack.c.l.b16 %v4152
      %v4170 = vunpack.c.l.b16 %v4153
      %v4171 = vunpack.c.l.b16 %v4154
      %v4172 = vunpack.c.l.b16 %v4155
      %v4173 = vunpack.c.l.b16 %v4156
      %v4174 = vpack.c.b16 %v4170, %v4169
      %v4175 = vpack.c.b16 %v4172, %v4171
      %v4176 = vpack.c.b16 %v4173, %v4173
      %vm4179 = vcmask 293888
      %v4180 = vsel %vm4179, %v4137, 0
      %v4182 = vsel %vm4179, %v4139, 0
      %v4184 = vsel %vm4179, %v4141, 0
      %v4186 = vsel %vm4179, %v4143, 0
      %v4188 = vsel %vm4179, %v4145, 0
      %v4190 = vsel %vm4179, %v4147, 0
      %v4192 = vsel %vm4179, %v4149, 0
      %v4194 = vsel %vm4179, %v4151, 0
      %vm4196 = vcmask 1041408
      %v4198 = vsel %vm4196, %v4176, 0
      %4200 = vmatprep.subr.bf16.mxu0 0
      %4201 = vmatpush1.bf16.msra.mxu0 %v4174
      %4202 = vmatprep.subr.bf16.mxu0 0
      %4203 = vmatpush1.bf16.msra.mxu0 %v4175
      %4204 = vmatprep.subr.bf16.mxu0 0
      %4205 = vmatpush1.bf16.msra.mxu0 %v4198
      %4206 = vmatprep.subr.bf16.mxu0 0
      %4207 = vmatpush1.bf16.msra.mxu0 0
      %4208 = vmatprep.subr.bf16.mxu0 0
      %4209 = vmatpush1.bf16.msra.mxu0 0
      %4210 = vmatprep.subr.bf16.mxu0 0
      %4211 = vmatpush1.bf16.msra.mxu0 0
      %4212 = vmatprep.subr.bf16.mxu0 0
      %4213 = vmatpush1.bf16.msra.mxu0 0
      %4214 = vmatprep.subr.bf16.mxu0 0
      %4215 = vmatpush1.bf16.msra.mxu0 0
      %4216 = vmatprep.subr.bf16.mxu0 0
      %4217 = vmatpush1.bf16.msra.mxu0 0
      %4218 = vmatprep.subr.bf16.mxu0 0
      %4219 = vmatpush1.bf16.msra.mxu0 0
      %4220 = vmatprep.subr.bf16.mxu0 0
      %4221 = vmatpush1.bf16.msra.mxu0 0
      %4222 = vmatprep.subr.bf16.mxu0 0
      %4223 = vmatpush1.bf16.msra.mxu0 0
      %4224 = vmatprep.subr.bf16.mxu0 0
      %4225 = vmatpush1.bf16.msra.mxu0 0
      %4226 = vmatprep.subr.bf16.mxu0 0
      %4227 = vmatpush1.bf16.msra.mxu0 0
      %4228 = vmatprep.subr.bf16.mxu0 0
      %4229 = vmatpush1.bf16.msra.mxu0 0
      %4230 = vmatprep.subr.bf16.mxu0 0
      %4231 = vmatpush1.bf16.msra.mxu0 0
      %4232 = vmatprep.mubr.bf16.mxu0 0
      %4233 = vmatmul.mubr.bf16.gmra.mrb[0].mxu0 %v4180
      %v4234 = vpop.f32.mrb[0].mxu0
      %v4235 = vadd.f32 %v4162, %v4234
      %v4236 = vpop.f32.mrb[0].mxu0
      %v4237 = vpop.f32.mrb[0].mxu0
      %v4238 = vadd.f32 %v4162, %v4237
      %v4239 = vpop.f32.mrb[0].mxu0
      %4240 = vmatprep.mubr.bf16.mxu0 0
      %4241 = vmatmul.mubr.bf16.gmra.mrb[0].mxu0 %v4182
      %v4242 = vpop.f32.mrb[0].mxu0
      %v4243 = vadd.f32 %v4162, %v4242
      %v4244 = vpop.f32.mrb[0].mxu0
      %v4245 = vpop.f32.mrb[0].mxu0
      %v4246 = vadd.f32 %v4162, %v4245
      %v4247 = vpop.f32.mrb[0].mxu0
      %4248 = vmatprep.mubr.bf16.mxu0 0
      %4249 = vmatmul.mubr.bf16.gmra.mrb[0].mxu0 %v4184
      %v4250 = vpop.f32.mrb[0].mxu0
      %v4251 = vadd.f32 %v4162, %v4250
      %v4252 = vpop.f32.mrb[0].mxu0
      %v4253 = vpop.f32.mrb[0].mxu0
      %v4254 = vadd.f32 %v4162, %v4253
      %v4255 = vpop.f32.mrb[0].mxu0
      %4256 = vmatprep.mubr.bf16.mxu0 0
      %4257 = vmatmul.mubr.bf16.gmra.mrb[0].mxu0 %v4186
      %v4258 = vpop.f32.mrb[0].mxu0
      %v4259 = vadd.f32 %v4162, %v4258
      %v4260 = vpop.f32.mrb[0].mxu0
      %v4261 = vpop.f32.mrb[0].mxu0
      %v4262 = vadd.f32 %v4162, %v4261
      %v4263 = vpop.f32.mrb[0].mxu0
      %4264 = vmatprep.mubr.bf16.mxu0 0
      %4265 = vmatmul.mubr.bf16.gmra.mrb[0].mxu0 %v4188
      %v4266 = vpop.f32.mrb[0].mxu0
      %v4267 = vadd.f32 %v4162, %v4266
      %v4268 = vpop.f32.mrb[0].mxu0
      %v4269 = vpop.f32.mrb[0].mxu0
      %v4270 = vadd.f32 %v4162, %v4269
      %v4271 = vpop.f32.mrb[0].mxu0
      %4272 = vmatprep.mubr.bf16.mxu0 0
      %4273 = vmatmul.mubr.bf16.gmra.mrb[0].mxu0 %v4190
      %v4274 = vpop.f32.mrb[0].mxu0
      %v4275 = vadd.f32 %v4162, %v4274
      %v4276 = vpop.f32.mrb[0].mxu0
      %v4277 = vpop.f32.mrb[0].mxu0
      %v4278 = vadd.f32 %v4162, %v4277
      %v4279 = vpop.f32.mrb[0].mxu0
      %4280 = vmatprep.mubr.bf16.mxu0 0
      %4281 = vmatmul.mubr.bf16.gmra.mrb[0].mxu0 %v4192
      %v4282 = vpop.f32.mrb[0].mxu0
      %v4283 = vadd.f32 %v4162, %v4282
      %v4284 = vpop.f32.mrb[0].mxu0
      %v4285 = vpop.f32.mrb[0].mxu0
      %v4286 = vadd.f32 %v4162, %v4285
      %v4287 = vpop.f32.mrb[0].mxu0
      %4288 = vmatprep.mubr.bf16.mxu0 0
      %4289 = vmatmul.mubr.bf16.gmra.mrb[0].mxu0 %v4194
      %v4290 = vpop.f32.mrb[0].mxu0
      %v4291 = vadd.f32 %v4162, %v4290
      %v4292 = vpop.f32.mrb[0].mxu0
      %v4293 = vpop.f32.mrb[0].mxu0
      %v4294 = vadd.f32 %v4162, %v4293
      %v4295 = vpop.f32.mrb[0].mxu0
      %4296 = vdwg.mxu0
      %v4297 = vmax.f32 %v4235, 0.0
      %v4298 = vmax.f32 %v4238, 0.0
      %v4299 = vmax.f32 %v4243, 0.0
      %v4300 = vmax.f32 %v4246, 0.0
      %v4301 = vmax.f32 %v4251, 0.0
      %v4302 = vmax.f32 %v4254, 0.0
      %v4303 = vmax.f32 %v4259, 0.0
      %v4304 = vmax.f32 %v4262, 0.0
      %v4305 = vmax.f32 %v4267, 0.0
      %v4306 = vmax.f32 %v4270, 0.0
      %v4307 = vmax.f32 %v4275, 0.0
      %v4308 = vmax.f32 %v4278, 0.0
      %v4309 = vmax.f32 %v4283, 0.0
      %v4310 = vmax.f32 %v4286, 0.0
      %v4311 = vmax.f32 %v4291, 0.0
      %v4312 = vmax.f32 %v4294, 0.0
      %v4313 = vpack.c.bf16 %v4298, %v4297
      %v4314 = vpack.c.bf16 %v4300, %v4299
      %v4315 = vpack.c.bf16 %v4302, %v4301
      %v4316 = vpack.c.bf16 %v4304, %v4303
      %v4317 = vpack.c.bf16 %v4306, %v4305
      %v4318 = vpack.c.bf16 %v4308, %v4307
      %v4319 = vpack.c.bf16 %v4310, %v4309
      %v4320 = vpack.c.bf16 %v4312, %v4311
      %v4321 = vld [vmem:[%s8] sm:$0x3]
      %v4322 = vld [vmem:[%s2842 + $0x1] sm:$0xff]
      %v4323 = vld [vmem:[%s2842 + $0x9] sm:$0xff]
      %v4324 = vld [vmem:[%s2842 + $0x19] sm:$0xff]
      %v4325 = vld [vmem:[%s2842 + $0x21] sm:$0xff]
      %v4326 = vld [vmem:[%s2842 + $0x31] sm:$0xff]
      %v4327 = vld [vmem:[%s2842 + $0x39] sm:$0xff]
      %v4328 = vld [vmem:[%s2842 + $0x49] sm:$0xff]
      %v4329 = vld [vmem:[%s2842 + $0x51] sm:$0xff]
      %v4330 = vld [vmem:[%s2842 + $0x61] sm:$0xff]
      %v4331 = vld [vmem:[%s2842 + $0x69] sm:$0xff]
      %v4332 = vld [vmem:[%s2842 + $0x79] sm:$0xff]
      %v4333 = vld [vmem:[%s2842 + $0x81] sm:$0xff]
      %v4334 = vld [vmem:[%s2842 + $0x91] sm:$0xff]
      %v4335 = vld [vmem:[%s2842 + $0x99] sm:$0xff]
      %v4336 = vld [vmem:[%s2842 + $0xa9] sm:$0xff]
      %v4337 = vld [vmem:[%s2842 + $0xb1] sm:$0xff]
      %v4338 = vld [vmem:[%s9] sm:$0x1]
      %v4340 = vlaneseq
      %v4341 = vshrl.u32 %v4340, 7
      %v4342 = vsub.s32 0, %v4341
      %v4343 = vrot.slane %v4338, %v4342
      %v4346 = vsel %vm4036, %v4313, 0
      %v4349 = vsel %vm4036, %v4314, 0
      %v4352 = vsel %vm4036, %v4315, 0
      %v4355 = vsel %vm4036, %v4316, 0
      %v4358 = vsel %vm4036, %v4317, 0
      %v4361 = vsel %vm4036, %v4318, 0
      %v4364 = vsel %vm4036, %v4319, 0
      %v4367 = vsel %vm4036, %v4320, 0
      %v4370 = vsel %vm4196, %v4321, 0
      %4372 = vmatprep.subr.bf16.mxu0 0
      %4373 = vmatpush1.bf16.msra.mxu0 %v4370
      %4374 = vmatprep.subr.bf16.mxu0 0
      %4375 = vmatpush1.bf16.msra.mxu0 0
      %4376 = vmatprep.subr.bf16.mxu0 0
      %4377 = vmatpush1.bf16.msra.mxu0 0
      %4378 = vmatprep.subr.bf16.mxu0 0
      %4379 = vmatpush1.bf16.msra.mxu0 0
      %4380 = vmatprep.subr.bf16.mxu0 0
      %4381 = vmatpush1.bf16.msra.mxu0 0
      %4382 = vmatprep.subr.bf16.mxu0 0
      %4383 = vmatpush1.bf16.msra.mxu0 0
      %4384 = vmatprep.subr.bf16.mxu0 0
      %4385 = vmatpush1.bf16.msra.mxu0 0
      %4386 = vmatprep.subr.bf16.mxu0 0
      %4387 = vmatpush1.bf16.msra.mxu0 0
      %4388 = vmatprep.subr.bf16.mxu0 0
      %4389 = vmatpush1.bf16.msra.mxu0 0
      %4390 = vmatprep.subr.bf16.mxu0 0
      %4391 = vmatpush1.bf16.msra.mxu0 0
      %4392 = vmatprep.subr.bf16.mxu0 0
      %4393 = vmatpush1.bf16.msra.mxu0 0
      %4394 = vmatprep.subr.bf16.mxu0 0
      %4395 = vmatpush1.bf16.msra.mxu0 0
      %4396 = vmatprep.subr.bf16.mxu0 0
      %4397 = vmatpush1.bf16.msra.mxu0 0
      %4398 = vmatprep.subr.bf16.mxu0 0
      %4399 = vmatpush1.bf16.msra.mxu0 0
      %4400 = vmatprep.subr.bf16.mxu0 0
      %4401 = vmatpush1.bf16.msra.mxu0 0
      %4402 = vmatprep.subr.bf16.mxu0 0
      %4403 = vmatpush1.bf16.msra.mxu0 0
      %4404 = vmatprep.mubr.bf16.mxu0 0
      %4405 = vmatmul.mubr.bf16.gmra.mrb[0].mxu0 %v4346
      %v4406 = vpop.f32.mrb[0].mxu0
      %v4407 = vadd.f32 %v4343, %v4406
      %v4408 = vpop.f32.mrb[0].mxu0
      %v4409 = vpop.f32.mrb[0].mxu0
      %v4410 = vadd.f32 %v4343, %v4409
      %v4411 = vpop.f32.mrb[0].mxu0
      %4412 = vmatprep.mubr.bf16.mxu0 0
      %4413 = vmatmul.mubr.bf16.gmra.mrb[0].mxu0 %v4349
      %v4414 = vpop.f32.mrb[0].mxu0
      %v4415 = vadd.f32 %v4343, %v4414
      %v4416 = vpop.f32.mrb[0].mxu0
      %v4417 = vpop.f32.mrb[0].mxu0
      %v4418 = vadd.f32 %v4343, %v4417
      %v4419 = vpop.f32.mrb[0].mxu0
      %4420 = vmatprep.mubr.bf16.mxu0 0
      %4421 = vmatmul.mubr.bf16.gmra.mrb[0].mxu0 %v4352
      %v4422 = vpop.f32.mrb[0].mxu0
      %v4423 = vadd.f32 %v4343, %v4422
      %v4424 = vpop.f32.mrb[0].mxu0
      %v4425 = vpop.f32.mrb[0].mxu0
      %v4426 = vadd.f32 %v4343, %v4425
      %v4427 = vpop.f32.mrb[0].mxu0
      %4428 = vmatprep.mubr.bf16.mxu0 0
      %4429 = vmatmul.mubr.bf16.gmra.mrb[0].mxu0 %v4355
      %v4430 = vpop.f32.mrb[0].mxu0
      %v4431 = vadd.f32 %v4343, %v4430
      %v4432 = vpop.f32.mrb[0].mxu0
      %v4433 = vpop.f32.mrb[0].mxu0
      %v4434 = vadd.f32 %v4343, %v4433
      %v4435 = vpop.f32.mrb[0].mxu0
      %4436 = vmatprep.mubr.bf16.mxu0 0
      %4437 = vmatmul.mubr.bf16.gmra.mrb[0].mxu0 %v4358
      %v4438 = vpop.f32.mrb[0].mxu0
      %v4439 = vadd.f32 %v4343, %v4438
      %v4440 = vpop.f32.mrb[0].mxu0
      %v4441 = vpop.f32.mrb[0].mxu0
      %v4442 = vadd.f32 %v4343, %v4441
      %v4443 = vpop.f32.mrb[0].mxu0
      %4444 = vmatprep.mubr.bf16.mxu0 0
      %4445 = vmatmul.mubr.bf16.gmra.mrb[0].mxu0 %v4361
      %v4446 = vpop.f32.mrb[0].mxu0
      %v4447 = vadd.f32 %v4343, %v4446
      %v4448 = vpop.f32.mrb[0].mxu0
      %v4449 = vpop.f32.mrb[0].mxu0
      %v4450 = vadd.f32 %v4343, %v4449
      %v4451 = vpop.f32.mrb[0].mxu0
      %4452 = vmatprep.mubr.bf16.mxu0 0
      %4453 = vmatmul.mubr.bf16.gmra.mrb[0].mxu0 %v4364
      %v4454 = vpop.f32.mrb[0].mxu0
      %v4455 = vadd.f32 %v4343, %v4454
      %v4456 = vpop.f32.mrb[0].mxu0
      %v4457 = vpop.f32.mrb[0].mxu0
      %v4458 = vadd.f32 %v4343, %v4457
      %v4459 = vpop.f32.mrb[0].mxu0
      %4460 = vmatprep.mubr.bf16.mxu0 0
      %4461 = vmatmul.mubr.bf16.gmra.mrb[0].mxu0 %v4367
      %v4462 = vpop.f32.mrb[0].mxu0
      %v4463 = vadd.f32 %v4343, %v4462
      %v4464 = vpop.f32.mrb[0].mxu0
      %v4465 = vpop.f32.mrb[0].mxu0
      %v4466 = vadd.f32 %v4343, %v4465
      %v4467 = vpop.f32.mrb[0].mxu0
      %4468 = vdwg.mxu0
      %v4469 = vadd.f32 %v4407, %v4322
      %v4470 = vadd.f32 %v4410, %v4323
      %v4471 = vadd.f32 %v4415, %v4324
      %v4472 = vadd.f32 %v4418, %v4325
      %v4473 = vadd.f32 %v4423, %v4326
      %v4474 = vadd.f32 %v4426, %v4327
      %v4475 = vadd.f32 %v4431, %v4328
      %v4476 = vadd.f32 %v4434, %v4329
      %v4477 = vadd.f32 %v4439, %v4330
      %v4478 = vadd.f32 %v4442, %v4331
      %v4479 = vadd.f32 %v4447, %v4332
      %v4480 = vadd.f32 %v4450, %v4333
      %v4481 = vadd.f32 %v4455, %v4334
      %v4482 = vadd.f32 %v4458, %v4335
      %v4483 = vadd.f32 %v4463, %v4336
      %v4484 = vadd.f32 %v4466, %v4337
      %v4485 = vmax.f32 %v4469, 0.0
      %v4486 = vmax.f32 %v4470, 0.0
      %v4487 = vmax.f32 %v4471, 0.0
      %v4488 = vmax.f32 %v4472, 0.0
      %v4489 = vmax.f32 %v4473, 0.0
      %v4490 = vmax.f32 %v4474, 0.0
      %v4491 = vmax.f32 %v4475, 0.0
      %v4492 = vmax.f32 %v4476, 0.0
      %v4493 = vmax.f32 %v4477, 0.0
      %v4494 = vmax.f32 %v4478, 0.0
      %v4495 = vmax.f32 %v4479, 0.0
      %v4496 = vmax.f32 %v4480, 0.0
      %v4497 = vmax.f32 %v4481, 0.0
      %v4498 = vmax.f32 %v4482, 0.0
      %v4499 = vmax.f32 %v4483, 0.0
      %v4500 = vmax.f32 %v4484, 0.0
      %4501 = vst.msk [vmem:[%s478] sm:$0xff] %vm1654, %v4485
      %4502 = vst.msk [vmem:[%s478 + $0x8] sm:$0xff] %vm1654, %v4486
      %4503 = vst.msk [vmem:[%s478 + $0x10] sm:$0xff] %vm1654, %v4487
      %4504 = vst.msk [vmem:[%s478 + $0x18] sm:$0xff] %vm1654, %v4488
      %4505 = vst.msk [vmem:[%s478 + $0x20] sm:$0xff] %vm1654, %v4489
      %4506 = vst.msk [vmem:[%s478 + $0x28] sm:$0xff] %vm1654, %v4490
      %4507 = vst.msk [vmem:[%s478 + $0x30] sm:$0xff] %vm1654, %v4491
      %4508 = vst.msk [vmem:[%s478 + $0x38] sm:$0xff] %vm1654, %v4492
      %4509 = vst.msk [vmem:[%s478 + $0x40] sm:$0xff] %vm1654, %v4493
      %4510 = vst.msk [vmem:[%s478 + $0x48] sm:$0xff] %vm1654, %v4494
      %4511 = vst.msk [vmem:[%s478 + $0x50] sm:$0xff] %vm1654, %v4495
      %4512 = vst.msk [vmem:[%s478 + $0x58] sm:$0xff] %vm1654, %v4496
      %4513 = vst.msk [vmem:[%s478 + $0x60] sm:$0xff] %vm1654, %v4497
      %4514 = vst.msk [vmem:[%s478 + $0x68] sm:$0xff] %vm1654, %v4498
      %4515 = vst.msk [vmem:[%s478 + $0x70] sm:$0xff] %vm1654, %v4499
      %4516 = vst.msk [vmem:[%s478 + $0x78] sm:$0xff] %vm1654, %v4500
      %s4517 = smul.u32 16, %s26
      %p4518 = scmp.lt.s32.totalorder %s25, 1
      %s4519 = scalar_select %p4518, %s25, 1
      %p4520 = scmp.lt.s32.totalorder %s4517, 31
      %s4521 = scalar_select %p4520, %s4517, 31
      %s4522 = smul.addr %s4519, 32
      %s4523 = sadd.s32 %s4521, %s4522
      %s4524 = smul.addr %s4523, 8
      %s4525 = scalar_lea.vmem %s10, %s4524
      // Predicated region
      $region61: #{res_skip_block_forward.1} parent=59 // pred_check
        %p4526 = pneg %p281
      $region62: #{res_skip_block_forward.1} parent=59 // pred_check_branch
        %4528 = sbr.rel (%p4526) target = $region64
      $region63: #{res_skip_block_forward.1} parent=59 // pred_region
        %s4529 = smul.u32 16, %s26
      $region64: #{res_skip_block_forward.1} parent=59 // pred_fallthru
        _
    $region60: #{res_skip_block_forward.1} parent=5 // pred_fallthru
      _
    %p4530 = scmp.le.s32.totalorder 2, %s16
    // Predicated region
    $region65: #{res_skip_block_forward.1} parent=5 // pred_check
      %p4531 = pneg %p4530
    $region66: #{res_skip_block_forward.1} parent=5 // pred_check_branch
      %4533 = sbr.rel (%p4531) target = $region68
    $region67: #{res_skip_block_forward.1} parent=5 // pred_region
      %s4534 = ssub.s32 %s16, 2
      // Predicated region
      $region69: #{res_skip_block_forward.1} parent=67 // pred_check
        %p4535 = pneg %p287
      $region70: #{res_skip_block_forward.1} parent=67 // pred_check_branch
        %4537 = sbr.rel (%p4535) target = $region72
      $region71: #{res_skip_block_forward.1} parent=67 // pred_region
        %s4538 = smul.u32 16, %s28
        %p4539 = scmp.lt.s32.totalorder %s27, 1
        %s4540 = scalar_select %p4539, %s27, 1
        %p4541 = scmp.lt.s32.totalorder %s4538, 31
        %s4542 = scalar_select %p4541, %s4538, 31
        %s4543 = smul.addr %s4540, 32
        %s4544 = sadd.s32 %s4542, %s4543
        %s4545 = smul.addr %s4544, 8
        %s4546 = scalar_lea.vmem %s10, %s4545
      $region72: #{res_skip_block_forward.1} parent=67 // pred_fallthru
        _
    $region68: #{res_skip_block_forward.1} parent=5 // pred_fallthru
      _
  $region6: #{res_skip_block_forward.1} parent=0 // loop_footer
    %s20 = sadd.s32 1, %s16
  $region7: #{res_skip_block_forward.1} parent=0 // loop_footer_branch
    %15 = sbr.rel target = $region3
  $region8: #{res_skip_block_forward.1} parent=0 // loop_exit
    _

</llo_original>
